<compile_context>
chip_gen: v7x
topology: tpu7x:2x2x1
jax: 0.10.0
libtpu: 0.0.40
codegen_flags: <defaults>
</compile_context>

<pallas_src>
import math
from functools import partial

import jax
import jax.numpy as jnp
from jax.experimental import pallas as pl
from jax.experimental.pallas import tpu as pltpu


def _layer_norm(x, a, b, eps):
    # mean / Bessel std over the feature dim, a*(x-mean)/(std+eps)+b  (all f32)
    mean = jnp.mean(x, axis=-1, keepdims=True)
    var = jnp.sum((x - mean) ** 2, axis=-1, keepdims=True) / (x.shape[-1] - 1)
    inv = pl.reciprocal(jnp.sqrt(var) + eps, approx=True)
    return a * (x - mean) * inv + b


def _encoder_kernel(x_ref,
                    wqkv_ref, wo_ref, w1_ref, w2_ref, small_ref,
                    o_ref,
                    z_ref,
                    *, num_heads, block_b, seq_len, hid_dim, eps):
    layer = pl.program_id(1)

    # Layer 0 of each batch tile: seed the (VMEM-resident) output block with the
    # embedded input; o_ref then carries the activation across all layers.
    @pl.when(layer == 0)
    def _():
        o_ref[...] = x_ref[...]

    x = o_ref[...]                        # (M, D) f32 running activation
    M, D = x.shape
    H = num_heads
    dh = D // H

    # Packed small per-layer params: one (8, W) f32 block, static row slices.
    small = small_ref[0]
    bqkv = small[0:1, :3 * D]             # (1, 3D)
    bo   = small[1:2, :D]                 # (1, D)
    b1   = small[2:3, :hid_dim]           # (1, HID)
    b2   = small[3:4, :D]                 # (1, D)
    ln1a = small[4:5, :D]
    ln1b = small[5:6, :D]
    ln2a = small[6:7, :D]
    ln2b = small[7:8, :D]

    # ---------------- fused QKV projection (1/sqrt(dh) pre-folded into Q) -----
    qkv = jnp.dot(x.astype(jnp.bfloat16), wqkv_ref[0],
                  preferred_element_type=jnp.float32) + bqkv        # (M, 3D) f32
    qkv3 = qkv.reshape(block_b, seq_len, 3 * D).astype(jnp.bfloat16)

    # ---------------- multi-head attention ------------------------------------
    # Per-head scores/softmax via 3-D einsums batched over the batch elements of
    # this block; each head's output lands in its static lane slice of the bf16
    # z scratch so the output projection is ONE full-K (M,D)@(D,D) MXU call.
    for h in range(H):
        qh = qkv3[:, :, h * dh:(h + 1) * dh]                        # (B, L, dh)
        kh = qkv3[:, :, D + h * dh:D + (h + 1) * dh]
        vh = qkv3[:, :, 2 * D + h * dh:2 * D + (h + 1) * dh]
        s = jnp.einsum('bqd,bkd->bqk', qh, kh,
                       preferred_element_type=jnp.float32)          # (B, L, L)
        s = s - jnp.max(s, axis=-1, keepdims=True)
        e = jnp.exp(s)
        p = e * pl.reciprocal(jnp.sum(e, axis=-1, keepdims=True), approx=True)
        zh = jnp.einsum('bqk,bkd->bqd', p.astype(jnp.bfloat16), vh,
                        preferred_element_type=jnp.float32)         # (B, L, dh)
        z_ref[:, h * dh:(h + 1) * dh] = zh.reshape(M, dh).astype(jnp.bfloat16)

    attn = jnp.dot(z_ref[...], wo_ref[0],
                   preferred_element_type=jnp.float32) + bo         # (M, D)

    y1 = _layer_norm(x + attn, ln1a, ln1b, eps)                     # f32

    # ---------------- FeedForward: Linear(D, HID) -> ReLU -> Linear(HID, D) ---
    h1 = jnp.dot(y1.astype(jnp.bfloat16), w1_ref[0],
                 preferred_element_type=jnp.float32) + b1
    h1 = jnp.maximum(h1, 0.0)
    ff = jnp.dot(h1.astype(jnp.bfloat16), w2_ref[0],
                 preferred_element_type=jnp.float32) + b2

    # Carry to the next layer (and final HBM writeback on the last layer).
    o_ref[...] = _layer_norm(y1 + ff, ln2a, ln2b, eps)


def encoder_forward(x_emb, params, *, num_heads, eps=1e-6, block_b=None,
                    vmem_limit_bytes=48 * 1024 * 1024):
    """Run the full N-layer encoder in one fused Pallas kernel.

    x_emb: (B, L, D) float32.  params: stacked/fused weights (see init).
    block_b: batch elements per grid step.  Default ~B/2 so the 'parallel'
    batch-tile axis has >=2 steps (megacore sharding on v7x).  For real sizes
    pick block_b so M = block_b*L clears the weight-DMA roofline (>=256 v5e,
    >=768 v6e, >=384 per core v7x) and raise vmem_limit_bytes on 128 MiB parts.
    """
    B, L, D = x_emb.shape
    n_layers = params['wqkv'].shape[0]
    hid = params['w1'].shape[-1]
    W = params['small'].shape[-1]

    if block_b is None:
        block_b = max(1, B // 2)          # >=2 batch tiles for megacore (v7x)
        while B % block_b != 0:
            block_b -= 1
    assert B % block_b == 0, "block_b must divide batch"
    M = block_b * L
    assert M % 8 == 0 or block_b == B, "block rows must be sublane-aligned"

    # Flatten (B, L, D) -> (B*L, D) outside the kernel: every projection / FFN
    # matmul then operates on a single lane-contiguous 2-D slab.
    x2 = x_emb.reshape(B * L, D).astype(jnp.float32)

    act_map = lambda bt, l: (bt, 0)       # activation blocks: follow batch tile
    w3_map = lambda bt, l: (l, 0, 0)      # per-layer stacked params: follow layer

    in_specs = [
        pl.BlockSpec((M, D), act_map),                    # x (flattened)
        pl.BlockSpec((1, D, 3 * D), w3_map),              # wqkv (bf16)
        pl.BlockSpec((1, D, D), w3_map),                  # wo   (bf16)
        pl.BlockSpec((1, D, hid), w3_map),                # w1   (bf16)
        pl.BlockSpec((1, hid, D), w3_map),                # w2   (bf16)
        pl.BlockSpec((1, 8, W), w3_map),                  # packed small params
    ]

    out = pl.pallas_call(
        partial(_encoder_kernel, num_heads=num_heads, block_b=block_b,
                seq_len=L, hid_dim=hid, eps=eps),
        out_shape=jax.ShapeDtypeStruct((B * L, D), jnp.float32),
        grid_spec=pltpu.PrefetchScalarGridSpec(
            num_scalar_prefetch=0,
            grid=(B // block_b, n_layers),                # (batch tiles, layers)
            in_specs=in_specs,
            out_specs=pl.BlockSpec((M, D), act_map),
            scratch_shapes=[pltpu.VMEM((M, D), jnp.bfloat16)]),   # z (head concat)
        compiler_params=pltpu.CompilerParams(
            dimension_semantics=("parallel", "arbitrary"),
            vmem_limit_bytes=vmem_limit_bytes),
    )(x2, params['wqkv'], params['wo'], params['w1'], params['w2'],
      params['small'])

    return out.reshape(B, L, D)


# --------------------------- parameter init ----------------------------------

def _init_linear(key, d_in, d_out):
    kw, kb = jax.random.split(key)
    bound = 1.0 / math.sqrt(d_in)
    w = jax.random.uniform(kw, (d_in, d_out), jnp.float32, -bound, bound)
    b = jax.random.uniform(kb, (d_out,), jnp.float32, -bound, bound)
    return w, b


def init_encoder_params(key, d_model, n_layers, num_heads, hid_dim=2048,
                        weight_dtype=jnp.bfloat16):
    """Stacked, fused parameters for the single-kernel encoder.

    Matmul weights are (in, out) (transpose of nn.Linear.weight) in bf16.
    The 1/sqrt(dh) attention scale is folded into the Q columns + Q bias.
    All small per-layer vectors are packed into one (n_layers, 8, W) f32 array:
      row 0: bqkv   row 1: bo   row 2: b1   row 3: b2
      row 4: ln1_a  row 5: ln1_b  row 6: ln2_a  row 7: ln2_b
    """
    dh = d_model // num_heads
    q_scale = 1.0 / math.sqrt(dh)
    W = max(3 * d_model, hid_dim, d_model)
    W = ((W + 127) // 128) * 128          # lane-dense packed width

    def pad_row(v):
        return jnp.pad(v, (0, W - v.shape[0]))

    acc = {k: [] for k in ("wqkv", "wo", "w1", "w2", "small")}
    for _ in range(n_layers):
        keys = jax.random.split(key, 7)
        key = keys[0]
        wq, bq = _init_linear(keys[1], d_model, d_model)
        wk, bk = _init_linear(keys[2], d_model, d_model)
        wv, bv = _init_linear(keys[3], d_model, d_model)
        wo, bo = _init_linear(keys[4], d_model, d_model)
        w1, b1 = _init_linear(keys[5], d_model, hid_dim)
        w2, b2 = _init_linear(keys[6], hid_dim, d_model)

        acc["wqkv"].append(
            jnp.concatenate([wq * q_scale, wk, wv], axis=1))        # (D, 3D)
        acc["wo"].append(wo)                                        # (D, D)
        acc["w1"].append(w1)                                        # (D, HID)
        acc["w2"].append(w2)                                        # (HID, D)

        small = jnp.stack([
            pad_row(jnp.concatenate([bq * q_scale, bk, bv])),       # bqkv
            pad_row(bo),
            pad_row(b1),
            pad_row(b2),
            pad_row(jnp.ones((d_model,), jnp.float32)),             # ln1 a
            pad_row(jnp.zeros((d_model,), jnp.float32)),            # ln1 b
            pad_row(jnp.ones((d_model,), jnp.float32)),             # ln2 a
            pad_row(jnp.zeros((d_model,), jnp.float32)),            # ln2 b
        ])                                                          # (8, W)
        acc["small"].append(small)

    stacked = {k: jnp.stack(v) for k, v in acc.items()}
    for k in ("wqkv", "wo", "w1", "w2"):
        stacked[k] = stacked[k].astype(weight_dtype)
    return stacked


if __name__ == "__main__":
    B, L, D = 2, 8, 32      # batch, seq len, d_model
    H = 4                   # attention heads (D % H == 0)
    N = 2                   # encoder layers
    HID = 2048              # FeedForward hidden dim (PyTorch default)
    # TODO(synk): for D < 128, lane-padding D to 128 (with masked LayerNorm
    # stats) would make every store lane-dense; skipped at this toy size.

    key = jax.random.PRNGKey(0)
    kx, kp = jax.random.split(key)
    x_emb = jax.random.normal(kx, (B, L, D), jnp.float32)
    params = init_encoder_params(kp, D, N, H, hid_dim=HID)

    out = encoder_forward(x_emb, params, num_heads=H)
    out = jax.block_until_ready(out)
    assert out.shape == (B, L, D)
    assert bool(jnp.all(jnp.isfinite(out)))
    print("KERNEL_OK")
</pallas_src>

<mosaic_0001>
module attributes {stable_mosaic.version = 11 : i64} {
  func.func @_encoder_kernel(%arg0: i32, %arg1: i32, %arg2: memref<8x32xf32, #tpu.memory_space<vmem>>, %arg3: memref<1x32x96xbf16, #tpu.memory_space<vmem>>, %arg4: memref<1x32x32xbf16, #tpu.memory_space<vmem>>, %arg5: memref<1x32x2048xbf16, #tpu.memory_space<vmem>>, %arg6: memref<1x2048x32xbf16, #tpu.memory_space<vmem>>, %arg7: memref<1x8x2048xf32, #tpu.memory_space<vmem>>, %arg8: memref<8x32xf32, #tpu.memory_space<vmem>>, %arg9: memref<8x32xbf16, #tpu.memory_space<vmem>>) attributes {dimension_semantics = [#tpu.dimension_semantics<parallel>, #tpu.dimension_semantics<arbitrary>], iteration_bounds = array<i64: 2, 2>, scalar_prefetch = 0 : i64, scratch_operands = 1 : i64, tpu.core_type = #tpu.core_type<tc>, window_params = [{transform_indices = @transform_0, window_bounds = array<i64: 8, 32>}, {transform_indices = @transform_1, window_bounds = array<i64: 1, 32, 96>}, {transform_indices = @transform_2, window_bounds = array<i64: 1, 32, 32>}, {transform_indices = @transform_3, window_bounds = array<i64: 1, 32, 2048>}, {transform_indices = @transform_4, window_bounds = array<i64: 1, 2048, 32>}, {transform_indices = @transform_5, window_bounds = array<i64: 1, 8, 2048>}, {transform_indices = @transform_6, window_bounds = array<i64: 8, 32>}]} {
    %c0_i32 = arith.constant 0 : i32
    %0 = arith.cmpi eq, %arg1, %c0_i32 : i32
    %1 = arith.extui %0 : i1 to i32
    %c0_i32_0 = arith.constant 0 : i32
    %2 = arith.cmpi ne, %1, %c0_i32_0 : i32
    scf.if %2 {
      %c0_56 = arith.constant 0 : index
      %c0_57 = arith.constant 0 : index
      %167 = vector.load %arg2[%c0_56, %c0_57] : memref<8x32xf32, #tpu.memory_space<vmem>>, vector<8x32xf32>
      %c0_58 = arith.constant 0 : index
      %c0_59 = arith.constant 0 : index
      %168 = vector.load %arg8[%c0_58, %c0_59] : memref<8x32xf32, #tpu.memory_space<vmem>>, vector<8x32xf32>
      tpu.vector_store %arg8[%c0_58, %c0_59], %167 {strides = array<i32>} : memref<8x32xf32, #tpu.memory_space<vmem>>, vector<8x32xf32>,
    } else {
    }
    %c0 = arith.constant 0 : index
    %c0_1 = arith.constant 0 : index
    %3 = vector.load %arg8[%c0, %c0_1] : memref<8x32xf32, #tpu.memory_space<vmem>>, vector<8x32xf32>
    %c0_2 = arith.constant 0 : index
    %c0_3 = arith.constant 0 : index
    %c0_4 = arith.constant 0 : index
    %4 = vector.load %arg7[%c0_2, %c0_3, %c0_4] : memref<1x8x2048xf32, #tpu.memory_space<vmem>>, vector<1x8x2048xf32>
    %5 = vector.shape_cast %4 : vector<1x8x2048xf32> to vector<8x2048xf32>
    %6 = vector.extract_strided_slice %5 {offsets = [0, 0], sizes = [1, 96], strides = [1, 1]} : vector<8x2048xf32> to vector<1x96xf32>
    %7 = vector.extract_strided_slice %5 {offsets = [1, 0], sizes = [1, 32], strides = [1, 1]} : vector<8x2048xf32> to vector<1x32xf32>
    %8 = vector.extract_strided_slice %5 {offsets = [2, 0], sizes = [1, 2048], strides = [1, 1]} : vector<8x2048xf32> to vector<1x2048xf32>
    %9 = vector.extract_strided_slice %5 {offsets = [3, 0], sizes = [1, 32], strides = [1, 1]} : vector<8x2048xf32> to vector<1x32xf32>
    %10 = vector.extract_strided_slice %5 {offsets = [4, 0], sizes = [1, 32], strides = [1, 1]} : vector<8x2048xf32> to vector<1x32xf32>
    %11 = vector.extract_strided_slice %5 {offsets = [5, 0], sizes = [1, 32], strides = [1, 1]} : vector<8x2048xf32> to vector<1x32xf32>
    %12 = vector.extract_strided_slice %5 {offsets = [6, 0], sizes = [1, 32], strides = [1, 1]} : vector<8x2048xf32> to vector<1x32xf32>
    %13 = vector.extract_strided_slice %5 {offsets = [7, 0], sizes = [1, 32], strides = [1, 1]} : vector<8x2048xf32> to vector<1x32xf32>
    %14 = arith.truncf %3 : vector<8x32xf32> to vector<8x32xbf16>
    %c0_5 = arith.constant 0 : index
    %c0_6 = arith.constant 0 : index
    %c0_7 = arith.constant 0 : index
    %15 = vector.load %arg3[%c0_5, %c0_6, %c0_7] : memref<1x32x96xbf16, #tpu.memory_space<vmem>>, vector<1x32x96xbf16>
    %16 = vector.shape_cast %15 : vector<1x32x96xbf16> to vector<32x96xbf16>
    %cst = arith.constant dense<0.000000e+00> : vector<8x96xf32>
    %17 = tpu.matmul %14, %16, %cst {dimension_numbers = #tpu.dot_dimension_numbers<[1], [0], [0], [1], [0, 0, 1, 1], [], []>} : vector<8x32xbf16>, vector<32x96xbf16>, vector<8x96xf32> -> vector<8x96xf32>
    %18 = vector.broadcast %6 : vector<1x96xf32> to vector<8x96xf32>
    %19 = arith.addf %17, %18 : vector<8x96xf32>
    %20 = vector.shape_cast %19 : vector<8x96xf32> to vector<1x8x96xf32>
    %21 = arith.truncf %20 : vector<1x8x96xf32> to vector<1x8x96xbf16>
    %22 = vector.extract_strided_slice %21 {offsets = [0, 0, 0], sizes = [1, 8, 8], strides = [1, 1, 1]} : vector<1x8x96xbf16> to vector<1x8x8xbf16>
    %23 = vector.extract_strided_slice %21 {offsets = [0, 0, 32], sizes = [1, 8, 8], strides = [1, 1, 1]} : vector<1x8x96xbf16> to vector<1x8x8xbf16>
    %24 = vector.extract_strided_slice %21 {offsets = [0, 0, 64], sizes = [1, 8, 8], strides = [1, 1, 1]} : vector<1x8x96xbf16> to vector<1x8x8xbf16>
    "tpu.trace_start"() <{level = 10 : i32, message = "bqd,bkd->bqk"}> : () -> ()
    %cst_8 = arith.constant dense<0.000000e+00> : vector<1x8x8xf32>
    %25 = tpu.matmul %22, %23, %cst_8 {dimension_numbers = #tpu.dot_dimension_numbers<[2], [2], [1], [1], [0, 0, 0, 1, 1, 1], [0], [0]>} : vector<1x8x8xbf16>, vector<1x8x8xbf16>, vector<1x8x8xf32> -> vector<1x8x8xf32>
    "tpu.trace_stop"() : () -> ()
    %cst_9 = arith.constant dense<0xFF800000> : vector<1x8xf32>
    %26 = vector.multi_reduction <maximumf>, %25, %cst_9 [2] : vector<1x8x8xf32> to vector<1x8xf32>
    %27 = vector.shape_cast %26 : vector<1x8xf32> to vector<1x8x1xf32>
    %28 = vector.broadcast %27 : vector<1x8x1xf32> to vector<1x8x8xf32>
    %29 = arith.subf %25, %28 : vector<1x8x8xf32>
    %30 = math.exp %29 : vector<1x8x8xf32>
    %cst_10 = arith.constant dense<0.000000e+00> : vector<1x8xf32>
    %31 = vector.multi_reduction <add>, %30, %cst_10 [2] : vector<1x8x8xf32> to vector<1x8xf32>
    %32 = vector.shape_cast %31 : vector<1x8xf32> to vector<1x8x1xf32>
    %33 = tpu.reciprocal %32 {approx = true} : vector<1x8x1xf32> -> vector<1x8x1xf32>
    %34 = vector.broadcast %33 : vector<1x8x1xf32> to vector<1x8x8xf32>
    %35 = arith.mulf %30, %34 : vector<1x8x8xf32>
    %36 = arith.truncf %35 : vector<1x8x8xf32> to vector<1x8x8xbf16>
    "tpu.trace_start"() <{level = 10 : i32, message = "bqk,bkd->bqd"}> : () -> ()
    %cst_11 = arith.constant dense<0.000000e+00> : vector<1x8x8xf32>
    %37 = tpu.matmul %36, %24, %cst_11 {dimension_numbers = #tpu.dot_dimension_numbers<[2], [1], [1], [2], [0, 0, 0, 1, 1, 2], [0], [0]>} : vector<1x8x8xbf16>, vector<1x8x8xbf16>, vector<1x8x8xf32> -> vector<1x8x8xf32>
    "tpu.trace_stop"() : () -> ()
    %38 = vector.shape_cast %37 : vector<1x8x8xf32> to vector<8x8xf32>
    %39 = arith.truncf %38 : vector<8x8xf32> to vector<8x8xbf16>
    %c0_12 = arith.constant 0 : index
    %c0_13 = arith.constant 0 : index
    %40 = vector.load %arg9[%c0_12, %c0_13] : memref<8x32xbf16, #tpu.memory_space<vmem>>, vector<8x8xbf16>
    tpu.vector_store %arg9[%c0_12, %c0_13], %39 {strides = array<i32>} : memref<8x32xbf16, #tpu.memory_space<vmem>>, vector<8x8xbf16>,
    %41 = vector.extract_strided_slice %21 {offsets = [0, 0, 8], sizes = [1, 8, 8], strides = [1, 1, 1]} : vector<1x8x96xbf16> to vector<1x8x8xbf16>
    %42 = vector.extract_strided_slice %21 {offsets = [0, 0, 40], sizes = [1, 8, 8], strides = [1, 1, 1]} : vector<1x8x96xbf16> to vector<1x8x8xbf16>
    %43 = vector.extract_strided_slice %21 {offsets = [0, 0, 72], sizes = [1, 8, 8], strides = [1, 1, 1]} : vector<1x8x96xbf16> to vector<1x8x8xbf16>
    "tpu.trace_start"() <{level = 10 : i32, message = "bqd,bkd->bqk"}> : () -> ()
    %cst_14 = arith.constant dense<0.000000e+00> : vector<1x8x8xf32>
    %44 = tpu.matmul %41, %42, %cst_14 {dimension_numbers = #tpu.dot_dimension_numbers<[2], [2], [1], [1], [0, 0, 0, 1, 1, 1], [0], [0]>} : vector<1x8x8xbf16>, vector<1x8x8xbf16>, vector<1x8x8xf32> -> vector<1x8x8xf32>
    "tpu.trace_stop"() : () -> ()
    %cst_15 = arith.constant dense<0xFF800000> : vector<1x8xf32>
    %45 = vector.multi_reduction <maximumf>, %44, %cst_15 [2] : vector<1x8x8xf32> to vector<1x8xf32>
    %46 = vector.shape_cast %45 : vector<1x8xf32> to vector<1x8x1xf32>
    %47 = vector.broadcast %46 : vector<1x8x1xf32> to vector<1x8x8xf32>
    %48 = arith.subf %44, %47 : vector<1x8x8xf32>
    %49 = math.exp %48 : vector<1x8x8xf32>
    %cst_16 = arith.constant dense<0.000000e+00> : vector<1x8xf32>
    %50 = vector.multi_reduction <add>, %49, %cst_16 [2] : vector<1x8x8xf32> to vector<1x8xf32>
    %51 = vector.shape_cast %50 : vector<1x8xf32> to vector<1x8x1xf32>
    %52 = tpu.reciprocal %51 {approx = true} : vector<1x8x1xf32> -> vector<1x8x1xf32>
    %53 = vector.broadcast %52 : vector<1x8x1xf32> to vector<1x8x8xf32>
    %54 = arith.mulf %49, %53 : vector<1x8x8xf32>
    %55 = arith.truncf %54 : vector<1x8x8xf32> to vector<1x8x8xbf16>
    "tpu.trace_start"() <{level = 10 : i32, message = "bqk,bkd->bqd"}> : () -> ()
    %cst_17 = arith.constant dense<0.000000e+00> : vector<1x8x8xf32>
    %56 = tpu.matmul %55, %43, %cst_17 {dimension_numbers = #tpu.dot_dimension_numbers<[2], [1], [1], [2], [0, 0, 0, 1, 1, 2], [0], [0]>} : vector<1x8x8xbf16>, vector<1x8x8xbf16>, vector<1x8x8xf32> -> vector<1x8x8xf32>
    "tpu.trace_stop"() : () -> ()
    %57 = vector.shape_cast %56 : vector<1x8x8xf32> to vector<8x8xf32>
    %58 = arith.truncf %57 : vector<8x8xf32> to vector<8x8xbf16>
    %c0_18 = arith.constant 0 : index
    %c8 = arith.constant 8 : index
    %59 = vector.load %arg9[%c0_18, %c8] : memref<8x32xbf16, #tpu.memory_space<vmem>>, vector<8x8xbf16>
    tpu.vector_store %arg9[%c0_18, %c8], %58 {strides = array<i32>} : memref<8x32xbf16, #tpu.memory_space<vmem>>, vector<8x8xbf16>,
    %60 = vector.extract_strided_slice %21 {offsets = [0, 0, 16], sizes = [1, 8, 8], strides = [1, 1, 1]} : vector<1x8x96xbf16> to vector<1x8x8xbf16>
    %61 = vector.extract_strided_slice %21 {offsets = [0, 0, 48], sizes = [1, 8, 8], strides = [1, 1, 1]} : vector<1x8x96xbf16> to vector<1x8x8xbf16>
    %62 = vector.extract_strided_slice %21 {offsets = [0, 0, 80], sizes = [1, 8, 8], strides = [1, 1, 1]} : vector<1x8x96xbf16> to vector<1x8x8xbf16>
    "tpu.trace_start"() <{level = 10 : i32, message = "bqd,bkd->bqk"}> : () -> ()
    %cst_19 = arith.constant dense<0.000000e+00> : vector<1x8x8xf32>
    %63 = tpu.matmul %60, %61, %cst_19 {dimension_numbers = #tpu.dot_dimension_numbers<[2], [2], [1], [1], [0, 0, 0, 1, 1, 1], [0], [0]>} : vector<1x8x8xbf16>, vector<1x8x8xbf16>, vector<1x8x8xf32> -> vector<1x8x8xf32>
    "tpu.trace_stop"() : () -> ()
    %cst_20 = arith.constant dense<0xFF800000> : vector<1x8xf32>
    %64 = vector.multi_reduction <maximumf>, %63, %cst_20 [2] : vector<1x8x8xf32> to vector<1x8xf32>
    %65 = vector.shape_cast %64 : vector<1x8xf32> to vector<1x8x1xf32>
    %66 = vector.broadcast %65 : vector<1x8x1xf32> to vector<1x8x8xf32>
    %67 = arith.subf %63, %66 : vector<1x8x8xf32>
    %68 = math.exp %67 : vector<1x8x8xf32>
    %cst_21 = arith.constant dense<0.000000e+00> : vector<1x8xf32>
    %69 = vector.multi_reduction <add>, %68, %cst_21 [2] : vector<1x8x8xf32> to vector<1x8xf32>
    %70 = vector.shape_cast %69 : vector<1x8xf32> to vector<1x8x1xf32>
    %71 = tpu.reciprocal %70 {approx = true} : vector<1x8x1xf32> -> vector<1x8x1xf32>
    %72 = vector.broadcast %71 : vector<1x8x1xf32> to vector<1x8x8xf32>
    %73 = arith.mulf %68, %72 : vector<1x8x8xf32>
    %74 = arith.truncf %73 : vector<1x8x8xf32> to vector<1x8x8xbf16>
    "tpu.trace_start"() <{level = 10 : i32, message = "bqk,bkd->bqd"}> : () -> ()
    %cst_22 = arith.constant dense<0.000000e+00> : vector<1x8x8xf32>
    %75 = tpu.matmul %74, %62, %cst_22 {dimension_numbers = #tpu.dot_dimension_numbers<[2], [1], [1], [2], [0, 0, 0, 1, 1, 2], [0], [0]>} : vector<1x8x8xbf16>, vector<1x8x8xbf16>, vector<1x8x8xf32> -> vector<1x8x8xf32>
    "tpu.trace_stop"() : () -> ()
    %76 = vector.shape_cast %75 : vector<1x8x8xf32> to vector<8x8xf32>
    %77 = arith.truncf %76 : vector<8x8xf32> to vector<8x8xbf16>
    %c0_23 = arith.constant 0 : index
    %c16 = arith.constant 16 : index
    %78 = vector.load %arg9[%c0_23, %c16] : memref<8x32xbf16, #tpu.memory_space<vmem>>, vector<8x8xbf16>
    tpu.vector_store %arg9[%c0_23, %c16], %77 {strides = array<i32>} : memref<8x32xbf16, #tpu.memory_space<vmem>>, vector<8x8xbf16>,
    %79 = vector.extract_strided_slice %21 {offsets = [0, 0, 24], sizes = [1, 8, 8], strides = [1, 1, 1]} : vector<1x8x96xbf16> to vector<1x8x8xbf16>
    %80 = vector.extract_strided_slice %21 {offsets = [0, 0, 56], sizes = [1, 8, 8], strides = [1, 1, 1]} : vector<1x8x96xbf16> to vector<1x8x8xbf16>
    %81 = vector.extract_strided_slice %21 {offsets = [0, 0, 88], sizes = [1, 8, 8], strides = [1, 1, 1]} : vector<1x8x96xbf16> to vector<1x8x8xbf16>
    "tpu.trace_start"() <{level = 10 : i32, message = "bqd,bkd->bqk"}> : () -> ()
    %cst_24 = arith.constant dense<0.000000e+00> : vector<1x8x8xf32>
    %82 = tpu.matmul %79, %80, %cst_24 {dimension_numbers = #tpu.dot_dimension_numbers<[2], [2], [1], [1], [0, 0, 0, 1, 1, 1], [0], [0]>} : vector<1x8x8xbf16>, vector<1x8x8xbf16>, vector<1x8x8xf32> -> vector<1x8x8xf32>
    "tpu.trace_stop"() : () -> ()
    %cst_25 = arith.constant dense<0xFF800000> : vector<1x8xf32>
    %83 = vector.multi_reduction <maximumf>, %82, %cst_25 [2] : vector<1x8x8xf32> to vector<1x8xf32>
    %84 = vector.shape_cast %83 : vector<1x8xf32> to vector<1x8x1xf32>
    %85 = vector.broadcast %84 : vector<1x8x1xf32> to vector<1x8x8xf32>
    %86 = arith.subf %82, %85 : vector<1x8x8xf32>
    %87 = math.exp %86 : vector<1x8x8xf32>
    %cst_26 = arith.constant dense<0.000000e+00> : vector<1x8xf32>
    %88 = vector.multi_reduction <add>, %87, %cst_26 [2] : vector<1x8x8xf32> to vector<1x8xf32>
    %89 = vector.shape_cast %88 : vector<1x8xf32> to vector<1x8x1xf32>
    %90 = tpu.reciprocal %89 {approx = true} : vector<1x8x1xf32> -> vector<1x8x1xf32>
    %91 = vector.broadcast %90 : vector<1x8x1xf32> to vector<1x8x8xf32>
    %92 = arith.mulf %87, %91 : vector<1x8x8xf32>
    %93 = arith.truncf %92 : vector<1x8x8xf32> to vector<1x8x8xbf16>
    "tpu.trace_start"() <{level = 10 : i32, message = "bqk,bkd->bqd"}> : () -> ()
    %cst_27 = arith.constant dense<0.000000e+00> : vector<1x8x8xf32>
    %94 = tpu.matmul %93, %81, %cst_27 {dimension_numbers = #tpu.dot_dimension_numbers<[2], [1], [1], [2], [0, 0, 0, 1, 1, 2], [0], [0]>} : vector<1x8x8xbf16>, vector<1x8x8xbf16>, vector<1x8x8xf32> -> vector<1x8x8xf32>
    "tpu.trace_stop"() : () -> ()
    %95 = vector.shape_cast %94 : vector<1x8x8xf32> to vector<8x8xf32>
    %96 = arith.truncf %95 : vector<8x8xf32> to vector<8x8xbf16>
    %c0_28 = arith.constant 0 : index
    %c24 = arith.constant 24 : index
    %97 = vector.load %arg9[%c0_28, %c24] : memref<8x32xbf16, #tpu.memory_space<vmem>>, vector<8x8xbf16>
    tpu.vector_store %arg9[%c0_28, %c24], %96 {strides = array<i32>} : memref<8x32xbf16, #tpu.memory_space<vmem>>, vector<8x8xbf16>,
    %c0_29 = arith.constant 0 : index
    %c0_30 = arith.constant 0 : index
    %98 = vector.load %arg9[%c0_29, %c0_30] : memref<8x32xbf16, #tpu.memory_space<vmem>>, vector<8x32xbf16>
    %c0_31 = arith.constant 0 : index
    %c0_32 = arith.constant 0 : index
    %c0_33 = arith.constant 0 : index
    %99 = vector.load %arg4[%c0_31, %c0_32, %c0_33] : memref<1x32x32xbf16, #tpu.memory_space<vmem>>, vector<1x32x32xbf16>
    %100 = vector.shape_cast %99 : vector<1x32x32xbf16> to vector<32x32xbf16>
    %cst_34 = arith.constant dense<0.000000e+00> : vector<8x32xf32>
    %101 = tpu.matmul %98, %100, %cst_34 {dimension_numbers = #tpu.dot_dimension_numbers<[1], [0], [0], [1], [0, 0, 1, 1], [], []>} : vector<8x32xbf16>, vector<32x32xbf16>, vector<8x32xf32> -> vector<8x32xf32>
    %102 = vector.broadcast %7 : vector<1x32xf32> to vector<8x32xf32>
    %103 = arith.addf %101, %102 : vector<8x32xf32>
    %104 = arith.addf %3, %103 : vector<8x32xf32>
    %cst_35 = arith.constant dense<0.000000e+00> : vector<8xf32>
    %105 = vector.multi_reduction <add>, %104, %cst_35 [1] : vector<8x32xf32> to vector<8xf32>
    %106 = vector.shape_cast %105 : vector<8xf32> to vector<8x1xf32>
    %cst_36 = arith.constant 3.200000e+01 : f32
    %107 = vector.broadcast %cst_36 : f32 to vector<8x1xf32>
    %108 = arith.divf %106, %107 : vector<8x1xf32>
    %109 = vector.broadcast %108 : vector<8x1xf32> to vector<8x32xf32>
    %110 = arith.subf %104, %109 : vector<8x32xf32>
    %111 = arith.mulf %110, %110 : vector<8x32xf32>
    %cst_37 = arith.constant dense<0.000000e+00> : vector<8xf32>
    %112 = vector.multi_reduction <add>, %111, %cst_37 [1] : vector<8x32xf32> to vector<8xf32>
    %113 = vector.shape_cast %112 : vector<8xf32> to vector<8x1xf32>
    %cst_38 = arith.constant 3.100000e+01 : f32
    %114 = vector.broadcast %cst_38 : f32 to vector<8x1xf32>
    %115 = arith.divf %113, %114 : vector<8x1xf32>
    %116 = math.sqrt %115 : vector<8x1xf32>
    %cst_39 = arith.constant 9.99999997E-7 : f32
    %117 = vector.broadcast %cst_39 : f32 to vector<8x1xf32>
    %118 = arith.addf %116, %117 : vector<8x1xf32>
    %119 = tpu.reciprocal %118 {approx = true} : vector<8x1xf32> -> vector<8x1xf32>
    %120 = vector.broadcast %108 : vector<8x1xf32> to vector<8x32xf32>
    %121 = arith.subf %104, %120 : vector<8x32xf32>
    %122 = vector.broadcast %10 : vector<1x32xf32> to vector<8x32xf32>
    %123 = arith.mulf %122, %121 : vector<8x32xf32>
    %124 = vector.broadcast %119 : vector<8x1xf32> to vector<8x32xf32>
    %125 = arith.mulf %123, %124 : vector<8x32xf32>
    %126 = vector.broadcast %11 : vector<1x32xf32> to vector<8x32xf32>
    %127 = arith.addf %125, %126 : vector<8x32xf32>
    %128 = arith.truncf %127 : vector<8x32xf32> to vector<8x32xbf16>
    %c0_40 = arith.constant 0 : index
    %c0_41 = arith.constant 0 : index
    %c0_42 = arith.constant 0 : index
    %129 = vector.load %arg5[%c0_40, %c0_41, %c0_42] : memref<1x32x2048xbf16, #tpu.memory_space<vmem>>, vector<1x32x2048xbf16>
    %130 = vector.shape_cast %129 : vector<1x32x2048xbf16> to vector<32x2048xbf16>
    %cst_43 = arith.constant dense<0.000000e+00> : vector<8x2048xf32>
    %131 = tpu.matmul %128, %130, %cst_43 {dimension_numbers = #tpu.dot_dimension_numbers<[1], [0], [0], [1], [0, 0, 1, 1], [], []>} : vector<8x32xbf16>, vector<32x2048xbf16>, vector<8x2048xf32> -> vector<8x2048xf32>
    %132 = vector.broadcast %8 : vector<1x2048xf32> to vector<8x2048xf32>
    %133 = arith.addf %131, %132 : vector<8x2048xf32>
    %cst_44 = arith.constant 0.000000e+00 : f32
    %134 = vector.broadcast %cst_44 : f32 to vector<8x2048xf32>
    %135 = arith.maximumf %133, %134 : vector<8x2048xf32>
    %136 = arith.truncf %135 : vector<8x2048xf32> to vector<8x2048xbf16>
    %c0_45 = arith.constant 0 : index
    %c0_46 = arith.constant 0 : index
    %c0_47 = arith.constant 0 : index
    %137 = vector.load %arg6[%c0_45, %c0_46, %c0_47] : memref<1x2048x32xbf16, #tpu.memory_space<vmem>>, vector<1x2048x32xbf16>
    %138 = vector.shape_cast %137 : vector<1x2048x32xbf16> to vector<2048x32xbf16>
    %cst_48 = arith.constant dense<0.000000e+00> : vector<8x32xf32>
    %139 = tpu.matmul %136, %138, %cst_48 {dimension_numbers = #tpu.dot_dimension_numbers<[1], [0], [0], [1], [0, 0, 1, 1], [], []>} : vector<8x2048xbf16>, vector<2048x32xbf16>, vector<8x32xf32> -> vector<8x32xf32>
    %140 = vector.broadcast %9 : vector<1x32xf32> to vector<8x32xf32>
    %141 = arith.addf %139, %140 : vector<8x32xf32>
    %142 = arith.addf %127, %141 : vector<8x32xf32>
    %cst_49 = arith.constant dense<0.000000e+00> : vector<8xf32>
    %143 = vector.multi_reduction <add>, %142, %cst_49 [1] : vector<8x32xf32> to vector<8xf32>
    %144 = vector.shape_cast %143 : vector<8xf32> to vector<8x1xf32>
    %cst_50 = arith.constant 3.200000e+01 : f32
    %145 = vector.broadcast %cst_50 : f32 to vector<8x1xf32>
    %146 = arith.divf %144, %145 : vector<8x1xf32>
    %147 = vector.broadcast %146 : vector<8x1xf32> to vector<8x32xf32>
    %148 = arith.subf %142, %147 : vector<8x32xf32>
    %149 = arith.mulf %148, %148 : vector<8x32xf32>
    %cst_51 = arith.constant dense<0.000000e+00> : vector<8xf32>
    %150 = vector.multi_reduction <add>, %149, %cst_51 [1] : vector<8x32xf32> to vector<8xf32>
    %151 = vector.shape_cast %150 : vector<8xf32> to vector<8x1xf32>
    %cst_52 = arith.constant 3.100000e+01 : f32
    %152 = vector.broadcast %cst_52 : f32 to vector<8x1xf32>
    %153 = arith.divf %151, %152 : vector<8x1xf32>
    %154 = math.sqrt %153 : vector<8x1xf32>
    %cst_53 = arith.constant 9.99999997E-7 : f32
    %155 = vector.broadcast %cst_53 : f32 to vector<8x1xf32>
    %156 = arith.addf %154, %155 : vector<8x1xf32>
    %157 = tpu.reciprocal %156 {approx = true} : vector<8x1xf32> -> vector<8x1xf32>
    %158 = vector.broadcast %146 : vector<8x1xf32> to vector<8x32xf32>
    %159 = arith.subf %142, %158 : vector<8x32xf32>
    %160 = vector.broadcast %12 : vector<1x32xf32> to vector<8x32xf32>
    %161 = arith.mulf %160, %159 : vector<8x32xf32>
    %162 = vector.broadcast %157 : vector<8x1xf32> to vector<8x32xf32>
    %163 = arith.mulf %161, %162 : vector<8x32xf32>
    %164 = vector.broadcast %13 : vector<1x32xf32> to vector<8x32xf32>
    %165 = arith.addf %163, %164 : vector<8x32xf32>
    %c0_54 = arith.constant 0 : index
    %c0_55 = arith.constant 0 : index
    %166 = vector.load %arg8[%c0_54, %c0_55] : memref<8x32xf32, #tpu.memory_space<vmem>>, vector<8x32xf32>
    tpu.vector_store %arg8[%c0_54, %c0_55], %165 {strides = array<i32>} : memref<8x32xf32, #tpu.memory_space<vmem>>, vector<8x32xf32>,
    return
  }
  func.func @transform_0(%arg0: i32, %arg1: i32) -> (i32, i32) {
    %c0_i32 = arith.constant 0 : i32
    %c0_i32_0 = arith.constant 0 : i32
    return %arg0, %c0_i32 : i32, i32
  }
  func.func @transform_1(%arg0: i32, %arg1: i32) -> (i32, i32, i32) {
    %c0_i32 = arith.constant 0 : i32
    %c0_i32_0 = arith.constant 0 : i32
    %c0_i32_1 = arith.constant 0 : i32
    return %arg1, %c0_i32, %c0_i32_0 : i32, i32, i32
  }
  func.func @transform_2(%arg0: i32, %arg1: i32) -> (i32, i32, i32) {
    %c0_i32 = arith.constant 0 : i32
    %c0_i32_0 = arith.constant 0 : i32
    %c0_i32_1 = arith.constant 0 : i32
    return %arg1, %c0_i32, %c0_i32_0 : i32, i32, i32
  }
  func.func @transform_3(%arg0: i32, %arg1: i32) -> (i32, i32, i32) {
    %c0_i32 = arith.constant 0 : i32
    %c0_i32_0 = arith.constant 0 : i32
    %c0_i32_1 = arith.constant 0 : i32
    return %arg1, %c0_i32, %c0_i32_0 : i32, i32, i32
  }
  func.func @transform_4(%arg0: i32, %arg1: i32) -> (i32, i32, i32) {
    %c0_i32 = arith.constant 0 : i32
    %c0_i32_0 = arith.constant 0 : i32
    %c0_i32_1 = arith.constant 0 : i32
    return %arg1, %c0_i32, %c0_i32_0 : i32, i32, i32
  }
  func.func @transform_5(%arg0: i32, %arg1: i32) -> (i32, i32, i32) {
    %c0_i32 = arith.constant 0 : i32
    %c0_i32_0 = arith.constant 0 : i32
    %c0_i32_1 = arith.constant 0 : i32
    return %arg1, %c0_i32, %c0_i32_0 : i32, i32, i32
  }
  func.func @transform_6(%arg0: i32, %arg1: i32) -> (i32, i32) {
    %c0_i32 = arith.constant 0 : i32
    %c0_i32_0 = arith.constant 0 : i32
    return %arg0, %c0_i32 : i32, i32
  }
}

</mosaic_0001>

<llo_original>
// kernel: tpu_custom_call.1
$region0: #{tpu_custom_call.1}
  #allocation0 [shape = 'u32[]', space=smem, size = 0x4, offset = 0x4, fixed_abs, tag = 'smem constant byte address 0x4 - core index']
  #allocation1 [shape = 'u32[144,128]{1,0:T(1,128)}', space=vmem, size = 0x12000, scoped, tag = 'internal scratch']
  #allocation2 [shape = 'bf16[8,32]{1,0:T(8,128)(2,1)}', space=vmem, size = 0x800, scoped, tag = 'scratch operand']
  %s0 = inlined_call_operand.vmem [shape: f32[16,32], index: 0, kind: input, shape index: {}]
  %s1 = inlined_call_operand.vmem [shape: bf16[2,32,96], index: 1, kind: input, shape index: {}]
  %s2 = inlined_call_operand.vmem [shape: bf16[2,32,32], index: 2, kind: input, shape index: {}]
  %s3 = inlined_call_operand.vmem [shape: bf16[2,32,2048], index: 3, kind: input, shape index: {}]
  %s4 = inlined_call_operand.vmem [shape: bf16[2,2048,32], index: 4, kind: input, shape index: {}]
  %s5 = inlined_call_operand.vmem [shape: f32[2,8,2048], index: 5, kind: input, shape index: {}]
  %s6 = inlined_call_operand.hbm [shape: f32[16,32], index: 6, kind: output, shape index: {}]
  %s7 = sld [smem:[#allocation0]]
  $region61: #{tpu_custom_call.1} parent=0
    _
  %s9 = ssub.s32 1, %s7
  %s10 = scalar_select 0, %s9, %s7
  $region1: #{tpu_custom_call.1} parent=0
    #allocation3 [shape = 'u8[8192]{0}', space=vmem, size = 0x2000, scoped, tag = 'output window, operand 0']
    #allocation4 [shape = 's32[2]{0}', space=sflag, size = 0x8, scoped, tag = 'scoped memory for tpu_custom_call.1']
    %11 = vsyncpa [#allocation4], 0
    %s12 = scalar_lea.sflag [#allocation4], 1
    %13 = vsyncpa %s12, 0
    loop: start=0, step=1, limit=6
    $region2: #{tpu_custom_call.1} parent=1 // loop_pre_header
      _
    $region3: #{tpu_custom_call.1} parent=1 // loop_header
      %s15 = sphi 0, %s19
      %p16 = scmp.ge.s32.totalorder %s15, 6
      %s22 = sphi 0, %s34
      %s23 = sphi 0, %s30
      %s24 = sphi 0, %s22
      %s25 = sphi 0, %s23
      %s26 = sphi 0, %s24
      %s27 = sphi 0, %s25
      %s37 = sphi 0, %s39
      %s40 = sphi 0, %s37
      %s41 = sphi 0, %s40
      %s57 = sphi 0, %s41
      %s63 = sphi 0, %s65
      %s66 = sphi 0, %s63
      %s67 = sphi 0, %s66
      %s83 = sphi 0, %s67
      %s89 = sphi 0, %s91
      %s92 = sphi 0, %s89
      %s93 = sphi 0, %s92
      %s109 = sphi 0, %s93
      %s115 = sphi 0, %s117
      %s118 = sphi 0, %s115
      %s119 = sphi 0, %s118
      %s135 = sphi 0, %s119
      %s141 = sphi 0, %s143
      %s144 = sphi 0, %s141
      %s145 = sphi 0, %s144
      %s161 = sphi 0, %s145
      %s167 = sphi 0, %s169
      %s170 = sphi 0, %s167
      %s171 = sphi 0, %s170
      %s187 = sphi 0, %s171
      %s193 = sphi 0, %s195
      %s196 = sphi 0, %s193
      %s197 = sphi 0, %s196
      %s213 = sphi 0, %s197
    $region4: #{tpu_custom_call.1} parent=1 // loop_header_branch
      %18 = sbr.rel (%p16) target = $region8
    $region5: #{tpu_custom_call.1} parent=1 // loop_body
      %s20 = ssub.s32 %s15, 1
      %s21 = ssub.s32 %s15, 2
      %s28 = sadd.s32 1, %s23
      %p29 = scmp.ge.s32.totalorder %s28, 2
      %s30 = scalar_select %p29, 0, %s28
      %s31 = sadd.s32 1, %s22
      %s32 = scalar_select %p29, %s31, %s22
      %p33 = scmp.ge.s32.totalorder %s32, 2
      %s34 = scalar_select %p33, 0, %s32
      %s35 = ssub.s32 %s22, %s34
      %p36 = scmp.eq.s32.totalorder %s35, 0
      %s38 = sadd.s32 %s37, 1
      %s39 = scalar_select %p36, %s37, %s38
      %p42 = pneg %p36
      %p43 = scmp.eq.s32.totalorder %s15, 3
      %p44 = por %p42, %p43
      %p45 = scmp.ne.s32.totalorder %s37, %s40
      %p46 = scmp.eq.s32.totalorder %s15, 0
      %p47 = por %p45, %p46
      %p48 = scmp.ne.s32.totalorder %s37, %s40
      %p49 = scmp.eq.s32.totalorder %s20, 3
      %p50 = por %p48, %p49
      %p51 = scmp.ne.s32.totalorder %s40, %s41
      %p52 = scmp.eq.s32.totalorder %s20, 0
      %p53 = por %p51, %p52
      %p54 = scmp.ne.s32.totalorder %s40, %s41
      %p55 = scmp.eq.s32.totalorder %s21, 3
      %p56 = por %p54, %p55
      %p58 = scmp.ne.s32.totalorder %s41, %s57
      %p59 = scmp.eq.s32.totalorder %s21, 0
      %p60 = por %p58, %p59
      %s61 = ssub.s32 %s23, %s30
      %p62 = scmp.eq.s32.totalorder %s61, 0
      %s64 = sadd.s32 %s63, 1
      %s65 = scalar_select %p62, %s63, %s64
      %p68 = pneg %p62
      %p69 = scmp.eq.s32.totalorder %s15, 3
      %p70 = por %p68, %p69
      %p71 = scmp.ne.s32.totalorder %s63, %s66
      %p72 = scmp.eq.s32.totalorder %s15, 0
      %p73 = por %p71, %p72
      %p74 = scmp.ne.s32.totalorder %s63, %s66
      %p75 = scmp.eq.s32.totalorder %s20, 3
      %p76 = por %p74, %p75
      %p77 = scmp.ne.s32.totalorder %s66, %s67
      %p78 = scmp.eq.s32.totalorder %s20, 0
      %p79 = por %p77, %p78
      %p80 = scmp.ne.s32.totalorder %s66, %s67
      %p81 = scmp.eq.s32.totalorder %s21, 3
      %p82 = por %p80, %p81
      %p84 = scmp.ne.s32.totalorder %s67, %s83
      %p85 = scmp.eq.s32.totalorder %s21, 0
      %p86 = por %p84, %p85
      %s87 = ssub.s32 %s23, %s30
      %p88 = scmp.eq.s32.totalorder %s87, 0
      %s90 = sadd.s32 %s89, 1
      %s91 = scalar_select %p88, %s89, %s90
      %p94 = pneg %p88
      %p95 = scmp.eq.s32.totalorder %s15, 3
      %p96 = por %p94, %p95
      %p97 = scmp.ne.s32.totalorder %s89, %s92
      %p98 = scmp.eq.s32.totalorder %s15, 0
      %p99 = por %p97, %p98
      %p100 = scmp.ne.s32.totalorder %s89, %s92
      %p101 = scmp.eq.s32.totalorder %s20, 3
      %p102 = por %p100, %p101
      %p103 = scmp.ne.s32.totalorder %s92, %s93
      %p104 = scmp.eq.s32.totalorder %s20, 0
      %p105 = por %p103, %p104
      %p106 = scmp.ne.s32.totalorder %s92, %s93
      %p107 = scmp.eq.s32.totalorder %s21, 3
      %p108 = por %p106, %p107
      %p110 = scmp.ne.s32.totalorder %s93, %s109
      %p111 = scmp.eq.s32.totalorder %s21, 0
      %p112 = por %p110, %p111
      %s113 = ssub.s32 %s23, %s30
      %p114 = scmp.eq.s32.totalorder %s113, 0
      %s116 = sadd.s32 %s115, 1
      %s117 = scalar_select %p114, %s115, %s116
      %p120 = pneg %p114
      %p121 = scmp.eq.s32.totalorder %s15, 3
      %p122 = por %p120, %p121
      %p123 = scmp.ne.s32.totalorder %s115, %s118
      %p124 = scmp.eq.s32.totalorder %s15, 0
      %p125 = por %p123, %p124
      %p126 = scmp.ne.s32.totalorder %s115, %s118
      %p127 = scmp.eq.s32.totalorder %s20, 3
      %p128 = por %p126, %p127
      %p129 = scmp.ne.s32.totalorder %s118, %s119
      %p130 = scmp.eq.s32.totalorder %s20, 0
      %p131 = por %p129, %p130
      %p132 = scmp.ne.s32.totalorder %s118, %s119
      %p133 = scmp.eq.s32.totalorder %s21, 3
      %p134 = por %p132, %p133
      %p136 = scmp.ne.s32.totalorder %s119, %s135
      %p137 = scmp.eq.s32.totalorder %s21, 0
      %p138 = por %p136, %p137
      %s139 = ssub.s32 %s23, %s30
      %p140 = scmp.eq.s32.totalorder %s139, 0
      %s142 = sadd.s32 %s141, 1
      %s143 = scalar_select %p140, %s141, %s142
      %p146 = pneg %p140
      %p147 = scmp.eq.s32.totalorder %s15, 3
      %p148 = por %p146, %p147
      %p149 = scmp.ne.s32.totalorder %s141, %s144
      %p150 = scmp.eq.s32.totalorder %s15, 0
      %p151 = por %p149, %p150
      %p152 = scmp.ne.s32.totalorder %s141, %s144
      %p153 = scmp.eq.s32.totalorder %s20, 3
      %p154 = por %p152, %p153
      %p155 = scmp.ne.s32.totalorder %s144, %s145
      %p156 = scmp.eq.s32.totalorder %s20, 0
      %p157 = por %p155, %p156
      %p158 = scmp.ne.s32.totalorder %s144, %s145
      %p159 = scmp.eq.s32.totalorder %s21, 3
      %p160 = por %p158, %p159
      %p162 = scmp.ne.s32.totalorder %s145, %s161
      %p163 = scmp.eq.s32.totalorder %s21, 0
      %p164 = por %p162, %p163
      %s165 = ssub.s32 %s23, %s30
      %p166 = scmp.eq.s32.totalorder %s165, 0
      %s168 = sadd.s32 %s167, 1
      %s169 = scalar_select %p166, %s167, %s168
      %p172 = pneg %p166
      %p173 = scmp.eq.s32.totalorder %s15, 3
      %p174 = por %p172, %p173
      %p175 = scmp.ne.s32.totalorder %s167, %s170
      %p176 = scmp.eq.s32.totalorder %s15, 0
      %p177 = por %p175, %p176
      %p178 = scmp.ne.s32.totalorder %s167, %s170
      %p179 = scmp.eq.s32.totalorder %s20, 3
      %p180 = por %p178, %p179
      %p181 = scmp.ne.s32.totalorder %s170, %s171
      %p182 = scmp.eq.s32.totalorder %s20, 0
      %p183 = por %p181, %p182
      %p184 = scmp.ne.s32.totalorder %s170, %s171
      %p185 = scmp.eq.s32.totalorder %s21, 3
      %p186 = por %p184, %p185
      %p188 = scmp.ne.s32.totalorder %s171, %s187
      %p189 = scmp.eq.s32.totalorder %s21, 0
      %p190 = por %p188, %p189
      %s191 = ssub.s32 %s22, %s34
      %p192 = scmp.eq.s32.totalorder %s191, 0
      %s194 = sadd.s32 %s193, 1
      %s195 = scalar_select %p192, %s193, %s194
      %p198 = pneg %p192
      %p199 = scmp.eq.s32.totalorder %s15, 3
      %p200 = por %p198, %p199
      %p201 = scmp.ne.s32.totalorder %s193, %s196
      %p202 = scmp.eq.s32.totalorder %s15, 0
      %p203 = por %p201, %p202
      %p204 = scmp.ne.s32.totalorder %s193, %s196
      %p205 = scmp.eq.s32.totalorder %s20, 3
      %p206 = por %p204, %p205
      %p207 = scmp.ne.s32.totalorder %s196, %s197
      %p208 = scmp.eq.s32.totalorder %s20, 0
      %p209 = por %p207, %p208
      %p210 = scmp.ne.s32.totalorder %s196, %s197
      %p211 = scmp.eq.s32.totalorder %s21, 3
      %p212 = por %p210, %p211
      %p214 = scmp.ne.s32.totalorder %s197, %s213
      %p215 = scmp.eq.s32.totalorder %s21, 0
      %p216 = por %p214, %p215
      %p217 = scmp.le.s32.totalorder 1, %s15
      %p218 = scmp.lt.s32.totalorder %s15, 5
      %p219 = pnand %p217, %p218
      %p220 = pneg %p219
      // Predicated region
      $region9: #{tpu_custom_call.1} parent=5 // pred_check
        _
      $region10: #{tpu_custom_call.1} parent=5 // pred_check_branch
        %222 = sbr.rel (%p219) target = $region12
      $region11: #{tpu_custom_call.1} parent=5 // pred_region
        %s223 = ssub.s32 %s15, 1
      $region12: #{tpu_custom_call.1} parent=5 // pred_fallthru
        _
      %p224 = scmp.lt.s32.totalorder %s15, 4
      // Predicated region
      $region13: #{tpu_custom_call.1} parent=5 // pred_check
        %p225 = pneg %p224
      $region14: #{tpu_custom_call.1} parent=5 // pred_check_branch
        %227 = sbr.rel (%p225) target = $region16
      $region15: #{tpu_custom_call.1} parent=5 // pred_region
        // Predicated region
        $region17: #{tpu_custom_call.1} parent=15 // pred_check
          %p228 = pneg %p47
        $region18: #{tpu_custom_call.1} parent=15 // pred_check_branch
          %230 = sbr.rel (%p228) target = $region20
        $region19: #{tpu_custom_call.1} parent=15 // pred_region
          %p231 = scmp.lt.s32.totalorder %s22, 1
          %s232 = scalar_select %p231, %s22, 1
          %s233 = smul.addr %s232, 8
          %s234 = scalar_lea.vmem %s0, %s233
        $region20: #{tpu_custom_call.1} parent=15 // pred_fallthru
          _
        // Predicated region
        $region21: #{tpu_custom_call.1} parent=15 // pred_check
          %p235 = pneg %p73
        $region22: #{tpu_custom_call.1} parent=15 // pred_check_branch
          %237 = sbr.rel (%p235) target = $region24
        $region23: #{tpu_custom_call.1} parent=15 // pred_region
          %p238 = scmp.lt.s32.totalorder %s23, 1
          %s239 = scalar_select %p238, %s23, 1
          %s240 = smul.addr %s239, 4
          %s241 = smul.addr %s240, 4
          %s242 = scalar_lea.vmem %s1, %s241
        $region24: #{tpu_custom_call.1} parent=15 // pred_fallthru
          _
        // Predicated region
        $region25: #{tpu_custom_call.1} parent=15 // pred_check
          %p243 = pneg %p99
        $region26: #{tpu_custom_call.1} parent=15 // pred_check_branch
          %245 = sbr.rel (%p243) target = $region28
        $region27: #{tpu_custom_call.1} parent=15 // pred_region
          %p246 = scmp.lt.s32.totalorder %s23, 1
          %s247 = scalar_select %p246, %s23, 1
          %s248 = smul.addr %s247, 4
          %s249 = smul.addr %s248, 4
          %s250 = scalar_lea.vmem %s2, %s249
        $region28: #{tpu_custom_call.1} parent=15 // pred_fallthru
          _
        // Predicated region
        $region29: #{tpu_custom_call.1} parent=15 // pred_check
          %p251 = pneg %p125
        $region30: #{tpu_custom_call.1} parent=15 // pred_check_branch
          %253 = sbr.rel (%p251) target = $region32
        $region31: #{tpu_custom_call.1} parent=15 // pred_region
          %p254 = scmp.lt.s32.totalorder %s23, 1
          %s255 = scalar_select %p254, %s23, 1
          %s256 = smul.addr %s255, 64
          %s257 = smul.addr %s256, 4
          %s258 = scalar_lea.vmem %s3, %s257
        $region32: #{tpu_custom_call.1} parent=15 // pred_fallthru
          _
        // Predicated region
        $region33: #{tpu_custom_call.1} parent=15 // pred_check
          %p259 = pneg %p151
        $region34: #{tpu_custom_call.1} parent=15 // pred_check_branch
          %261 = sbr.rel (%p259) target = $region36
        $region35: #{tpu_custom_call.1} parent=15 // pred_region
          %p262 = scmp.lt.s32.totalorder %s23, 1
          %s263 = scalar_select %p262, %s23, 1
          %s264 = smul.addr %s263, 256
          %s265 = smul.addr %s264, 4
          %s266 = scalar_lea.vmem %s4, %s265
        $region36: #{tpu_custom_call.1} parent=15 // pred_fallthru
          _
        // Predicated region
        $region37: #{tpu_custom_call.1} parent=15 // pred_check
          %p267 = pneg %p177
        $region38: #{tpu_custom_call.1} parent=15 // pred_check_branch
          %269 = sbr.rel (%p267) target = $region40
        $region39: #{tpu_custom_call.1} parent=15 // pred_region
          %p270 = scmp.lt.s32.totalorder %s23, 1
          %s271 = scalar_select %p270, %s23, 1
          %s272 = smul.addr %s271, 16
          %s273 = smul.addr %s272, 8
          %s274 = scalar_lea.vmem %s5, %s273
        $region40: #{tpu_custom_call.1} parent=15 // pred_fallthru
          _
      $region16: #{tpu_custom_call.1} parent=5 // pred_fallthru
        _
      %p275 = scmp.le.s32.totalorder 1, %s15
      %p276 = scmp.lt.s32.totalorder %s15, 5
      %p277 = pnand %p275, %p276
      %p278 = pneg %p277
      // Predicated region
      $region41: #{tpu_custom_call.1} parent=5 // pred_check
        _
      $region42: #{tpu_custom_call.1} parent=5 // pred_check_branch
        %280 = sbr.rel (%p277) target = $region44
      $region43: #{tpu_custom_call.1} parent=5 // pred_region
        %s281 = ssub.s32 %s15, 1
        %p282 = scmp.lt.s32.totalorder %s24, 1
        %s283 = scalar_select %p282, %s24, 1
        %s284 = smul.addr %s283, 8
        %s285 = scalar_lea.vmem %s0, %s284
        %p286 = pneg %p53
        %p287 = pneg %p50
        %p288 = scmp.lt.s32.totalorder %s25, 1
        %s289 = scalar_select %p288, %s25, 1
        %s290 = smul.addr %s289, 4
        %s291 = smul.addr %s290, 4
        %s292 = scalar_lea.vmem %s1, %s291
        %p293 = pneg %p79
        %p294 = pneg %p76
        %p295 = scmp.lt.s32.totalorder %s25, 1
        %s296 = scalar_select %p295, %s25, 1
        %s297 = smul.addr %s296, 4
        %s298 = smul.addr %s297, 4
        %s299 = scalar_lea.vmem %s2, %s298
        %p300 = pneg %p105
        %p301 = pneg %p102
        %p302 = scmp.lt.s32.totalorder %s25, 1
        %s303 = scalar_select %p302, %s25, 1
        %s304 = smul.addr %s303, 64
        %s305 = smul.addr %s304, 4
        %s306 = scalar_lea.vmem %s3, %s305
        %p307 = pneg %p131
        %p308 = pneg %p128
        %p309 = scmp.lt.s32.totalorder %s25, 1
        %s310 = scalar_select %p309, %s25, 1
        %s311 = smul.addr %s310, 256
        %s312 = smul.addr %s311, 4
        %s313 = scalar_lea.vmem %s4, %s312
        %p314 = pneg %p157
        %p315 = pneg %p154
        %p316 = scmp.lt.s32.totalorder %s25, 1
        %s317 = scalar_select %p316, %s25, 1
        %s318 = smul.addr %s317, 16
        %s319 = smul.addr %s318, 8
        %s320 = scalar_lea.vmem %s5, %s319
        %p321 = pneg %p183
        %p322 = pneg %p180
        %p323 = pneg %p209
        %p324 = pneg %p206
        %s325 = sand.u32 %s196, 1
        %s326 = scalar_lea.sflag [#allocation4], %s325
        %s327 = sand.u32 %s196, 1
        %s328 = smul.addr %s327, 8
        %s329 = scalar_lea.vmem [#allocation3], %s328
        %p330 = scmp.lt.s32.totalorder %s24, 1
        %s331 = scalar_select %p330, %s24, 1
        %s332 = smul.addr %s331, 8
        %s333 = scalar_lea.vmem %s0, %s332
        %p334 = scmp.lt.s32.totalorder %s25, 1
        %s335 = scalar_select %p334, %s25, 1
        %s336 = smul.addr %s335, 4
        %s337 = smul.addr %s336, 4
        %s338 = scalar_lea.vmem %s1, %s337
        %p339 = scmp.lt.s32.totalorder %s25, 1
        %s340 = scalar_select %p339, %s25, 1
        %s341 = smul.addr %s340, 4
        %s342 = smul.addr %s341, 4
        %s343 = scalar_lea.vmem %s2, %s342
        %p344 = scmp.lt.s32.totalorder %s25, 1
        %s345 = scalar_select %p344, %s25, 1
        %s346 = smul.addr %s345, 64
        %s347 = smul.addr %s346, 4
        %s348 = scalar_lea.vmem %s3, %s347
        %p349 = scmp.lt.s32.totalorder %s25, 1
        %s350 = scalar_select %p349, %s25, 1
        %s351 = smul.addr %s350, 256
        %s352 = smul.addr %s351, 4
        %s353 = scalar_lea.vmem %s4, %s352
        %p354 = scmp.lt.s32.totalorder %s25, 1
        %s355 = scalar_select %p354, %s25, 1
        %s356 = smul.addr %s355, 16
        %s357 = smul.addr %s356, 8
        %s358 = scalar_lea.vmem %s5, %s357
        %p360 = scmp.eq.s32.totalorder %s25, 0
        // Predicated region
        $region45: #{tpu_custom_call.1} parent=43 // pred_check
          %p361 = pneg %p360
        $region46: #{tpu_custom_call.1} parent=43 // pred_check_branch
          %363 = sbr.rel (%p361) target = $region48
        $region47: #{tpu_custom_call.1} parent=43 // pred_region
          %v364 = vld [vmem:[%s333] sm:$0xff]
          %vm365 = vcmask 261120
          %366 = vst.msk [vmem:[%s329] sm:$0xff] %vm365, %v364
        $region48: #{tpu_custom_call.1} parent=43 // pred_fallthru
          _
        %v367 = vld [vmem:[%s329] sm:$0xff]
        %v368 = vld [vmem:[%s358] sm:$0xff]
        %v369 = vld [vmem:[%s358 + $0x8] sm:$0xff]
        %v370 = vld [vmem:[%s358 + $0x10] sm:$0xff]
        %v371 = vld [vmem:[%s358 + $0x18] sm:$0xff]
        %v372 = vld [vmem:[%s358 + $0x20] sm:$0xff]
        %v373 = vld [vmem:[%s358 + $0x28] sm:$0xff]
        %v374 = vld [vmem:[%s358 + $0x30] sm:$0xff]
        %v375 = vld [vmem:[%s358 + $0x38] sm:$0xff]
        %v376 = vld [vmem:[%s358 + $0x40] sm:$0xff]
        %v377 = vld [vmem:[%s358 + $0x48] sm:$0xff]
        %v378 = vld [vmem:[%s358 + $0x50] sm:$0xff]
        %v379 = vld [vmem:[%s358 + $0x58] sm:$0xff]
        %v380 = vld [vmem:[%s358 + $0x60] sm:$0xff]
        %v381 = vld [vmem:[%s358 + $0x68] sm:$0xff]
        %v382 = vld [vmem:[%s358 + $0x70] sm:$0xff]
        %v383 = vld [vmem:[%s358 + $0x78] sm:$0xff]
        %v384 = vpack.c.bf16 %v367, %v367
        %v385 = vld [vmem:[%s338] sm:$0xf]
        %v386 = vld [vmem:[%s338 + $0x4] sm:$0xf]
        %v387 = vld [vmem:[%s338 + $0x8] sm:$0xf]
        %v388 = vld [vmem:[%s338 + $0xc] sm:$0xf]
        %v389 = vlaneseq
        %v390 = vshrl.u32 %v389, 7
        %v391 = vsub.s32 0, %v390
        %v392 = vrot.slane %v368, %v391
        %v397 = vunpack.c.l.b16 %v385
        %v398 = vunpack.c.l.b16 %v386
        %v399 = vunpack.c.l.b16 %v387
        %v400 = vunpack.c.l.b16 %v388
        %v401 = vpack.c.b16 %v398, %v397
        %v402 = vpack.c.b16 %v400, %v399
        %vm405 = vcmask 261120
        %v407 = vsel %vm405, %v384, 0
        %409 = vmatprep.subr.bf16.mxu0 0
        %410 = vmatpush1.bf16.msra.mxu0 %v401
        %411 = vmatprep.subr.bf16.mxu0 0
        %412 = vmatpush1.bf16.msra.mxu0 %v402
        %413 = vmatprep.subr.bf16.mxu0 0
        %414 = vmatpush1.bf16.msra.mxu0 0
        %415 = vmatprep.subr.bf16.mxu0 0
        %416 = vmatpush1.bf16.msra.mxu0 0
        %417 = vmatprep.subr.bf16.mxu0 0
        %418 = vmatpush1.bf16.msra.mxu0 0
        %419 = vmatprep.subr.bf16.mxu0 0
        %420 = vmatpush1.bf16.msra.mxu0 0
        %421 = vmatprep.subr.bf16.mxu0 0
        %422 = vmatpush1.bf16.msra.mxu0 0
        %423 = vmatprep.subr.bf16.mxu0 0
        %424 = vmatpush1.bf16.msra.mxu0 0
        %425 = vmatprep.subr.bf16.mxu0 0
        %426 = vmatpush1.bf16.msra.mxu0 0
        %427 = vmatprep.subr.bf16.mxu0 0
        %428 = vmatpush1.bf16.msra.mxu0 0
        %429 = vmatprep.subr.bf16.mxu0 0
        %430 = vmatpush1.bf16.msra.mxu0 0
        %431 = vmatprep.subr.bf16.mxu0 0
        %432 = vmatpush1.bf16.msra.mxu0 0
        %433 = vmatprep.subr.bf16.mxu0 0
        %434 = vmatpush1.bf16.msra.mxu0 0
        %435 = vmatprep.subr.bf16.mxu0 0
        %436 = vmatpush1.bf16.msra.mxu0 0
        %437 = vmatprep.subr.bf16.mxu0 0
        %438 = vmatpush1.bf16.msra.mxu0 0
        %439 = vmatprep.subr.bf16.mxu0 0
        %440 = vmatpush1.bf16.msra.mxu0 0
        %441 = vmatprep.mubr.bf16.mxu0 0
        %442 = vmatmul.mubr.bf16.gmra.mrb[0].mxu0 %v407
        %v443 = vpop.f32.mrb[0].mxu0
        %v444 = vadd.f32 %v392, %v443
        %v445 = vpop.f32.mrb[0].mxu0
        %v446 = vpop.f32.mrb[0].mxu0
        %v447 = vpop.f32.mrb[0].mxu0
        %448 = vdwg.mxu0
        %v449 = vpack.c.bf16 %v444, %v444
        %451 = vrot.lane.b32.xlu0 %v449, 96
        %v452 = vpop.permute.xlu0 %451
        %vm453 = vcmask 64512
        %v455 = vsel %vm453, %v449, 0
        %v458 = vsel %vm453, %v452, 0
        %460 = vmatprep.subr.bf16.mxu0 0
        %461 = vmatpush1.bf16.xpose.msra.mxu0 %v458
        %462 = vmatprep.subr.bf16.mxu0 0
        %463 = vmatpush1.bf16.xpose.msra.mxu0 0
        %464 = vmatprep.subr.bf16.mxu0 0
        %465 = vmatpush1.bf16.xpose.msra.mxu0 0
        %466 = vmatprep.subr.bf16.mxu0 0
        %467 = vmatpush1.bf16.xpose.msra.mxu0 0
        %468 = vmatprep.subr.bf16.mxu0 0
        %469 = vmatpush1.bf16.xpose.msra.mxu0 0
        %470 = vmatprep.subr.bf16.mxu0 0
        %471 = vmatpush1.bf16.xpose.msra.mxu0 0
        %472 = vmatprep.subr.bf16.mxu0 0
        %473 = vmatpush1.bf16.xpose.msra.mxu0 0
        %474 = vmatprep.subr.bf16.mxu0 0
        %475 = vmatpush1.bf16.xpose.msra.mxu0 0
        %476 = vmatprep.subr.bf16.mxu0 0
        %477 = vmatpush1.bf16.xpose.msra.mxu0 0
        %478 = vmatprep.subr.bf16.mxu0 0
        %479 = vmatpush1.bf16.xpose.msra.mxu0 0
        %480 = vmatprep.subr.bf16.mxu0 0
        %481 = vmatpush1.bf16.xpose.msra.mxu0 0
        %482 = vmatprep.subr.bf16.mxu0 0
        %483 = vmatpush1.bf16.xpose.msra.mxu0 0
        %484 = vmatprep.subr.bf16.mxu0 0
        %485 = vmatpush1.bf16.xpose.msra.mxu0 0
        %486 = vmatprep.subr.bf16.mxu0 0
        %487 = vmatpush1.bf16.xpose.msra.mxu0 0
        %488 = vmatprep.subr.bf16.mxu0 0
        %489 = vmatpush1.bf16.xpose.msra.mxu0 0
        %490 = vmatprep.subr.bf16.mxu0 0
        %491 = vmatpush1.bf16.xpose.msra.mxu0 0
        %492 = vmatprep.mubr.bf16.mxu0 0
        %493 = vmatmul.mubr.bf16.gmra.mrb[0].mxu0 %v455
        %v494 = vpop.f32.mrb[0].mxu0
        %v495 = vadd.f32 0.0, %v494
        %v496 = vpop.f32.mrb[0].mxu0
        %v497 = vpop.f32.mrb[0].mxu0
        %v498 = vpop.f32.mrb[0].mxu0
        %499 = vdwg.mxu0
        %v500 = vsel %vm453, %v495, -inf
        %501 = vmax.xlane.f32.xlu0 %v500
        %v502 = vpop.xlane.xlu0 %501
        %v503 = vsub.f32 %v495, %v502
        %v504 = vmul.f32 %v503, 1.442695
        %v505 = vpow.pop %v504
        %v506 = vsel %vm453, %v505, 0.0
        %507 = vadd.xlane.f32.xlu0 %v506
        %v508 = vpop.xlane.xlu0 %507
        %v509 = vrcp.pop %v508
        %v510 = vmul.f32 %v505, %v509
        %v511 = vpack.c.bf16 %v510, %v510
        %512 = vrot.lane.b32.xlu0 %v449, 64
        %v513 = vpop.permute.xlu0 %512
        %v515 = vsel %vm453, %v511, 0
        %vm517 = vcmask 1043456
        %v519 = vsel %vm517, %v513, 0
        %521 = vmatprep.subr.bf16.mxu0 0
        %522 = vmatpush1.bf16.msra.mxu0 %v519
        %523 = vmatprep.subr.bf16.mxu0 0
        %524 = vmatpush1.bf16.msra.mxu0 0
        %525 = vmatprep.subr.bf16.mxu0 0
        %526 = vmatpush1.bf16.msra.mxu0 0
        %527 = vmatprep.subr.bf16.mxu0 0
        %528 = vmatpush1.bf16.msra.mxu0 0
        %529 = vmatprep.subr.bf16.mxu0 0
        %530 = vmatpush1.bf16.msra.mxu0 0
        %531 = vmatprep.subr.bf16.mxu0 0
        %532 = vmatpush1.bf16.msra.mxu0 0
        %533 = vmatprep.subr.bf16.mxu0 0
        %534 = vmatpush1.bf16.msra.mxu0 0
        %535 = vmatprep.subr.bf16.mxu0 0
        %536 = vmatpush1.bf16.msra.mxu0 0
        %537 = vmatprep.subr.bf16.mxu0 0
        %538 = vmatpush1.bf16.msra.mxu0 0
        %539 = vmatprep.subr.bf16.mxu0 0
        %540 = vmatpush1.bf16.msra.mxu0 0
        %541 = vmatprep.subr.bf16.mxu0 0
        %542 = vmatpush1.bf16.msra.mxu0 0
        %543 = vmatprep.subr.bf16.mxu0 0
        %544 = vmatpush1.bf16.msra.mxu0 0
        %545 = vmatprep.subr.bf16.mxu0 0
        %546 = vmatpush1.bf16.msra.mxu0 0
        %547 = vmatprep.subr.bf16.mxu0 0
        %548 = vmatpush1.bf16.msra.mxu0 0
        %549 = vmatprep.subr.bf16.mxu0 0
        %550 = vmatpush1.bf16.msra.mxu0 0
        %551 = vmatprep.subr.bf16.mxu0 0
        %552 = vmatpush1.bf16.msra.mxu0 0
        %553 = vmatprep.mubr.bf16.mxu0 0
        %554 = vmatmul.mubr.bf16.gmra.mrb[0].mxu0 %v515
        %v555 = vpop.f32.mrb[0].mxu0
        %v556 = vadd.f32 0.0, %v555
        %v557 = vpop.f32.mrb[0].mxu0
        %v558 = vpop.f32.mrb[0].mxu0
        %v559 = vpop.f32.mrb[0].mxu0
        %560 = vdwg.mxu0
        %v561 = vpack.c.bf16 %v556, %v556
        %vm562 = vcmask 60416
        %563 = vst.msk [vmem:[#allocation2] sm:$0xf] %vm562, %v561
        %564 = vrot.lane.b32.xlu0 %v449, 120
        %v565 = vpop.permute.xlu0 %564
        %566 = vrot.lane.b32.xlu0 %v449, 88
        %v567 = vpop.permute.xlu0 %566
        %v569 = vsel %vm453, %v565, 0
        %v572 = vsel %vm453, %v567, 0
        %574 = vmatprep.subr.bf16.mxu0 0
        %575 = vmatpush1.bf16.xpose.msra.mxu0 %v572
        %576 = vmatprep.subr.bf16.mxu0 0
        %577 = vmatpush1.bf16.xpose.msra.mxu0 0
        %578 = vmatprep.subr.bf16.mxu0 0
        %579 = vmatpush1.bf16.xpose.msra.mxu0 0
        %580 = vmatprep.subr.bf16.mxu0 0
        %581 = vmatpush1.bf16.xpose.msra.mxu0 0
        %582 = vmatprep.subr.bf16.mxu0 0
        %583 = vmatpush1.bf16.xpose.msra.mxu0 0
        %584 = vmatprep.subr.bf16.mxu0 0
        %585 = vmatpush1.bf16.xpose.msra.mxu0 0
        %586 = vmatprep.subr.bf16.mxu0 0
        %587 = vmatpush1.bf16.xpose.msra.mxu0 0
        %588 = vmatprep.subr.bf16.mxu0 0
        %589 = vmatpush1.bf16.xpose.msra.mxu0 0
        %590 = vmatprep.subr.bf16.mxu0 0
        %591 = vmatpush1.bf16.xpose.msra.mxu0 0
        %592 = vmatprep.subr.bf16.mxu0 0
        %593 = vmatpush1.bf16.xpose.msra.mxu0 0
        %594 = vmatprep.subr.bf16.mxu0 0
        %595 = vmatpush1.bf16.xpose.msra.mxu0 0
        %596 = vmatprep.subr.bf16.mxu0 0
        %597 = vmatpush1.bf16.xpose.msra.mxu0 0
        %598 = vmatprep.subr.bf16.mxu0 0
        %599 = vmatpush1.bf16.xpose.msra.mxu0 0
        %600 = vmatprep.subr.bf16.mxu0 0
        %601 = vmatpush1.bf16.xpose.msra.mxu0 0
        %602 = vmatprep.subr.bf16.mxu0 0
        %603 = vmatpush1.bf16.xpose.msra.mxu0 0
        %604 = vmatprep.subr.bf16.mxu0 0
        %605 = vmatpush1.bf16.xpose.msra.mxu0 0
        %606 = vmatprep.mubr.bf16.mxu0 0
        %607 = vmatmul.mubr.bf16.gmra.mrb[0].mxu0 %v569
        %v608 = vpop.f32.mrb[0].mxu0
        %v609 = vadd.f32 0.0, %v608
        %v610 = vpop.f32.mrb[0].mxu0
        %v611 = vpop.f32.mrb[0].mxu0
        %v612 = vpop.f32.mrb[0].mxu0
        %613 = vdwg.mxu0
        %v614 = vsel %vm453, %v609, -inf
        %615 = vmax.xlane.f32.xlu0 %v614
        %v616 = vpop.xlane.xlu0 %615
        %v617 = vsub.f32 %v609, %v616
        %v618 = vmul.f32 %v617, 1.442695
        %v619 = vpow.pop %v618
        %v620 = vsel %vm453, %v619, 0.0
        %621 = vadd.xlane.f32.xlu0 %v620
        %v622 = vpop.xlane.xlu0 %621
        %v623 = vrcp.pop %v622
        %v624 = vmul.f32 %v619, %v623
        %v625 = vpack.c.bf16 %v624, %v624
        %626 = vrot.lane.b32.xlu0 %v449, 56
        %v627 = vpop.permute.xlu0 %626
        %v629 = vsel %vm453, %v625, 0
        %v632 = vsel %vm517, %v627, 0
        %634 = vmatprep.subr.bf16.mxu0 0
        %635 = vmatpush1.bf16.msra.mxu0 %v632
        %636 = vmatprep.subr.bf16.mxu0 0
        %637 = vmatpush1.bf16.msra.mxu0 0
        %638 = vmatprep.subr.bf16.mxu0 0
        %639 = vmatpush1.bf16.msra.mxu0 0
        %640 = vmatprep.subr.bf16.mxu0 0
        %641 = vmatpush1.bf16.msra.mxu0 0
        %642 = vmatprep.subr.bf16.mxu0 0
        %643 = vmatpush1.bf16.msra.mxu0 0
        %644 = vmatprep.subr.bf16.mxu0 0
        %645 = vmatpush1.bf16.msra.mxu0 0
        %646 = vmatprep.subr.bf16.mxu0 0
        %647 = vmatpush1.bf16.msra.mxu0 0
        %648 = vmatprep.subr.bf16.mxu0 0
        %649 = vmatpush1.bf16.msra.mxu0 0
        %650 = vmatprep.subr.bf16.mxu0 0
        %651 = vmatpush1.bf16.msra.mxu0 0
        %652 = vmatprep.subr.bf16.mxu0 0
        %653 = vmatpush1.bf16.msra.mxu0 0
        %654 = vmatprep.subr.bf16.mxu0 0
        %655 = vmatpush1.bf16.msra.mxu0 0
        %656 = vmatprep.subr.bf16.mxu0 0
        %657 = vmatpush1.bf16.msra.mxu0 0
        %658 = vmatprep.subr.bf16.mxu0 0
        %659 = vmatpush1.bf16.msra.mxu0 0
        %660 = vmatprep.subr.bf16.mxu0 0
        %661 = vmatpush1.bf16.msra.mxu0 0
        %662 = vmatprep.subr.bf16.mxu0 0
        %663 = vmatpush1.bf16.msra.mxu0 0
        %664 = vmatprep.subr.bf16.mxu0 0
        %665 = vmatpush1.bf16.msra.mxu0 0
        %666 = vmatprep.mubr.bf16.mxu0 0
        %667 = vmatmul.mubr.bf16.gmra.mrb[0].mxu0 %v629
        %v668 = vpop.f32.mrb[0].mxu0
        %v669 = vadd.f32 0.0, %v668
        %v670 = vpop.f32.mrb[0].mxu0
        %v671 = vpop.f32.mrb[0].mxu0
        %v672 = vpop.f32.mrb[0].mxu0
        %673 = vdwg.mxu0
        %v674 = vpack.c.bf16 %v669, %v669
        %v676 = vunpack.c.l.b16 %v674
        %v677 = vpack.c.b16 %v676, %v676
        %678 = vrot.lane.b32.xlu0 %v677, 8
        %v679 = vpop.permute.xlu0 %678
        %vm681 = vcmask 126016
        %682 = vst.msk [vmem:[#allocation2] sm:$0xf] %vm681, %v679
        %683 = vrot.lane.b32.xlu0 %v449, 112
        %v684 = vpop.permute.xlu0 %683
        %685 = vrot.lane.b32.xlu0 %v449, 80
        %v686 = vpop.permute.xlu0 %685
        %v688 = vsel %vm453, %v684, 0
        %v691 = vsel %vm453, %v686, 0
        %693 = vmatprep.subr.bf16.mxu0 0
        %694 = vmatpush1.bf16.xpose.msra.mxu0 %v691
        %695 = vmatprep.subr.bf16.mxu0 0
        %696 = vmatpush1.bf16.xpose.msra.mxu0 0
        %697 = vmatprep.subr.bf16.mxu0 0
        %698 = vmatpush1.bf16.xpose.msra.mxu0 0
        %699 = vmatprep.subr.bf16.mxu0 0
        %700 = vmatpush1.bf16.xpose.msra.mxu0 0
        %701 = vmatprep.subr.bf16.mxu0 0
        %702 = vmatpush1.bf16.xpose.msra.mxu0 0
        %703 = vmatprep.subr.bf16.mxu0 0
        %704 = vmatpush1.bf16.xpose.msra.mxu0 0
        %705 = vmatprep.subr.bf16.mxu0 0
        %706 = vmatpush1.bf16.xpose.msra.mxu0 0
        %707 = vmatprep.subr.bf16.mxu0 0
        %708 = vmatpush1.bf16.xpose.msra.mxu0 0
        %709 = vmatprep.subr.bf16.mxu0 0
        %710 = vmatpush1.bf16.xpose.msra.mxu0 0
        %711 = vmatprep.subr.bf16.mxu0 0
        %712 = vmatpush1.bf16.xpose.msra.mxu0 0
        %713 = vmatprep.subr.bf16.mxu0 0
        %714 = vmatpush1.bf16.xpose.msra.mxu0 0
        %715 = vmatprep.subr.bf16.mxu0 0
        %716 = vmatpush1.bf16.xpose.msra.mxu0 0
        %717 = vmatprep.subr.bf16.mxu0 0
        %718 = vmatpush1.bf16.xpose.msra.mxu0 0
        %719 = vmatprep.subr.bf16.mxu0 0
        %720 = vmatpush1.bf16.xpose.msra.mxu0 0
        %721 = vmatprep.subr.bf16.mxu0 0
        %722 = vmatpush1.bf16.xpose.msra.mxu0 0
        %723 = vmatprep.subr.bf16.mxu0 0
        %724 = vmatpush1.bf16.xpose.msra.mxu0 0
        %725 = vmatprep.mubr.bf16.mxu0 0
        %726 = vmatmul.mubr.bf16.gmra.mrb[0].mxu0 %v688
        %v727 = vpop.f32.mrb[0].mxu0
        %v728 = vadd.f32 0.0, %v727
        %v729 = vpop.f32.mrb[0].mxu0
        %v730 = vpop.f32.mrb[0].mxu0
        %v731 = vpop.f32.mrb[0].mxu0
        %732 = vdwg.mxu0
        %v733 = vsel %vm453, %v728, -inf
        %734 = vmax.xlane.f32.xlu0 %v733
        %v735 = vpop.xlane.xlu0 %734
        %v736 = vsub.f32 %v728, %v735
        %v737 = vmul.f32 %v736, 1.442695
        %v738 = vpow.pop %v737
        %v739 = vsel %vm453, %v738, 0.0
        %740 = vadd.xlane.f32.xlu0 %v739
        %v741 = vpop.xlane.xlu0 %740
        %v742 = vrcp.pop %v741
        %v743 = vmul.f32 %v738, %v742
        %v744 = vpack.c.bf16 %v743, %v743
        %745 = vrot.lane.b32.xlu0 %v449, 48
        %v746 = vpop.permute.xlu0 %745
        %v748 = vsel %vm453, %v744, 0
        %v751 = vsel %vm517, %v746, 0
        %753 = vmatprep.subr.bf16.mxu0 0
        %754 = vmatpush1.bf16.msra.mxu0 %v751
        %755 = vmatprep.subr.bf16.mxu0 0
        %756 = vmatpush1.bf16.msra.mxu0 0
        %757 = vmatprep.subr.bf16.mxu0 0
        %758 = vmatpush1.bf16.msra.mxu0 0
        %759 = vmatprep.subr.bf16.mxu0 0
        %760 = vmatpush1.bf16.msra.mxu0 0
        %761 = vmatprep.subr.bf16.mxu0 0
        %762 = vmatpush1.bf16.msra.mxu0 0
        %763 = vmatprep.subr.bf16.mxu0 0
        %764 = vmatpush1.bf16.msra.mxu0 0
        %765 = vmatprep.subr.bf16.mxu0 0
        %766 = vmatpush1.bf16.msra.mxu0 0
        %767 = vmatprep.subr.bf16.mxu0 0
        %768 = vmatpush1.bf16.msra.mxu0 0
        %769 = vmatprep.subr.bf16.mxu0 0
        %770 = vmatpush1.bf16.msra.mxu0 0
        %771 = vmatprep.subr.bf16.mxu0 0
        %772 = vmatpush1.bf16.msra.mxu0 0
        %773 = vmatprep.subr.bf16.mxu0 0
        %774 = vmatpush1.bf16.msra.mxu0 0
        %775 = vmatprep.subr.bf16.mxu0 0
        %776 = vmatpush1.bf16.msra.mxu0 0
        %777 = vmatprep.subr.bf16.mxu0 0
        %778 = vmatpush1.bf16.msra.mxu0 0
        %779 = vmatprep.subr.bf16.mxu0 0
        %780 = vmatpush1.bf16.msra.mxu0 0
        %781 = vmatprep.subr.bf16.mxu0 0
        %782 = vmatpush1.bf16.msra.mxu0 0
        %783 = vmatprep.subr.bf16.mxu0 0
        %784 = vmatpush1.bf16.msra.mxu0 0
        %785 = vmatprep.mubr.bf16.mxu0 0
        %786 = vmatmul.mubr.bf16.gmra.mrb[0].mxu0 %v748
        %v787 = vpop.f32.mrb[0].mxu0
        %v788 = vadd.f32 0.0, %v787
        %v789 = vpop.f32.mrb[0].mxu0
        %v790 = vpop.f32.mrb[0].mxu0
        %v791 = vpop.f32.mrb[0].mxu0
        %792 = vdwg.mxu0
        %v793 = vpack.c.bf16 %v788, %v788
        %v795 = vunpack.c.l.b16 %v793
        %v796 = vpack.c.b16 %v795, %v795
        %797 = vrot.lane.b32.xlu0 %v796, 16
        %v798 = vpop.permute.xlu0 %797
        %vm800 = vcmask 191616
        %801 = vst.msk [vmem:[#allocation2] sm:$0xf] %vm800, %v798
        %802 = vrot.lane.b32.xlu0 %v449, 104
        %v803 = vpop.permute.xlu0 %802
        %804 = vrot.lane.b32.xlu0 %v449, 72
        %v805 = vpop.permute.xlu0 %804
        %v807 = vsel %vm453, %v803, 0
        %v810 = vsel %vm453, %v805, 0
        %812 = vmatprep.subr.bf16.mxu0 0
        %813 = vmatpush1.bf16.xpose.msra.mxu0 %v810
        %814 = vmatprep.subr.bf16.mxu0 0
        %815 = vmatpush1.bf16.xpose.msra.mxu0 0
        %816 = vmatprep.subr.bf16.mxu0 0
        %817 = vmatpush1.bf16.xpose.msra.mxu0 0
        %818 = vmatprep.subr.bf16.mxu0 0
        %819 = vmatpush1.bf16.xpose.msra.mxu0 0
        %820 = vmatprep.subr.bf16.mxu0 0
        %821 = vmatpush1.bf16.xpose.msra.mxu0 0
        %822 = vmatprep.subr.bf16.mxu0 0
        %823 = vmatpush1.bf16.xpose.msra.mxu0 0
        %824 = vmatprep.subr.bf16.mxu0 0
        %825 = vmatpush1.bf16.xpose.msra.mxu0 0
        %826 = vmatprep.subr.bf16.mxu0 0
        %827 = vmatpush1.bf16.xpose.msra.mxu0 0
        %828 = vmatprep.subr.bf16.mxu0 0
        %829 = vmatpush1.bf16.xpose.msra.mxu0 0
        %830 = vmatprep.subr.bf16.mxu0 0
        %831 = vmatpush1.bf16.xpose.msra.mxu0 0
        %832 = vmatprep.subr.bf16.mxu0 0
        %833 = vmatpush1.bf16.xpose.msra.mxu0 0
        %834 = vmatprep.subr.bf16.mxu0 0
        %835 = vmatpush1.bf16.xpose.msra.mxu0 0
        %836 = vmatprep.subr.bf16.mxu0 0
        %837 = vmatpush1.bf16.xpose.msra.mxu0 0
        %838 = vmatprep.subr.bf16.mxu0 0
        %839 = vmatpush1.bf16.xpose.msra.mxu0 0
        %840 = vmatprep.subr.bf16.mxu0 0
        %841 = vmatpush1.bf16.xpose.msra.mxu0 0
        %842 = vmatprep.subr.bf16.mxu0 0
        %843 = vmatpush1.bf16.xpose.msra.mxu0 0
        %844 = vmatprep.mubr.bf16.mxu0 0
        %845 = vmatmul.mubr.bf16.gmra.mrb[0].mxu0 %v807
        %v846 = vpop.f32.mrb[0].mxu0
        %v847 = vadd.f32 0.0, %v846
        %v848 = vpop.f32.mrb[0].mxu0
        %v849 = vpop.f32.mrb[0].mxu0
        %v850 = vpop.f32.mrb[0].mxu0
        %851 = vdwg.mxu0
        %v852 = vsel %vm453, %v847, -inf
        %853 = vmax.xlane.f32.xlu0 %v852
        %v854 = vpop.xlane.xlu0 %853
        %v855 = vsub.f32 %v847, %v854
        %v856 = vmul.f32 %v855, 1.442695
        %v857 = vpow.pop %v856
        %v858 = vsel %vm453, %v857, 0.0
        %859 = vadd.xlane.f32.xlu0 %v858
        %v860 = vpop.xlane.xlu0 %859
        %v861 = vrcp.pop %v860
        %v862 = vmul.f32 %v857, %v861
        %v863 = vpack.c.bf16 %v862, %v862
        %864 = vrot.lane.b32.xlu0 %v449, 40
        %v865 = vpop.permute.xlu0 %864
        %v867 = vsel %vm453, %v863, 0
        %v870 = vsel %vm517, %v865, 0
        %872 = vmatprep.subr.bf16.mxu0 0
        %873 = vmatpush1.bf16.msra.mxu0 %v870
        %874 = vmatprep.subr.bf16.mxu0 0
        %875 = vmatpush1.bf16.msra.mxu0 0
        %876 = vmatprep.subr.bf16.mxu0 0
        %877 = vmatpush1.bf16.msra.mxu0 0
        %878 = vmatprep.subr.bf16.mxu0 0
        %879 = vmatpush1.bf16.msra.mxu0 0
        %880 = vmatprep.subr.bf16.mxu0 0
        %881 = vmatpush1.bf16.msra.mxu0 0
        %882 = vmatprep.subr.bf16.mxu0 0
        %883 = vmatpush1.bf16.msra.mxu0 0
        %884 = vmatprep.subr.bf16.mxu0 0
        %885 = vmatpush1.bf16.msra.mxu0 0
        %886 = vmatprep.subr.bf16.mxu0 0
        %887 = vmatpush1.bf16.msra.mxu0 0
        %888 = vmatprep.subr.bf16.mxu0 0
        %889 = vmatpush1.bf16.msra.mxu0 0
        %890 = vmatprep.subr.bf16.mxu0 0
        %891 = vmatpush1.bf16.msra.mxu0 0
        %892 = vmatprep.subr.bf16.mxu0 0
        %893 = vmatpush1.bf16.msra.mxu0 0
        %894 = vmatprep.subr.bf16.mxu0 0
        %895 = vmatpush1.bf16.msra.mxu0 0
        %896 = vmatprep.subr.bf16.mxu0 0
        %897 = vmatpush1.bf16.msra.mxu0 0
        %898 = vmatprep.subr.bf16.mxu0 0
        %899 = vmatpush1.bf16.msra.mxu0 0
        %900 = vmatprep.subr.bf16.mxu0 0
        %901 = vmatpush1.bf16.msra.mxu0 0
        %902 = vmatprep.subr.bf16.mxu0 0
        %903 = vmatpush1.bf16.msra.mxu0 0
        %904 = vmatprep.mubr.bf16.mxu0 0
        %905 = vmatmul.mubr.bf16.gmra.mrb[0].mxu0 %v867
        %v906 = vpop.f32.mrb[0].mxu0
        %v907 = vadd.f32 0.0, %v906
        %v908 = vpop.f32.mrb[0].mxu0
        %v909 = vpop.f32.mrb[0].mxu0
        %v910 = vpop.f32.mrb[0].mxu0
        %911 = vdwg.mxu0
        %v912 = vpack.c.bf16 %v907, %v907
        %v914 = vunpack.c.l.b16 %v912
        %v915 = vpack.c.b16 %v914, %v914
        %916 = vrot.lane.b32.xlu0 %v915, 24
        %v917 = vpop.permute.xlu0 %916
        %vm919 = vcmask 257216
        %920 = vst.msk [vmem:[#allocation2] sm:$0xf] %vm919, %v917
        %v921 = vld [vmem:[#allocation2] sm:$0xf]
        %v922 = vld [vmem:[%s343] sm:$0xf]
        %v923 = vld [vmem:[%s343 + $0x4] sm:$0xf]
        %v924 = vld [vmem:[%s343 + $0x8] sm:$0xf]
        %v925 = vld [vmem:[%s343 + $0xc] sm:$0xf]
        %v926 = vlaneseq
        %v927 = vshrl.u32 %v926, 7
        %v928 = vsub.s32 1, %v927
        %v929 = vrot.slane %v368, %v928
        %v934 = vunpack.c.l.b16 %v922
        %v935 = vunpack.c.l.b16 %v923
        %v936 = vunpack.c.l.b16 %v924
        %v937 = vunpack.c.l.b16 %v925
        %v938 = vpack.c.b16 %v935, %v934
        %v939 = vpack.c.b16 %v937, %v936
        %v943 = vsel %vm405, %v921, 0
        %945 = vmatprep.subr.bf16.mxu0 0
        %946 = vmatpush1.bf16.msra.mxu0 %v938
        %947 = vmatprep.subr.bf16.mxu0 0
        %948 = vmatpush1.bf16.msra.mxu0 %v939
        %949 = vmatprep.subr.bf16.mxu0 0
        %950 = vmatpush1.bf16.msra.mxu0 0
        %951 = vmatprep.subr.bf16.mxu0 0
        %952 = vmatpush1.bf16.msra.mxu0 0
        %953 = vmatprep.subr.bf16.mxu0 0
        %954 = vmatpush1.bf16.msra.mxu0 0
        %955 = vmatprep.subr.bf16.mxu0 0
        %956 = vmatpush1.bf16.msra.mxu0 0
        %957 = vmatprep.subr.bf16.mxu0 0
        %958 = vmatpush1.bf16.msra.mxu0 0
        %959 = vmatprep.subr.bf16.mxu0 0
        %960 = vmatpush1.bf16.msra.mxu0 0
        %961 = vmatprep.subr.bf16.mxu0 0
        %962 = vmatpush1.bf16.msra.mxu0 0
        %963 = vmatprep.subr.bf16.mxu0 0
        %964 = vmatpush1.bf16.msra.mxu0 0
        %965 = vmatprep.subr.bf16.mxu0 0
        %966 = vmatpush1.bf16.msra.mxu0 0
        %967 = vmatprep.subr.bf16.mxu0 0
        %968 = vmatpush1.bf16.msra.mxu0 0
        %969 = vmatprep.subr.bf16.mxu0 0
        %970 = vmatpush1.bf16.msra.mxu0 0
        %971 = vmatprep.subr.bf16.mxu0 0
        %972 = vmatpush1.bf16.msra.mxu0 0
        %973 = vmatprep.subr.bf16.mxu0 0
        %974 = vmatpush1.bf16.msra.mxu0 0
        %975 = vmatprep.subr.bf16.mxu0 0
        %976 = vmatpush1.bf16.msra.mxu0 0
        %977 = vmatprep.mubr.bf16.mxu0 0
        %978 = vmatmul.mubr.bf16.gmra.mrb[0].mxu0 %v943
        %v979 = vpop.f32.mrb[0].mxu0
        %v980 = vadd.f32 %v929, %v979
        %v981 = vpop.f32.mrb[0].mxu0
        %v982 = vpop.f32.mrb[0].mxu0
        %v983 = vpop.f32.mrb[0].mxu0
        %984 = vdwg.mxu0
        %v985 = vadd.f32 %v367, %v980
        %v986 = vsel %vm405, %v985, 0.0
        %987 = vadd.xlane.f32.xlu0 %v986
        %v988 = vpop.xlane.xlu0 %987
        %v989 = vrcp.pop 32.0
        %v990 = vmul.f32 %v988, %v989
        %v991 = vsub.f32 %v985, %v990
        %v992 = vmul.f32 %v991, %v991
        %v993 = vsel %vm405, %v992, 0.0
        %994 = vadd.xlane.f32.xlu0 %v993
        %v995 = vpop.xlane.xlu0 %994
        %v996 = vrcp.pop 31.0
        %v997 = vmul.f32 %v995, %v996
        %v998 = vrsqrt.pop %v997
        %v999 = vmul.f32 %v997, %v998
        %vm1000 = vcmp.eq.f32.partialorder %v997, inf
        %v1001 = vsel %vm1000, %v997, %v999
        %vm1002 = vcmp.eq.f32.partialorder %v997, 0.0
        %v1003 = vand.u32 %v997, 2147483648
        %v1004 = vsel %vm1002, %v1003, %v1001
        %v1005 = vadd.f32 %v1004, 1e-06
        %v1006 = vrcp.pop %v1005
        %v1007 = vlaneseq
        %v1008 = vshrl.u32 %v1007, 7
        %v1009 = vsub.s32 4, %v1008
        %v1010 = vrot.slane %v368, %v1009
        %v1011 = vmul.f32 %v1010, %v991
        %v1012 = vmul.f32 %v1011, %v1006
        %v1013 = vlaneseq
        %v1014 = vshrl.u32 %v1013, 7
        %v1015 = vsub.s32 5, %v1014
        %v1016 = vrot.slane %v368, %v1015
        %v1017 = vadd.f32 %v1012, %v1016
        %v1018 = vpack.c.bf16 %v1017, %v1017
        %v1019 = vld [vmem:[%s348] sm:$0xff]
        %v1020 = vld [vmem:[%s348 + $0x8] sm:$0xff]
        %v1021 = vld [vmem:[%s348 + $0x10] sm:$0xff]
        %v1022 = vld [vmem:[%s348 + $0x18] sm:$0xff]
        %v1023 = vld [vmem:[%s348 + $0x20] sm:$0xff]
        %v1024 = vld [vmem:[%s348 + $0x28] sm:$0xff]
        %v1025 = vld [vmem:[%s348 + $0x30] sm:$0xff]
        %v1026 = vld [vmem:[%s348 + $0x38] sm:$0xff]
        %v1027 = vld [vmem:[%s348 + $0x40] sm:$0xff]
        %v1028 = vld [vmem:[%s348 + $0x48] sm:$0xff]
        %v1029 = vld [vmem:[%s348 + $0x50] sm:$0xff]
        %v1030 = vld [vmem:[%s348 + $0x58] sm:$0xff]
        %v1031 = vld [vmem:[%s348 + $0x60] sm:$0xff]
        %v1032 = vld [vmem:[%s348 + $0x68] sm:$0xff]
        %v1033 = vld [vmem:[%s348 + $0x70] sm:$0xff]
        %v1034 = vld [vmem:[%s348 + $0x78] sm:$0xff]
        %v1035 = vld [vmem:[%s348 + $0x80] sm:$0xff]
        %v1036 = vld [vmem:[%s348 + $0x88] sm:$0xff]
        %v1037 = vld [vmem:[%s348 + $0x90] sm:$0xff]
        %v1038 = vld [vmem:[%s348 + $0x98] sm:$0xff]
        %v1039 = vld [vmem:[%s348 + $0xa0] sm:$0xff]
        %v1040 = vld [vmem:[%s348 + $0xa8] sm:$0xff]
        %v1041 = vld [vmem:[%s348 + $0xb0] sm:$0xff]
        %v1042 = vld [vmem:[%s348 + $0xb8] sm:$0xff]
        %v1043 = vld [vmem:[%s348 + $0xc0] sm:$0xff]
        %v1044 = vld [vmem:[%s348 + $0xc8] sm:$0xff]
        %v1045 = vld [vmem:[%s348 + $0xd0] sm:$0xff]
        %v1046 = vld [vmem:[%s348 + $0xd8] sm:$0xff]
        %v1047 = vld [vmem:[%s348 + $0xe0] sm:$0xff]
        %v1048 = vld [vmem:[%s348 + $0xe8] sm:$0xff]
        %v1049 = vld [vmem:[%s348 + $0xf0] sm:$0xff]
        %v1050 = vld [vmem:[%s348 + $0xf8] sm:$0xff]
        %v1051 = vlaneseq
        %v1052 = vshrl.u32 %v1051, 7
        %v1053 = vsub.s32 2, %v1052
        %v1054 = vrot.slane %v368, %v1053
        %v1055 = vlaneseq
        %v1056 = vshrl.u32 %v1055, 7
        %v1057 = vsub.s32 2, %v1056
        %v1058 = vrot.slane %v369, %v1057
        %v1059 = vlaneseq
        %v1060 = vshrl.u32 %v1059, 7
        %v1061 = vsub.s32 2, %v1060
        %v1062 = vrot.slane %v370, %v1061
        %v1063 = vlaneseq
        %v1064 = vshrl.u32 %v1063, 7
        %v1065 = vsub.s32 2, %v1064
        %v1066 = vrot.slane %v371, %v1065
        %v1067 = vlaneseq
        %v1068 = vshrl.u32 %v1067, 7
        %v1069 = vsub.s32 2, %v1068
        %v1070 = vrot.slane %v372, %v1069
        %v1071 = vlaneseq
        %v1072 = vshrl.u32 %v1071, 7
        %v1073 = vsub.s32 2, %v1072
        %v1074 = vrot.slane %v373, %v1073
        %v1075 = vlaneseq
        %v1076 = vshrl.u32 %v1075, 7
        %v1077 = vsub.s32 2, %v1076
        %v1078 = vrot.slane %v374, %v1077
        %v1079 = vlaneseq
        %v1080 = vshrl.u32 %v1079, 7
        %v1081 = vsub.s32 2, %v1080
        %v1082 = vrot.slane %v375, %v1081
        %v1083 = vlaneseq
        %v1084 = vshrl.u32 %v1083, 7
        %v1085 = vsub.s32 2, %v1084
        %v1086 = vrot.slane %v376, %v1085
        %v1087 = vlaneseq
        %v1088 = vshrl.u32 %v1087, 7
        %v1089 = vsub.s32 2, %v1088
        %v1090 = vrot.slane %v377, %v1089
        %v1091 = vlaneseq
        %v1092 = vshrl.u32 %v1091, 7
        %v1093 = vsub.s32 2, %v1092
        %v1094 = vrot.slane %v378, %v1093
        %v1095 = vlaneseq
        %v1096 = vshrl.u32 %v1095, 7
        %v1097 = vsub.s32 2, %v1096
        %v1098 = vrot.slane %v379, %v1097
        %v1099 = vlaneseq
        %v1100 = vshrl.u32 %v1099, 7
        %v1101 = vsub.s32 2, %v1100
        %v1102 = vrot.slane %v380, %v1101
        %v1103 = vlaneseq
        %v1104 = vshrl.u32 %v1103, 7
        %v1105 = vsub.s32 2, %v1104
        %v1106 = vrot.slane %v381, %v1105
        %v1107 = vlaneseq
        %v1108 = vshrl.u32 %v1107, 7
        %v1109 = vsub.s32 2, %v1108
        %v1110 = vrot.slane %v382, %v1109
        %v1111 = vlaneseq
        %v1112 = vshrl.u32 %v1111, 7
        %v1113 = vsub.s32 2, %v1112
        %v1114 = vrot.slane %v383, %v1113
        %v1147 = vunpack.c.l.b16 %v1019
        %v1148 = vunpack.c.h.b16 %v1019
        %v1149 = vunpack.c.l.b16 %v1020
        %v1150 = vunpack.c.h.b16 %v1020
        %v1151 = vunpack.c.l.b16 %v1021
        %v1152 = vunpack.c.h.b16 %v1021
        %v1153 = vunpack.c.l.b16 %v1022
        %v1154 = vunpack.c.h.b16 %v1022
        %v1155 = vunpack.c.l.b16 %v1023
        %v1156 = vunpack.c.h.b16 %v1023
        %v1157 = vunpack.c.l.b16 %v1024
        %v1158 = vunpack.c.h.b16 %v1024
        %v1159 = vunpack.c.l.b16 %v1025
        %v1160 = vunpack.c.h.b16 %v1025
        %v1161 = vunpack.c.l.b16 %v1026
        %v1162 = vunpack.c.h.b16 %v1026
        %v1163 = vunpack.c.l.b16 %v1027
        %v1164 = vunpack.c.h.b16 %v1027
        %v1165 = vunpack.c.l.b16 %v1028
        %v1166 = vunpack.c.h.b16 %v1028
        %v1167 = vunpack.c.l.b16 %v1029
        %v1168 = vunpack.c.h.b16 %v1029
        %v1169 = vunpack.c.l.b16 %v1030
        %v1170 = vunpack.c.h.b16 %v1030
        %v1171 = vunpack.c.l.b16 %v1031
        %v1172 = vunpack.c.h.b16 %v1031
        %v1173 = vunpack.c.l.b16 %v1032
        %v1174 = vunpack.c.h.b16 %v1032
        %v1175 = vunpack.c.l.b16 %v1033
        %v1176 = vunpack.c.h.b16 %v1033
        %v1177 = vunpack.c.l.b16 %v1034
        %v1178 = vunpack.c.h.b16 %v1034
        %v1179 = vunpack.c.l.b16 %v1035
        %v1180 = vunpack.c.h.b16 %v1035
        %v1181 = vunpack.c.l.b16 %v1036
        %v1182 = vunpack.c.h.b16 %v1036
        %v1183 = vunpack.c.l.b16 %v1037
        %v1184 = vunpack.c.h.b16 %v1037
        %v1185 = vunpack.c.l.b16 %v1038
        %v1186 = vunpack.c.h.b16 %v1038
        %v1187 = vunpack.c.l.b16 %v1039
        %v1188 = vunpack.c.h.b16 %v1039
        %v1189 = vunpack.c.l.b16 %v1040
        %v1190 = vunpack.c.h.b16 %v1040
        %v1191 = vunpack.c.l.b16 %v1041
        %v1192 = vunpack.c.h.b16 %v1041
        %v1193 = vunpack.c.l.b16 %v1042
        %v1194 = vunpack.c.h.b16 %v1042
        %v1195 = vunpack.c.l.b16 %v1043
        %v1196 = vunpack.c.h.b16 %v1043
        %v1197 = vunpack.c.l.b16 %v1044
        %v1198 = vunpack.c.h.b16 %v1044
        %v1199 = vunpack.c.l.b16 %v1045
        %v1200 = vunpack.c.h.b16 %v1045
        %v1201 = vunpack.c.l.b16 %v1046
        %v1202 = vunpack.c.h.b16 %v1046
        %v1203 = vunpack.c.l.b16 %v1047
        %v1204 = vunpack.c.h.b16 %v1047
        %v1205 = vunpack.c.l.b16 %v1048
        %v1206 = vunpack.c.h.b16 %v1048
        %v1207 = vunpack.c.l.b16 %v1049
        %v1208 = vunpack.c.h.b16 %v1049
        %v1209 = vunpack.c.l.b16 %v1050
        %v1210 = vunpack.c.h.b16 %v1050
        %v1211 = vpack.c.b16 %v1163, %v1147
        %v1212 = vpack.c.b16 %v1164, %v1148
        %v1213 = vpack.c.b16 %v1165, %v1149
        %v1214 = vpack.c.b16 %v1166, %v1150
        %v1215 = vpack.c.b16 %v1167, %v1151
        %v1216 = vpack.c.b16 %v1168, %v1152
        %v1217 = vpack.c.b16 %v1169, %v1153
        %v1218 = vpack.c.b16 %v1170, %v1154
        %v1219 = vpack.c.b16 %v1171, %v1155
        %v1220 = vpack.c.b16 %v1172, %v1156
        %v1221 = vpack.c.b16 %v1173, %v1157
        %v1222 = vpack.c.b16 %v1174, %v1158
        %v1223 = vpack.c.b16 %v1175, %v1159
        %v1224 = vpack.c.b16 %v1176, %v1160
        %v1225 = vpack.c.b16 %v1177, %v1161
        %v1226 = vpack.c.b16 %v1178, %v1162
        %v1227 = vpack.c.b16 %v1195, %v1179
        %v1228 = vpack.c.b16 %v1196, %v1180
        %v1229 = vpack.c.b16 %v1197, %v1181
        %v1230 = vpack.c.b16 %v1198, %v1182
        %v1231 = vpack.c.b16 %v1199, %v1183
        %v1232 = vpack.c.b16 %v1200, %v1184
        %v1233 = vpack.c.b16 %v1201, %v1185
        %v1234 = vpack.c.b16 %v1202, %v1186
        %v1235 = vpack.c.b16 %v1203, %v1187
        %v1236 = vpack.c.b16 %v1204, %v1188
        %v1237 = vpack.c.b16 %v1205, %v1189
        %v1238 = vpack.c.b16 %v1206, %v1190
        %v1239 = vpack.c.b16 %v1207, %v1191
        %v1240 = vpack.c.b16 %v1208, %v1192
        %v1241 = vpack.c.b16 %v1209, %v1193
        %v1242 = vpack.c.b16 %v1210, %v1194
        %v1276 = vsel %vm405, %v1018, 0
        %1278 = vmatprep.subr.bf16.mxu0 %v1212
        %1279 = vmatpush1.bf16.msra.mxu0 %v1211
        %1280 = vmatprep.subr.bf16.mxu0 %v1228
        %1281 = vmatpush1.bf16.msra.mxu0 %v1227
        %1282 = vmatprep.subr.bf16.mxu0 0
        %1283 = vmatpush1.bf16.msra.mxu0 0
        %1284 = vmatprep.subr.bf16.mxu0 0
        %1285 = vmatpush1.bf16.msra.mxu0 0
        %1286 = vmatprep.subr.bf16.mxu0 0
        %1287 = vmatpush1.bf16.msra.mxu0 0
        %1288 = vmatprep.subr.bf16.mxu0 0
        %1289 = vmatpush1.bf16.msra.mxu0 0
        %1290 = vmatprep.subr.bf16.mxu0 0
        %1291 = vmatpush1.bf16.msra.mxu0 0
        %1292 = vmatprep.subr.bf16.mxu0 0
        %1293 = vmatpush1.bf16.msra.mxu0 0
        %1294 = vmatprep.subr.bf16.mxu0 0
        %1295 = vmatpush1.bf16.msra.mxu0 0
        %1296 = vmatprep.subr.bf16.mxu0 0
        %1297 = vmatpush1.bf16.msra.mxu0 0
        %1298 = vmatprep.subr.bf16.mxu0 0
        %1299 = vmatpush1.bf16.msra.mxu0 0
        %1300 = vmatprep.subr.bf16.mxu0 0
        %1301 = vmatpush1.bf16.msra.mxu0 0
        %1302 = vmatprep.subr.bf16.mxu0 0
        %1303 = vmatpush1.bf16.msra.mxu0 0
        %1304 = vmatprep.subr.bf16.mxu0 0
        %1305 = vmatpush1.bf16.msra.mxu0 0
        %1306 = vmatprep.subr.bf16.mxu0 0
        %1307 = vmatpush1.bf16.msra.mxu0 0
        %1308 = vmatprep.subr.bf16.mxu0 0
        %1309 = vmatpush1.bf16.msra.mxu0 0
        %1310 = vmatprep.mubr.bf16.mxu0 0
        %1311 = vmatmul.mubr.bf16.gmra.mrb[0].mxu0 %v1276
        %v1312 = vpop.f32.mrb[0].mxu0
        %v1313 = vadd.f32 %v1054, %v1312
        %v1314 = vpop.f32.mrb[0].mxu0
        %v1315 = vadd.f32 %v1058, %v1314
        %v1316 = vpop.f32.mrb[0].mxu0
        %v1317 = vpop.f32.mrb[0].mxu0
        %1318 = vdwg.mxu0
        %1319 = vmatprep.subr.bf16.mxu0 %v1214
        %1320 = vmatpush1.bf16.msra.mxu0 %v1213
        %1321 = vmatprep.subr.bf16.mxu0 %v1230
        %1322 = vmatpush1.bf16.msra.mxu0 %v1229
        %1323 = vmatprep.subr.bf16.mxu0 0
        %1324 = vmatpush1.bf16.msra.mxu0 0
        %1325 = vmatprep.subr.bf16.mxu0 0
        %1326 = vmatpush1.bf16.msra.mxu0 0
        %1327 = vmatprep.subr.bf16.mxu0 0
        %1328 = vmatpush1.bf16.msra.mxu0 0
        %1329 = vmatprep.subr.bf16.mxu0 0
        %1330 = vmatpush1.bf16.msra.mxu0 0
        %1331 = vmatprep.subr.bf16.mxu0 0
        %1332 = vmatpush1.bf16.msra.mxu0 0
        %1333 = vmatprep.subr.bf16.mxu0 0
        %1334 = vmatpush1.bf16.msra.mxu0 0
        %1335 = vmatprep.subr.bf16.mxu0 0
        %1336 = vmatpush1.bf16.msra.mxu0 0
        %1337 = vmatprep.subr.bf16.mxu0 0
        %1338 = vmatpush1.bf16.msra.mxu0 0
        %1339 = vmatprep.subr.bf16.mxu0 0
        %1340 = vmatpush1.bf16.msra.mxu0 0
        %1341 = vmatprep.subr.bf16.mxu0 0
        %1342 = vmatpush1.bf16.msra.mxu0 0
        %1343 = vmatprep.subr.bf16.mxu0 0
        %1344 = vmatpush1.bf16.msra.mxu0 0
        %1345 = vmatprep.subr.bf16.mxu0 0
        %1346 = vmatpush1.bf16.msra.mxu0 0
        %1347 = vmatprep.subr.bf16.mxu0 0
        %1348 = vmatpush1.bf16.msra.mxu0 0
        %1349 = vmatprep.subr.bf16.mxu0 0
        %1350 = vmatpush1.bf16.msra.mxu0 0
        %1351 = vmatprep.mubr.bf16.mxu0 0
        %1352 = vmatmul.mubr.bf16.gmra.mrb[0].mxu0 %v1276
        %v1353 = vpop.f32.mrb[0].mxu0
        %v1354 = vadd.f32 %v1062, %v1353
        %v1355 = vpop.f32.mrb[0].mxu0
        %v1356 = vadd.f32 %v1066, %v1355
        %v1357 = vpop.f32.mrb[0].mxu0
        %v1358 = vpop.f32.mrb[0].mxu0
        %1359 = vdwg.mxu0
        %1360 = vmatprep.subr.bf16.mxu0 %v1216
        %1361 = vmatpush1.bf16.msra.mxu0 %v1215
        %1362 = vmatprep.subr.bf16.mxu0 %v1232
        %1363 = vmatpush1.bf16.msra.mxu0 %v1231
        %1364 = vmatprep.subr.bf16.mxu0 0
        %1365 = vmatpush1.bf16.msra.mxu0 0
        %1366 = vmatprep.subr.bf16.mxu0 0
        %1367 = vmatpush1.bf16.msra.mxu0 0
        %1368 = vmatprep.subr.bf16.mxu0 0
        %1369 = vmatpush1.bf16.msra.mxu0 0
        %1370 = vmatprep.subr.bf16.mxu0 0
        %1371 = vmatpush1.bf16.msra.mxu0 0
        %1372 = vmatprep.subr.bf16.mxu0 0
        %1373 = vmatpush1.bf16.msra.mxu0 0
        %1374 = vmatprep.subr.bf16.mxu0 0
        %1375 = vmatpush1.bf16.msra.mxu0 0
        %1376 = vmatprep.subr.bf16.mxu0 0
        %1377 = vmatpush1.bf16.msra.mxu0 0
        %1378 = vmatprep.subr.bf16.mxu0 0
        %1379 = vmatpush1.bf16.msra.mxu0 0
        %1380 = vmatprep.subr.bf16.mxu0 0
        %1381 = vmatpush1.bf16.msra.mxu0 0
        %1382 = vmatprep.subr.bf16.mxu0 0
        %1383 = vmatpush1.bf16.msra.mxu0 0
        %1384 = vmatprep.subr.bf16.mxu0 0
        %1385 = vmatpush1.bf16.msra.mxu0 0
        %1386 = vmatprep.subr.bf16.mxu0 0
        %1387 = vmatpush1.bf16.msra.mxu0 0
        %1388 = vmatprep.subr.bf16.mxu0 0
        %1389 = vmatpush1.bf16.msra.mxu0 0
        %1390 = vmatprep.subr.bf16.mxu0 0
        %1391 = vmatpush1.bf16.msra.mxu0 0
        %1392 = vmatprep.mubr.bf16.mxu0 0
        %1393 = vmatmul.mubr.bf16.gmra.mrb[0].mxu0 %v1276
        %v1394 = vpop.f32.mrb[0].mxu0
        %v1395 = vadd.f32 %v1070, %v1394
        %v1396 = vpop.f32.mrb[0].mxu0
        %v1397 = vadd.f32 %v1074, %v1396
        %v1398 = vpop.f32.mrb[0].mxu0
        %v1399 = vpop.f32.mrb[0].mxu0
        %1400 = vdwg.mxu0
        %1401 = vmatprep.subr.bf16.mxu0 %v1218
        %1402 = vmatpush1.bf16.msra.mxu0 %v1217
        %1403 = vmatprep.subr.bf16.mxu0 %v1234
        %1404 = vmatpush1.bf16.msra.mxu0 %v1233
        %1405 = vmatprep.subr.bf16.mxu0 0
        %1406 = vmatpush1.bf16.msra.mxu0 0
        %1407 = vmatprep.subr.bf16.mxu0 0
        %1408 = vmatpush1.bf16.msra.mxu0 0
        %1409 = vmatprep.subr.bf16.mxu0 0
        %1410 = vmatpush1.bf16.msra.mxu0 0
        %1411 = vmatprep.subr.bf16.mxu0 0
        %1412 = vmatpush1.bf16.msra.mxu0 0
        %1413 = vmatprep.subr.bf16.mxu0 0
        %1414 = vmatpush1.bf16.msra.mxu0 0
        %1415 = vmatprep.subr.bf16.mxu0 0
        %1416 = vmatpush1.bf16.msra.mxu0 0
        %1417 = vmatprep.subr.bf16.mxu0 0
        %1418 = vmatpush1.bf16.msra.mxu0 0
        %1419 = vmatprep.subr.bf16.mxu0 0
        %1420 = vmatpush1.bf16.msra.mxu0 0
        %1421 = vmatprep.subr.bf16.mxu0 0
        %1422 = vmatpush1.bf16.msra.mxu0 0
        %1423 = vmatprep.subr.bf16.mxu0 0
        %1424 = vmatpush1.bf16.msra.mxu0 0
        %1425 = vmatprep.subr.bf16.mxu0 0
        %1426 = vmatpush1.bf16.msra.mxu0 0
        %1427 = vmatprep.subr.bf16.mxu0 0
        %1428 = vmatpush1.bf16.msra.mxu0 0
        %1429 = vmatprep.subr.bf16.mxu0 0
        %1430 = vmatpush1.bf16.msra.mxu0 0
        %1431 = vmatprep.subr.bf16.mxu0 0
        %1432 = vmatpush1.bf16.msra.mxu0 0
        %1433 = vmatprep.mubr.bf16.mxu0 0
        %1434 = vmatmul.mubr.bf16.gmra.mrb[0].mxu0 %v1276
        %v1435 = vpop.f32.mrb[0].mxu0
        %v1436 = vadd.f32 %v1078, %v1435
        %v1437 = vpop.f32.mrb[0].mxu0
        %v1438 = vadd.f32 %v1082, %v1437
        %v1439 = vpop.f32.mrb[0].mxu0
        %v1440 = vpop.f32.mrb[0].mxu0
        %1441 = vdwg.mxu0
        %1442 = vmatprep.subr.bf16.mxu0 %v1220
        %1443 = vmatpush1.bf16.msra.mxu0 %v1219
        %1444 = vmatprep.subr.bf16.mxu0 %v1236
        %1445 = vmatpush1.bf16.msra.mxu0 %v1235
        %1446 = vmatprep.subr.bf16.mxu0 0
        %1447 = vmatpush1.bf16.msra.mxu0 0
        %1448 = vmatprep.subr.bf16.mxu0 0
        %1449 = vmatpush1.bf16.msra.mxu0 0
        %1450 = vmatprep.subr.bf16.mxu0 0
        %1451 = vmatpush1.bf16.msra.mxu0 0
        %1452 = vmatprep.subr.bf16.mxu0 0
        %1453 = vmatpush1.bf16.msra.mxu0 0
        %1454 = vmatprep.subr.bf16.mxu0 0
        %1455 = vmatpush1.bf16.msra.mxu0 0
        %1456 = vmatprep.subr.bf16.mxu0 0
        %1457 = vmatpush1.bf16.msra.mxu0 0
        %1458 = vmatprep.subr.bf16.mxu0 0
        %1459 = vmatpush1.bf16.msra.mxu0 0
        %1460 = vmatprep.subr.bf16.mxu0 0
        %1461 = vmatpush1.bf16.msra.mxu0 0
        %1462 = vmatprep.subr.bf16.mxu0 0
        %1463 = vmatpush1.bf16.msra.mxu0 0
        %1464 = vmatprep.subr.bf16.mxu0 0
        %1465 = vmatpush1.bf16.msra.mxu0 0
        %1466 = vmatprep.subr.bf16.mxu0 0
        %1467 = vmatpush1.bf16.msra.mxu0 0
        %1468 = vmatprep.subr.bf16.mxu0 0
        %1469 = vmatpush1.bf16.msra.mxu0 0
        %1470 = vmatprep.subr.bf16.mxu0 0
        %1471 = vmatpush1.bf16.msra.mxu0 0
        %1472 = vmatprep.subr.bf16.mxu0 0
        %1473 = vmatpush1.bf16.msra.mxu0 0
        %1474 = vmatprep.mubr.bf16.mxu0 0
        %1475 = vmatmul.mubr.bf16.gmra.mrb[0].mxu0 %v1276
        %v1476 = vpop.f32.mrb[0].mxu0
        %v1477 = vadd.f32 %v1086, %v1476
        %v1478 = vpop.f32.mrb[0].mxu0
        %v1479 = vadd.f32 %v1090, %v1478
        %v1480 = vpop.f32.mrb[0].mxu0
        %v1481 = vpop.f32.mrb[0].mxu0
        %1482 = vdwg.mxu0
        %1483 = vmatprep.subr.bf16.mxu0 %v1222
        %1484 = vmatpush1.bf16.msra.mxu0 %v1221
        %1485 = vmatprep.subr.bf16.mxu0 %v1238
        %1486 = vmatpush1.bf16.msra.mxu0 %v1237
        %1487 = vmatprep.subr.bf16.mxu0 0
        %1488 = vmatpush1.bf16.msra.mxu0 0
        %1489 = vmatprep.subr.bf16.mxu0 0
        %1490 = vmatpush1.bf16.msra.mxu0 0
        %1491 = vmatprep.subr.bf16.mxu0 0
        %1492 = vmatpush1.bf16.msra.mxu0 0
        %1493 = vmatprep.subr.bf16.mxu0 0
        %1494 = vmatpush1.bf16.msra.mxu0 0
        %1495 = vmatprep.subr.bf16.mxu0 0
        %1496 = vmatpush1.bf16.msra.mxu0 0
        %1497 = vmatprep.subr.bf16.mxu0 0
        %1498 = vmatpush1.bf16.msra.mxu0 0
        %1499 = vmatprep.subr.bf16.mxu0 0
        %1500 = vmatpush1.bf16.msra.mxu0 0
        %1501 = vmatprep.subr.bf16.mxu0 0
        %1502 = vmatpush1.bf16.msra.mxu0 0
        %1503 = vmatprep.subr.bf16.mxu0 0
        %1504 = vmatpush1.bf16.msra.mxu0 0
        %1505 = vmatprep.subr.bf16.mxu0 0
        %1506 = vmatpush1.bf16.msra.mxu0 0
        %1507 = vmatprep.subr.bf16.mxu0 0
        %1508 = vmatpush1.bf16.msra.mxu0 0
        %1509 = vmatprep.subr.bf16.mxu0 0
        %1510 = vmatpush1.bf16.msra.mxu0 0
        %1511 = vmatprep.subr.bf16.mxu0 0
        %1512 = vmatpush1.bf16.msra.mxu0 0
        %1513 = vmatprep.subr.bf16.mxu0 0
        %1514 = vmatpush1.bf16.msra.mxu0 0
        %1515 = vmatprep.mubr.bf16.mxu0 0
        %1516 = vmatmul.mubr.bf16.gmra.mrb[0].mxu0 %v1276
        %v1517 = vpop.f32.mrb[0].mxu0
        %v1518 = vadd.f32 %v1094, %v1517
        %v1519 = vpop.f32.mrb[0].mxu0
        %v1520 = vadd.f32 %v1098, %v1519
        %v1521 = vpop.f32.mrb[0].mxu0
        %v1522 = vpop.f32.mrb[0].mxu0
        %1523 = vdwg.mxu0
        %1524 = vmatprep.subr.bf16.mxu0 %v1224
        %1525 = vmatpush1.bf16.msra.mxu0 %v1223
        %1526 = vmatprep.subr.bf16.mxu0 %v1240
        %1527 = vmatpush1.bf16.msra.mxu0 %v1239
        %1528 = vmatprep.subr.bf16.mxu0 0
        %1529 = vmatpush1.bf16.msra.mxu0 0
        %1530 = vmatprep.subr.bf16.mxu0 0
        %1531 = vmatpush1.bf16.msra.mxu0 0
        %1532 = vmatprep.subr.bf16.mxu0 0
        %1533 = vmatpush1.bf16.msra.mxu0 0
        %1534 = vmatprep.subr.bf16.mxu0 0
        %1535 = vmatpush1.bf16.msra.mxu0 0
        %1536 = vmatprep.subr.bf16.mxu0 0
        %1537 = vmatpush1.bf16.msra.mxu0 0
        %1538 = vmatprep.subr.bf16.mxu0 0
        %1539 = vmatpush1.bf16.msra.mxu0 0
        %1540 = vmatprep.subr.bf16.mxu0 0
        %1541 = vmatpush1.bf16.msra.mxu0 0
        %1542 = vmatprep.subr.bf16.mxu0 0
        %1543 = vmatpush1.bf16.msra.mxu0 0
        %1544 = vmatprep.subr.bf16.mxu0 0
        %1545 = vmatpush1.bf16.msra.mxu0 0
        %1546 = vmatprep.subr.bf16.mxu0 0
        %1547 = vmatpush1.bf16.msra.mxu0 0
        %1548 = vmatprep.subr.bf16.mxu0 0
        %1549 = vmatpush1.bf16.msra.mxu0 0
        %1550 = vmatprep.subr.bf16.mxu0 0
        %1551 = vmatpush1.bf16.msra.mxu0 0
        %1552 = vmatprep.subr.bf16.mxu0 0
        %1553 = vmatpush1.bf16.msra.mxu0 0
        %1554 = vmatprep.subr.bf16.mxu0 0
        %1555 = vmatpush1.bf16.msra.mxu0 0
        %1556 = vmatprep.mubr.bf16.mxu0 0
        %1557 = vmatmul.mubr.bf16.gmra.mrb[0].mxu0 %v1276
        %v1558 = vpop.f32.mrb[0].mxu0
        %v1559 = vadd.f32 %v1102, %v1558
        %v1560 = vpop.f32.mrb[0].mxu0
        %v1561 = vadd.f32 %v1106, %v1560
        %v1562 = vpop.f32.mrb[0].mxu0
        %v1563 = vpop.f32.mrb[0].mxu0
        %1564 = vdwg.mxu0
        %1565 = vmatprep.subr.bf16.mxu0 %v1226
        %1566 = vmatpush1.bf16.msra.mxu0 %v1225
        %1567 = vmatprep.subr.bf16.mxu0 %v1242
        %1568 = vmatpush1.bf16.msra.mxu0 %v1241
        %1569 = vmatprep.subr.bf16.mxu0 0
        %1570 = vmatpush1.bf16.msra.mxu0 0
        %1571 = vmatprep.subr.bf16.mxu0 0
        %1572 = vmatpush1.bf16.msra.mxu0 0
        %1573 = vmatprep.subr.bf16.mxu0 0
        %1574 = vmatpush1.bf16.msra.mxu0 0
        %1575 = vmatprep.subr.bf16.mxu0 0
        %1576 = vmatpush1.bf16.msra.mxu0 0
        %1577 = vmatprep.subr.bf16.mxu0 0
        %1578 = vmatpush1.bf16.msra.mxu0 0
        %1579 = vmatprep.subr.bf16.mxu0 0
        %1580 = vmatpush1.bf16.msra.mxu0 0
        %1581 = vmatprep.subr.bf16.mxu0 0
        %1582 = vmatpush1.bf16.msra.mxu0 0
        %1583 = vmatprep.subr.bf16.mxu0 0
        %1584 = vmatpush1.bf16.msra.mxu0 0
        %1585 = vmatprep.subr.bf16.mxu0 0
        %1586 = vmatpush1.bf16.msra.mxu0 0
        %1587 = vmatprep.subr.bf16.mxu0 0
        %1588 = vmatpush1.bf16.msra.mxu0 0
        %1589 = vmatprep.subr.bf16.mxu0 0
        %1590 = vmatpush1.bf16.msra.mxu0 0
        %1591 = vmatprep.subr.bf16.mxu0 0
        %1592 = vmatpush1.bf16.msra.mxu0 0
        %1593 = vmatprep.subr.bf16.mxu0 0
        %1594 = vmatpush1.bf16.msra.mxu0 0
        %1595 = vmatprep.subr.bf16.mxu0 0
        %1596 = vmatpush1.bf16.msra.mxu0 0
        %1597 = vmatprep.mubr.bf16.mxu0 0
        %1598 = vmatmul.mubr.bf16.gmra.mrb[0].mxu0 %v1276
        %v1599 = vpop.f32.mrb[0].mxu0
        %v1600 = vadd.f32 %v1110, %v1599
        %v1601 = vpop.f32.mrb[0].mxu0
        %v1602 = vadd.f32 %v1114, %v1601
        %v1603 = vpop.f32.mrb[0].mxu0
        %v1604 = vpop.f32.mrb[0].mxu0
        %1605 = vdwg.mxu0
        %v1606 = vmax.f32 %v1313, 0.0
        %v1607 = vmax.f32 %v1315, 0.0
        %v1608 = vmax.f32 %v1354, 0.0
        %v1609 = vmax.f32 %v1356, 0.0
        %v1610 = vmax.f32 %v1395, 0.0
        %v1611 = vmax.f32 %v1397, 0.0
        %v1612 = vmax.f32 %v1436, 0.0
        %v1613 = vmax.f32 %v1438, 0.0
        %v1614 = vmax.f32 %v1477, 0.0
        %v1615 = vmax.f32 %v1479, 0.0
        %v1616 = vmax.f32 %v1518, 0.0
        %v1617 = vmax.f32 %v1520, 0.0
        %v1618 = vmax.f32 %v1559, 0.0
        %v1619 = vmax.f32 %v1561, 0.0
        %v1620 = vmax.f32 %v1600, 0.0
        %v1621 = vmax.f32 %v1602, 0.0
        %v1622 = vpack.c.bf16 %v1606, %v1606
        %v1623 = vpack.c.bf16 %v1607, %v1607
        %v1624 = vpack.c.bf16 %v1608, %v1608
        %v1625 = vpack.c.bf16 %v1609, %v1609
        %v1626 = vpack.c.bf16 %v1610, %v1610
        %v1627 = vpack.c.bf16 %v1611, %v1611
        %v1628 = vpack.c.bf16 %v1612, %v1612
        %v1629 = vpack.c.bf16 %v1613, %v1613
        %v1630 = vpack.c.bf16 %v1614, %v1614
        %v1631 = vpack.c.bf16 %v1615, %v1615
        %v1632 = vpack.c.bf16 %v1616, %v1616
        %v1633 = vpack.c.bf16 %v1617, %v1617
        %v1634 = vpack.c.bf16 %v1618, %v1618
        %v1635 = vpack.c.bf16 %v1619, %v1619
        %v1636 = vpack.c.bf16 %v1620, %v1620
        %v1637 = vpack.c.bf16 %v1621, %v1621
        %v1638 = vld [vmem:[%s353] sm:$0xf]
        %v1639 = vld [vmem:[%s353 + $0x4] sm:$0xf]
        %v1640 = vld [vmem:[%s353 + $0x8] sm:$0xf]
        %v1641 = vld [vmem:[%s353 + $0xc] sm:$0xf]
        %v1642 = vld [vmem:[%s353 + $0x10] sm:$0xf]
        %v1643 = vld [vmem:[%s353 + $0x14] sm:$0xf]
        %v1644 = vld [vmem:[%s353 + $0x18] sm:$0xf]
        %v1645 = vld [vmem:[%s353 + $0x1c] sm:$0xf]
        %v1646 = vld [vmem:[%s353 + $0x20] sm:$0xf]
        %v1647 = vld [vmem:[%s353 + $0x24] sm:$0xf]
        %v1648 = vld [vmem:[%s353 + $0x28] sm:$0xf]
        %v1649 = vld [vmem:[%s353 + $0x2c] sm:$0xf]
        %v1650 = vld [vmem:[%s353 + $0x30] sm:$0xf]
        %v1651 = vld [vmem:[%s353 + $0x34] sm:$0xf]
        %v1652 = vld [vmem:[%s353 + $0x38] sm:$0xf]
        %v1653 = vld [vmem:[%s353 + $0x3c] sm:$0xf]
        %v1654 = vld [vmem:[%s353 + $0x40] sm:$0xf]
        %v1655 = vld [vmem:[%s353 + $0x44] sm:$0xf]
        %v1656 = vld [vmem:[%s353 + $0x48] sm:$0xf]
        %v1657 = vld [vmem:[%s353 + $0x4c] sm:$0xf]
        %v1658 = vld [vmem:[%s353 + $0x50] sm:$0xf]
        %v1659 = vld [vmem:[%s353 + $0x54] sm:$0xf]
        %v1660 = vld [vmem:[%s353 + $0x58] sm:$0xf]
        %v1661 = vld [vmem:[%s353 + $0x5c] sm:$0xf]
        %v1662 = vld [vmem:[%s353 + $0x60] sm:$0xf]
        %v1663 = vld [vmem:[%s353 + $0x64] sm:$0xf]
        %v1664 = vld [vmem:[%s353 + $0x68] sm:$0xf]
        %v1665 = vld [vmem:[%s353 + $0x6c] sm:$0xf]
        %v1666 = vld [vmem:[%s353 + $0x70] sm:$0xf]
        %v1667 = vld [vmem:[%s353 + $0x74] sm:$0xf]
        %v1668 = vld [vmem:[%s353 + $0x78] sm:$0xf]
        %v1669 = vld [vmem:[%s353 + $0x7c] sm:$0xf]
        %v1670 = vld [vmem:[%s353 + $0x80] sm:$0xf]
        %v1671 = vld [vmem:[%s353 + $0x84] sm:$0xf]
        %v1672 = vld [vmem:[%s353 + $0x88] sm:$0xf]
        %v1673 = vld [vmem:[%s353 + $0x8c] sm:$0xf]
        %v1674 = vld [vmem:[%s353 + $0x90] sm:$0xf]
        %v1675 = vld [vmem:[%s353 + $0x94] sm:$0xf]
        %v1676 = vld [vmem:[%s353 + $0x98] sm:$0xf]
        %v1677 = vld [vmem:[%s353 + $0x9c] sm:$0xf]
        %v1678 = vld [vmem:[%s353 + $0xa0] sm:$0xf]
        %v1679 = vld [vmem:[%s353 + $0xa4] sm:$0xf]
        %v1680 = vld [vmem:[%s353 + $0xa8] sm:$0xf]
        %v1681 = vld [vmem:[%s353 + $0xac] sm:$0xf]
        %v1682 = vld [vmem:[%s353 + $0xb0] sm:$0xf]
        %v1683 = vld [vmem:[%s353 + $0xb4] sm:$0xf]
        %v1684 = vld [vmem:[%s353 + $0xb8] sm:$0xf]
        %v1685 = vld [vmem:[%s353 + $0xbc] sm:$0xf]
        %v1686 = vld [vmem:[%s353 + $0xc0] sm:$0xf]
        %v1687 = vld [vmem:[%s353 + $0xc4] sm:$0xf]
        %v1688 = vld [vmem:[%s353 + $0xc8] sm:$0xf]
        %v1689 = vld [vmem:[%s353 + $0xcc] sm:$0xf]
        %v1690 = vld [vmem:[%s353 + $0xd0] sm:$0xf]
        %v1691 = vld [vmem:[%s353 + $0xd4] sm:$0xf]
        %v1692 = vld [vmem:[%s353 + $0xd8] sm:$0xf]
        %v1693 = vld [vmem:[%s353 + $0xdc] sm:$0xf]
        %v1694 = vld [vmem:[%s353 + $0xe0] sm:$0xf]
        %v1695 = vld [vmem:[%s353 + $0xe4] sm:$0xf]
        %v1696 = vld [vmem:[%s353 + $0xe8] sm:$0xf]
        %v1697 = vld [vmem:[%s353 + $0xec] sm:$0xf]
        %v1698 = vld [vmem:[%s353 + $0xf0] sm:$0xf]
        %v1699 = vld [vmem:[%s353 + $0xf4] sm:$0xf]
        %v1700 = vld [vmem:[%s353 + $0xf8] sm:$0xf]
        %v1701 = vld [vmem:[%s353 + $0xfc] sm:$0xf]
        %v1702 = vld [vmem:[%s353 + $0x100] sm:$0xf]
        %v1703 = vld [vmem:[%s353 + $0x104] sm:$0xf]
        %v1704 = vld [vmem:[%s353 + $0x108] sm:$0xf]
        %v1705 = vld [vmem:[%s353 + $0x10c] sm:$0xf]
        %v1706 = vld [vmem:[%s353 + $0x110] sm:$0xf]
        %v1707 = vld [vmem:[%s353 + $0x114] sm:$0xf]
        %v1708 = vld [vmem:[%s353 + $0x118] sm:$0xf]
        %v1709 = vld [vmem:[%s353 + $0x11c] sm:$0xf]
        %v1710 = vld [vmem:[%s353 + $0x120] sm:$0xf]
        %v1711 = vld [vmem:[%s353 + $0x124] sm:$0xf]
        %v1712 = vld [vmem:[%s353 + $0x128] sm:$0xf]
        %v1713 = vld [vmem:[%s353 + $0x12c] sm:$0xf]
        %v1714 = vld [vmem:[%s353 + $0x130] sm:$0xf]
        %v1715 = vld [vmem:[%s353 + $0x134] sm:$0xf]
        %v1716 = vld [vmem:[%s353 + $0x138] sm:$0xf]
        %v1717 = vld [vmem:[%s353 + $0x13c] sm:$0xf]
        %v1718 = vld [vmem:[%s353 + $0x140] sm:$0xf]
        %v1719 = vld [vmem:[%s353 + $0x144] sm:$0xf]
        %v1720 = vld [vmem:[%s353 + $0x148] sm:$0xf]
        %v1721 = vld [vmem:[%s353 + $0x14c] sm:$0xf]
        %v1722 = vld [vmem:[%s353 + $0x150] sm:$0xf]
        %v1723 = vld [vmem:[%s353 + $0x154] sm:$0xf]
        %v1724 = vld [vmem:[%s353 + $0x158] sm:$0xf]
        %v1725 = vld [vmem:[%s353 + $0x15c] sm:$0xf]
        %v1726 = vld [vmem:[%s353 + $0x160] sm:$0xf]
        %v1727 = vld [vmem:[%s353 + $0x164] sm:$0xf]
        %v1728 = vld [vmem:[%s353 + $0x168] sm:$0xf]
        %v1729 = vld [vmem:[%s353 + $0x16c] sm:$0xf]
        %v1730 = vld [vmem:[%s353 + $0x170] sm:$0xf]
        %v1731 = vld [vmem:[%s353 + $0x174] sm:$0xf]
        %v1732 = vld [vmem:[%s353 + $0x178] sm:$0xf]
        %v1733 = vld [vmem:[%s353 + $0x17c] sm:$0xf]
        %v1734 = vld [vmem:[%s353 + $0x180] sm:$0xf]
        %v1735 = vld [vmem:[%s353 + $0x184] sm:$0xf]
        %v1736 = vld [vmem:[%s353 + $0x188] sm:$0xf]
        %v1737 = vld [vmem:[%s353 + $0x18c] sm:$0xf]
        %v1738 = vld [vmem:[%s353 + $0x190] sm:$0xf]
        %v1739 = vld [vmem:[%s353 + $0x194] sm:$0xf]
        %v1740 = vld [vmem:[%s353 + $0x198] sm:$0xf]
        %v1741 = vld [vmem:[%s353 + $0x19c] sm:$0xf]
        %v1742 = vld [vmem:[%s353 + $0x1a0] sm:$0xf]
        %v1743 = vld [vmem:[%s353 + $0x1a4] sm:$0xf]
        %v1744 = vld [vmem:[%s353 + $0x1a8] sm:$0xf]
        %v1745 = vld [vmem:[%s353 + $0x1ac] sm:$0xf]
        %v1746 = vld [vmem:[%s353 + $0x1b0] sm:$0xf]
        %v1747 = vld [vmem:[%s353 + $0x1b4] sm:$0xf]
        %v1748 = vld [vmem:[%s353 + $0x1b8] sm:$0xf]
        %v1749 = vld [vmem:[%s353 + $0x1bc] sm:$0xf]
        %v1750 = vld [vmem:[%s353 + $0x1c0] sm:$0xf]
        %v1751 = vld [vmem:[%s353 + $0x1c4] sm:$0xf]
        %v1752 = vld [vmem:[%s353 + $0x1c8] sm:$0xf]
        %v1753 = vld [vmem:[%s353 + $0x1cc] sm:$0xf]
        %v1754 = vld [vmem:[%s353 + $0x1d0] sm:$0xf]
        %v1755 = vld [vmem:[%s353 + $0x1d4] sm:$0xf]
        %v1756 = vld [vmem:[%s353 + $0x1d8] sm:$0xf]
        %v1757 = vld [vmem:[%s353 + $0x1dc] sm:$0xf]
        %v1758 = vld [vmem:[%s353 + $0x1e0] sm:$0xf]
        %v1759 = vld [vmem:[%s353 + $0x1e4] sm:$0xf]
        %v1760 = vld [vmem:[%s353 + $0x1e8] sm:$0xf]
        %v1761 = vld [vmem:[%s353 + $0x1ec] sm:$0xf]
        %v1762 = vld [vmem:[%s353 + $0x1f0] sm:$0xf]
        %v1763 = vld [vmem:[%s353 + $0x1f4] sm:$0xf]
        %v1764 = vld [vmem:[%s353 + $0x1f8] sm:$0xf]
        %v1765 = vld [vmem:[%s353 + $0x1fc] sm:$0xf]
        %v1766 = vld [vmem:[%s353 + $0x200] sm:$0xf]
        %v1767 = vld [vmem:[%s353 + $0x204] sm:$0xf]
        %v1768 = vld [vmem:[%s353 + $0x208] sm:$0xf]
        %v1769 = vld [vmem:[%s353 + $0x20c] sm:$0xf]
        %v1770 = vld [vmem:[%s353 + $0x210] sm:$0xf]
        %v1771 = vld [vmem:[%s353 + $0x214] sm:$0xf]
        %v1772 = vld [vmem:[%s353 + $0x218] sm:$0xf]
        %v1773 = vld [vmem:[%s353 + $0x21c] sm:$0xf]
        %v1774 = vld [vmem:[%s353 + $0x220] sm:$0xf]
        %v1775 = vld [vmem:[%s353 + $0x224] sm:$0xf]
        %v1776 = vld [vmem:[%s353 + $0x228] sm:$0xf]
        %v1777 = vld [vmem:[%s353 + $0x22c] sm:$0xf]
        %v1778 = vld [vmem:[%s353 + $0x230] sm:$0xf]
        %v1779 = vld [vmem:[%s353 + $0x234] sm:$0xf]
        %v1780 = vld [vmem:[%s353 + $0x238] sm:$0xf]
        %v1781 = vld [vmem:[%s353 + $0x23c] sm:$0xf]
        %v1782 = vld [vmem:[%s353 + $0x240] sm:$0xf]
        %v1783 = vld [vmem:[%s353 + $0x244] sm:$0xf]
        %v1784 = vld [vmem:[%s353 + $0x248] sm:$0xf]
        %v1785 = vld [vmem:[%s353 + $0x24c] sm:$0xf]
        %v1786 = vld [vmem:[%s353 + $0x250] sm:$0xf]
        %v1787 = vld [vmem:[%s353 + $0x254] sm:$0xf]
        %v1788 = vld [vmem:[%s353 + $0x258] sm:$0xf]
        %v1789 = vld [vmem:[%s353 + $0x25c] sm:$0xf]
        %v1790 = vld [vmem:[%s353 + $0x260] sm:$0xf]
        %v1791 = vld [vmem:[%s353 + $0x264] sm:$0xf]
        %v1792 = vld [vmem:[%s353 + $0x268] sm:$0xf]
        %v1793 = vld [vmem:[%s353 + $0x26c] sm:$0xf]
        %v1794 = vld [vmem:[%s353 + $0x270] sm:$0xf]
        %v1795 = vld [vmem:[%s353 + $0x274] sm:$0xf]
        %v1796 = vld [vmem:[%s353 + $0x278] sm:$0xf]
        %v1797 = vld [vmem:[%s353 + $0x27c] sm:$0xf]
        %v1798 = vld [vmem:[%s353 + $0x280] sm:$0xf]
        %v1799 = vld [vmem:[%s353 + $0x284] sm:$0xf]
        %v1800 = vld [vmem:[%s353 + $0x288] sm:$0xf]
        %v1801 = vld [vmem:[%s353 + $0x28c] sm:$0xf]
        %v1802 = vld [vmem:[%s353 + $0x290] sm:$0xf]
        %v1803 = vld [vmem:[%s353 + $0x294] sm:$0xf]
        %v1804 = vld [vmem:[%s353 + $0x298] sm:$0xf]
        %v1805 = vld [vmem:[%s353 + $0x29c] sm:$0xf]
        %v1806 = vld [vmem:[%s353 + $0x2a0] sm:$0xf]
        %v1807 = vld [vmem:[%s353 + $0x2a4] sm:$0xf]
        %v1808 = vld [vmem:[%s353 + $0x2a8] sm:$0xf]
        %v1809 = vld [vmem:[%s353 + $0x2ac] sm:$0xf]
        %v1810 = vld [vmem:[%s353 + $0x2b0] sm:$0xf]
        %v1811 = vld [vmem:[%s353 + $0x2b4] sm:$0xf]
        %v1812 = vld [vmem:[%s353 + $0x2b8] sm:$0xf]
        %v1813 = vld [vmem:[%s353 + $0x2bc] sm:$0xf]
        %v1814 = vld [vmem:[%s353 + $0x2c0] sm:$0xf]
        %v1815 = vld [vmem:[%s353 + $0x2c4] sm:$0xf]
        %v1816 = vld [vmem:[%s353 + $0x2c8] sm:$0xf]
        %v1817 = vld [vmem:[%s353 + $0x2cc] sm:$0xf]
        %v1818 = vld [vmem:[%s353 + $0x2d0] sm:$0xf]
        %v1819 = vld [vmem:[%s353 + $0x2d4] sm:$0xf]
        %v1820 = vld [vmem:[%s353 + $0x2d8] sm:$0xf]
        %v1821 = vld [vmem:[%s353 + $0x2dc] sm:$0xf]
        %v1822 = vld [vmem:[%s353 + $0x2e0] sm:$0xf]
        %v1823 = vld [vmem:[%s353 + $0x2e4] sm:$0xf]
        %v1824 = vld [vmem:[%s353 + $0x2e8] sm:$0xf]
        %v1825 = vld [vmem:[%s353 + $0x2ec] sm:$0xf]
        %v1826 = vld [vmem:[%s353 + $0x2f0] sm:$0xf]
        %v1827 = vld [vmem:[%s353 + $0x2f4] sm:$0xf]
        %v1828 = vld [vmem:[%s353 + $0x2f8] sm:$0xf]
        %v1829 = vld [vmem:[%s353 + $0x2fc] sm:$0xf]
        %v1830 = vld [vmem:[%s353 + $0x300] sm:$0xf]
        %v1831 = vld [vmem:[%s353 + $0x304] sm:$0xf]
        %v1832 = vld [vmem:[%s353 + $0x308] sm:$0xf]
        %v1833 = vld [vmem:[%s353 + $0x30c] sm:$0xf]
        %v1834 = vld [vmem:[%s353 + $0x310] sm:$0xf]
        %v1835 = vld [vmem:[%s353 + $0x314] sm:$0xf]
        %v1836 = vld [vmem:[%s353 + $0x318] sm:$0xf]
        %v1837 = vld [vmem:[%s353 + $0x31c] sm:$0xf]
        %v1838 = vld [vmem:[%s353 + $0x320] sm:$0xf]
        %v1839 = vld [vmem:[%s353 + $0x324] sm:$0xf]
        %v1840 = vld [vmem:[%s353 + $0x328] sm:$0xf]
        %v1841 = vld [vmem:[%s353 + $0x32c] sm:$0xf]
        %v1842 = vld [vmem:[%s353 + $0x330] sm:$0xf]
        %v1843 = vld [vmem:[%s353 + $0x334] sm:$0xf]
        %v1844 = vld [vmem:[%s353 + $0x338] sm:$0xf]
        %v1845 = vld [vmem:[%s353 + $0x33c] sm:$0xf]
        %v1846 = vld [vmem:[%s353 + $0x340] sm:$0xf]
        %v1847 = vld [vmem:[%s353 + $0x344] sm:$0xf]
        %v1848 = vld [vmem:[%s353 + $0x348] sm:$0xf]
        %v1849 = vld [vmem:[%s353 + $0x34c] sm:$0xf]
        %v1850 = vld [vmem:[%s353 + $0x350] sm:$0xf]
        %v1851 = vld [vmem:[%s353 + $0x354] sm:$0xf]
        %v1852 = vld [vmem:[%s353 + $0x358] sm:$0xf]
        %v1853 = vld [vmem:[%s353 + $0x35c] sm:$0xf]
        %v1854 = vld [vmem:[%s353 + $0x360] sm:$0xf]
        %v1855 = vld [vmem:[%s353 + $0x364] sm:$0xf]
        %v1856 = vld [vmem:[%s353 + $0x368] sm:$0xf]
        %v1857 = vld [vmem:[%s353 + $0x36c] sm:$0xf]
        %v1858 = vld [vmem:[%s353 + $0x370] sm:$0xf]
        %v1859 = vld [vmem:[%s353 + $0x374] sm:$0xf]
        %v1860 = vld [vmem:[%s353 + $0x378] sm:$0xf]
        %v1861 = vld [vmem:[%s353 + $0x37c] sm:$0xf]
        %v1862 = vld [vmem:[%s353 + $0x380] sm:$0xf]
        %v1863 = vld [vmem:[%s353 + $0x384] sm:$0xf]
        %v1864 = vld [vmem:[%s353 + $0x388] sm:$0xf]
        %v1865 = vld [vmem:[%s353 + $0x38c] sm:$0xf]
        %v1866 = vld [vmem:[%s353 + $0x390] sm:$0xf]
        %v1867 = vld [vmem:[%s353 + $0x394] sm:$0xf]
        %v1868 = vld [vmem:[%s353 + $0x398] sm:$0xf]
        %v1869 = vld [vmem:[%s353 + $0x39c] sm:$0xf]
        %v1870 = vld [vmem:[%s353 + $0x3a0] sm:$0xf]
        %v1871 = vld [vmem:[%s353 + $0x3a4] sm:$0xf]
        %v1872 = vld [vmem:[%s353 + $0x3a8] sm:$0xf]
        %v1873 = vld [vmem:[%s353 + $0x3ac] sm:$0xf]
        %v1874 = vld [vmem:[%s353 + $0x3b0] sm:$0xf]
        %v1875 = vld [vmem:[%s353 + $0x3b4] sm:$0xf]
        %v1876 = vld [vmem:[%s353 + $0x3b8] sm:$0xf]
        %v1877 = vld [vmem:[%s353 + $0x3bc] sm:$0xf]
        %v1878 = vld [vmem:[%s353 + $0x3c0] sm:$0xf]
        %v1879 = vld [vmem:[%s353 + $0x3c4] sm:$0xf]
        %v1880 = vld [vmem:[%s353 + $0x3c8] sm:$0xf]
        %v1881 = vld [vmem:[%s353 + $0x3cc] sm:$0xf]
        %v1882 = vld [vmem:[%s353 + $0x3d0] sm:$0xf]
        %v1883 = vld [vmem:[%s353 + $0x3d4] sm:$0xf]
        %v1884 = vld [vmem:[%s353 + $0x3d8] sm:$0xf]
        %v1885 = vld [vmem:[%s353 + $0x3dc] sm:$0xf]
        %v1886 = vld [vmem:[%s353 + $0x3e0] sm:$0xf]
        %v1887 = vld [vmem:[%s353 + $0x3e4] sm:$0xf]
        %v1888 = vld [vmem:[%s353 + $0x3e8] sm:$0xf]
        %v1889 = vld [vmem:[%s353 + $0x3ec] sm:$0xf]
        %v1890 = vld [vmem:[%s353 + $0x3f0] sm:$0xf]
        %v1891 = vld [vmem:[%s353 + $0x3f4] sm:$0xf]
        %v1892 = vld [vmem:[%s353 + $0x3f8] sm:$0xf]
        %v1893 = vld [vmem:[%s353 + $0x3fc] sm:$0xf]
        %v1894 = vlaneseq
        %v1895 = vshrl.u32 %v1894, 7
        %v1896 = vsub.s32 3, %v1895
        %v1897 = vrot.slane %v368, %v1896
        %v2154 = vunpack.c.l.b16 %v1638
        %v2155 = vunpack.c.l.b16 %v1639
        %v2156 = vunpack.c.l.b16 %v1640
        %v2157 = vunpack.c.l.b16 %v1641
        %v2158 = vunpack.c.l.b16 %v1642
        %v2159 = vunpack.c.l.b16 %v1643
        %v2160 = vunpack.c.l.b16 %v1644
        %v2161 = vunpack.c.l.b16 %v1645
        %v2162 = vunpack.c.l.b16 %v1646
        %v2163 = vunpack.c.l.b16 %v1647
        %v2164 = vunpack.c.l.b16 %v1648
        %v2165 = vunpack.c.l.b16 %v1649
        %v2166 = vunpack.c.l.b16 %v1650
        %v2167 = vunpack.c.l.b16 %v1651
        %v2168 = vunpack.c.l.b16 %v1652
        %v2169 = vunpack.c.l.b16 %v1653
        %v2170 = vunpack.c.l.b16 %v1654
        %v2171 = vunpack.c.l.b16 %v1655
        %v2172 = vunpack.c.l.b16 %v1656
        %v2173 = vunpack.c.l.b16 %v1657
        %v2174 = vunpack.c.l.b16 %v1658
        %v2175 = vunpack.c.l.b16 %v1659
        %v2176 = vunpack.c.l.b16 %v1660
        %v2177 = vunpack.c.l.b16 %v1661
        %v2178 = vunpack.c.l.b16 %v1662
        %v2179 = vunpack.c.l.b16 %v1663
        %v2180 = vunpack.c.l.b16 %v1664
        %v2181 = vunpack.c.l.b16 %v1665
        %v2182 = vunpack.c.l.b16 %v1666
        %v2183 = vunpack.c.l.b16 %v1667
        %v2184 = vunpack.c.l.b16 %v1668
        %v2185 = vunpack.c.l.b16 %v1669
        %v2186 = vunpack.c.l.b16 %v1670
        %v2187 = vunpack.c.l.b16 %v1671
        %v2188 = vunpack.c.l.b16 %v1672
        %v2189 = vunpack.c.l.b16 %v1673
        %v2190 = vunpack.c.l.b16 %v1674
        %v2191 = vunpack.c.l.b16 %v1675
        %v2192 = vunpack.c.l.b16 %v1676
        %v2193 = vunpack.c.l.b16 %v1677
        %v2194 = vunpack.c.l.b16 %v1678
        %v2195 = vunpack.c.l.b16 %v1679
        %v2196 = vunpack.c.l.b16 %v1680
        %v2197 = vunpack.c.l.b16 %v1681
        %v2198 = vunpack.c.l.b16 %v1682
        %v2199 = vunpack.c.l.b16 %v1683
        %v2200 = vunpack.c.l.b16 %v1684
        %v2201 = vunpack.c.l.b16 %v1685
        %v2202 = vunpack.c.l.b16 %v1686
        %v2203 = vunpack.c.l.b16 %v1687
        %v2204 = vunpack.c.l.b16 %v1688
        %v2205 = vunpack.c.l.b16 %v1689
        %v2206 = vunpack.c.l.b16 %v1690
        %v2207 = vunpack.c.l.b16 %v1691
        %v2208 = vunpack.c.l.b16 %v1692
        %v2209 = vunpack.c.l.b16 %v1693
        %v2210 = vunpack.c.l.b16 %v1694
        %v2211 = vunpack.c.l.b16 %v1695
        %v2212 = vunpack.c.l.b16 %v1696
        %v2213 = vunpack.c.l.b16 %v1697
        %v2214 = vunpack.c.l.b16 %v1698
        %v2215 = vunpack.c.l.b16 %v1699
        %v2216 = vunpack.c.l.b16 %v1700
        %v2217 = vunpack.c.l.b16 %v1701
        %v2218 = vunpack.c.l.b16 %v1702
        %v2219 = vunpack.c.l.b16 %v1703
        %v2220 = vunpack.c.l.b16 %v1704
        %v2221 = vunpack.c.l.b16 %v1705
        %v2222 = vunpack.c.l.b16 %v1706
        %v2223 = vunpack.c.l.b16 %v1707
        %v2224 = vunpack.c.l.b16 %v1708
        %v2225 = vunpack.c.l.b16 %v1709
        %v2226 = vunpack.c.l.b16 %v1710
        %v2227 = vunpack.c.l.b16 %v1711
        %v2228 = vunpack.c.l.b16 %v1712
        %v2229 = vunpack.c.l.b16 %v1713
        %v2230 = vunpack.c.l.b16 %v1714
        %v2231 = vunpack.c.l.b16 %v1715
        %v2232 = vunpack.c.l.b16 %v1716
        %v2233 = vunpack.c.l.b16 %v1717
        %v2234 = vunpack.c.l.b16 %v1718
        %v2235 = vunpack.c.l.b16 %v1719
        %v2236 = vunpack.c.l.b16 %v1720
        %v2237 = vunpack.c.l.b16 %v1721
        %v2238 = vunpack.c.l.b16 %v1722
        %v2239 = vunpack.c.l.b16 %v1723
        %v2240 = vunpack.c.l.b16 %v1724
        %v2241 = vunpack.c.l.b16 %v1725
        %v2242 = vunpack.c.l.b16 %v1726
        %v2243 = vunpack.c.l.b16 %v1727
        %v2244 = vunpack.c.l.b16 %v1728
        %v2245 = vunpack.c.l.b16 %v1729
        %v2246 = vunpack.c.l.b16 %v1730
        %v2247 = vunpack.c.l.b16 %v1731
        %v2248 = vunpack.c.l.b16 %v1732
        %v2249 = vunpack.c.l.b16 %v1733
        %v2250 = vunpack.c.l.b16 %v1734
        %v2251 = vunpack.c.l.b16 %v1735
        %v2252 = vunpack.c.l.b16 %v1736
        %v2253 = vunpack.c.l.b16 %v1737
        %v2254 = vunpack.c.l.b16 %v1738
        %v2255 = vunpack.c.l.b16 %v1739
        %v2256 = vunpack.c.l.b16 %v1740
        %v2257 = vunpack.c.l.b16 %v1741
        %v2258 = vunpack.c.l.b16 %v1742
        %v2259 = vunpack.c.l.b16 %v1743
        %v2260 = vunpack.c.l.b16 %v1744
        %v2261 = vunpack.c.l.b16 %v1745
        %v2262 = vunpack.c.l.b16 %v1746
        %v2263 = vunpack.c.l.b16 %v1747
        %v2264 = vunpack.c.l.b16 %v1748
        %v2265 = vunpack.c.l.b16 %v1749
        %v2266 = vunpack.c.l.b16 %v1750
        %v2267 = vunpack.c.l.b16 %v1751
        %v2268 = vunpack.c.l.b16 %v1752
        %v2269 = vunpack.c.l.b16 %v1753
        %v2270 = vunpack.c.l.b16 %v1754
        %v2271 = vunpack.c.l.b16 %v1755
        %v2272 = vunpack.c.l.b16 %v1756
        %v2273 = vunpack.c.l.b16 %v1757
        %v2274 = vunpack.c.l.b16 %v1758
        %v2275 = vunpack.c.l.b16 %v1759
        %v2276 = vunpack.c.l.b16 %v1760
        %v2277 = vunpack.c.l.b16 %v1761
        %v2278 = vunpack.c.l.b16 %v1762
        %v2279 = vunpack.c.l.b16 %v1763
        %v2280 = vunpack.c.l.b16 %v1764
        %v2281 = vunpack.c.l.b16 %v1765
        %v2282 = vunpack.c.l.b16 %v1766
        %v2283 = vunpack.c.l.b16 %v1767
        %v2284 = vunpack.c.l.b16 %v1768
        %v2285 = vunpack.c.l.b16 %v1769
        %v2286 = vunpack.c.l.b16 %v1770
        %v2287 = vunpack.c.l.b16 %v1771
        %v2288 = vunpack.c.l.b16 %v1772
        %v2289 = vunpack.c.l.b16 %v1773
        %v2290 = vunpack.c.l.b16 %v1774
        %v2291 = vunpack.c.l.b16 %v1775
        %v2292 = vunpack.c.l.b16 %v1776
        %v2293 = vunpack.c.l.b16 %v1777
        %v2294 = vunpack.c.l.b16 %v1778
        %v2295 = vunpack.c.l.b16 %v1779
        %v2296 = vunpack.c.l.b16 %v1780
        %v2297 = vunpack.c.l.b16 %v1781
        %v2298 = vunpack.c.l.b16 %v1782
        %v2299 = vunpack.c.l.b16 %v1783
        %v2300 = vunpack.c.l.b16 %v1784
        %v2301 = vunpack.c.l.b16 %v1785
        %v2302 = vunpack.c.l.b16 %v1786
        %v2303 = vunpack.c.l.b16 %v1787
        %v2304 = vunpack.c.l.b16 %v1788
        %v2305 = vunpack.c.l.b16 %v1789
        %v2306 = vunpack.c.l.b16 %v1790
        %v2307 = vunpack.c.l.b16 %v1791
        %v2308 = vunpack.c.l.b16 %v1792
        %v2309 = vunpack.c.l.b16 %v1793
        %v2310 = vunpack.c.l.b16 %v1794
        %v2311 = vunpack.c.l.b16 %v1795
        %v2312 = vunpack.c.l.b16 %v1796
        %v2313 = vunpack.c.l.b16 %v1797
        %v2314 = vunpack.c.l.b16 %v1798
        %v2315 = vunpack.c.l.b16 %v1799
        %v2316 = vunpack.c.l.b16 %v1800
        %v2317 = vunpack.c.l.b16 %v1801
        %v2318 = vunpack.c.l.b16 %v1802
        %v2319 = vunpack.c.l.b16 %v1803
        %v2320 = vunpack.c.l.b16 %v1804
        %v2321 = vunpack.c.l.b16 %v1805
        %v2322 = vunpack.c.l.b16 %v1806
        %v2323 = vunpack.c.l.b16 %v1807
        %v2324 = vunpack.c.l.b16 %v1808
        %v2325 = vunpack.c.l.b16 %v1809
        %v2326 = vunpack.c.l.b16 %v1810
        %v2327 = vunpack.c.l.b16 %v1811
        %v2328 = vunpack.c.l.b16 %v1812
        %v2329 = vunpack.c.l.b16 %v1813
        %v2330 = vunpack.c.l.b16 %v1814
        %v2331 = vunpack.c.l.b16 %v1815
        %v2332 = vunpack.c.l.b16 %v1816
        %v2333 = vunpack.c.l.b16 %v1817
        %v2334 = vunpack.c.l.b16 %v1818
        %v2335 = vunpack.c.l.b16 %v1819
        %v2336 = vunpack.c.l.b16 %v1820
        %v2337 = vunpack.c.l.b16 %v1821
        %v2338 = vunpack.c.l.b16 %v1822
        %v2339 = vunpack.c.l.b16 %v1823
        %v2340 = vunpack.c.l.b16 %v1824
        %v2341 = vunpack.c.l.b16 %v1825
        %v2342 = vunpack.c.l.b16 %v1826
        %v2343 = vunpack.c.l.b16 %v1827
        %v2344 = vunpack.c.l.b16 %v1828
        %v2345 = vunpack.c.l.b16 %v1829
        %v2346 = vunpack.c.l.b16 %v1830
        %v2347 = vunpack.c.l.b16 %v1831
        %v2348 = vunpack.c.l.b16 %v1832
        %v2349 = vunpack.c.l.b16 %v1833
        %v2350 = vunpack.c.l.b16 %v1834
        %v2351 = vunpack.c.l.b16 %v1835
        %v2352 = vunpack.c.l.b16 %v1836
        %v2353 = vunpack.c.l.b16 %v1837
        %v2354 = vunpack.c.l.b16 %v1838
        %v2355 = vunpack.c.l.b16 %v1839
        %v2356 = vunpack.c.l.b16 %v1840
        %v2357 = vunpack.c.l.b16 %v1841
        %v2358 = vunpack.c.l.b16 %v1842
        %v2359 = vunpack.c.l.b16 %v1843
        %v2360 = vunpack.c.l.b16 %v1844
        %v2361 = vunpack.c.l.b16 %v1845
        %v2362 = vunpack.c.l.b16 %v1846
        %v2363 = vunpack.c.l.b16 %v1847
        %v2364 = vunpack.c.l.b16 %v1848
        %v2365 = vunpack.c.l.b16 %v1849
        %v2366 = vunpack.c.l.b16 %v1850
        %v2367 = vunpack.c.l.b16 %v1851
        %v2368 = vunpack.c.l.b16 %v1852
        %v2369 = vunpack.c.l.b16 %v1853
        %v2370 = vunpack.c.l.b16 %v1854
        %v2371 = vunpack.c.l.b16 %v1855
        %v2372 = vunpack.c.l.b16 %v1856
        %v2373 = vunpack.c.l.b16 %v1857
        %v2374 = vunpack.c.l.b16 %v1858
        %v2375 = vunpack.c.l.b16 %v1859
        %v2376 = vunpack.c.l.b16 %v1860
        %v2377 = vunpack.c.l.b16 %v1861
        %v2378 = vunpack.c.l.b16 %v1862
        %v2379 = vunpack.c.l.b16 %v1863
        %v2380 = vunpack.c.l.b16 %v1864
        %v2381 = vunpack.c.l.b16 %v1865
        %v2382 = vunpack.c.l.b16 %v1866
        %v2383 = vunpack.c.l.b16 %v1867
        %v2384 = vunpack.c.l.b16 %v1868
        %v2385 = vunpack.c.l.b16 %v1869
        %v2386 = vunpack.c.l.b16 %v1870
        %v2387 = vunpack.c.l.b16 %v1871
        %v2388 = vunpack.c.l.b16 %v1872
        %v2389 = vunpack.c.l.b16 %v1873
        %v2390 = vunpack.c.l.b16 %v1874
        %v2391 = vunpack.c.l.b16 %v1875
        %v2392 = vunpack.c.l.b16 %v1876
        %v2393 = vunpack.c.l.b16 %v1877
        %v2394 = vunpack.c.l.b16 %v1878
        %v2395 = vunpack.c.l.b16 %v1879
        %v2396 = vunpack.c.l.b16 %v1880
        %v2397 = vunpack.c.l.b16 %v1881
        %v2398 = vunpack.c.l.b16 %v1882
        %v2399 = vunpack.c.l.b16 %v1883
        %v2400 = vunpack.c.l.b16 %v1884
        %v2401 = vunpack.c.l.b16 %v1885
        %v2402 = vunpack.c.l.b16 %v1886
        %v2403 = vunpack.c.l.b16 %v1887
        %v2404 = vunpack.c.l.b16 %v1888
        %v2405 = vunpack.c.l.b16 %v1889
        %v2406 = vunpack.c.l.b16 %v1890
        %v2407 = vunpack.c.l.b16 %v1891
        %v2408 = vunpack.c.l.b16 %v1892
        %v2409 = vunpack.c.l.b16 %v1893
        %v2410 = vpack.c.b16 %v2155, %v2154
        %v2411 = vpack.c.b16 %v2157, %v2156
        %v2412 = vpack.c.b16 %v2159, %v2158
        %v2413 = vpack.c.b16 %v2161, %v2160
        %v2414 = vpack.c.b16 %v2163, %v2162
        %v2415 = vpack.c.b16 %v2165, %v2164
        %v2416 = vpack.c.b16 %v2167, %v2166
        %v2417 = vpack.c.b16 %v2169, %v2168
        %v2418 = vpack.c.b16 %v2171, %v2170
        %v2419 = vpack.c.b16 %v2173, %v2172
        %v2420 = vpack.c.b16 %v2175, %v2174
        %v2421 = vpack.c.b16 %v2177, %v2176
        %v2422 = vpack.c.b16 %v2179, %v2178
        %v2423 = vpack.c.b16 %v2181, %v2180
        %v2424 = vpack.c.b16 %v2183, %v2182
        %v2425 = vpack.c.b16 %v2185, %v2184
        %v2426 = vpack.c.b16 %v2187, %v2186
        %v2427 = vpack.c.b16 %v2189, %v2188
        %v2428 = vpack.c.b16 %v2191, %v2190
        %v2429 = vpack.c.b16 %v2193, %v2192
        %v2430 = vpack.c.b16 %v2195, %v2194
        %v2431 = vpack.c.b16 %v2197, %v2196
        %v2432 = vpack.c.b16 %v2199, %v2198
        %v2433 = vpack.c.b16 %v2201, %v2200
        %v2434 = vpack.c.b16 %v2203, %v2202
        %v2435 = vpack.c.b16 %v2205, %v2204
        %v2436 = vpack.c.b16 %v2207, %v2206
        %v2437 = vpack.c.b16 %v2209, %v2208
        %v2438 = vpack.c.b16 %v2211, %v2210
        %v2439 = vpack.c.b16 %v2213, %v2212
        %v2440 = vpack.c.b16 %v2215, %v2214
        %v2441 = vpack.c.b16 %v2217, %v2216
        %v2442 = vpack.c.b16 %v2219, %v2218
        %v2443 = vpack.c.b16 %v2221, %v2220
        %v2444 = vpack.c.b16 %v2223, %v2222
        %v2445 = vpack.c.b16 %v2225, %v2224
        %v2446 = vpack.c.b16 %v2227, %v2226
        %v2447 = vpack.c.b16 %v2229, %v2228
        %v2448 = vpack.c.b16 %v2231, %v2230
        %v2449 = vpack.c.b16 %v2233, %v2232
        %v2450 = vpack.c.b16 %v2235, %v2234
        %v2451 = vpack.c.b16 %v2237, %v2236
        %v2452 = vpack.c.b16 %v2239, %v2238
        %v2453 = vpack.c.b16 %v2241, %v2240
        %v2454 = vpack.c.b16 %v2243, %v2242
        %v2455 = vpack.c.b16 %v2245, %v2244
        %v2456 = vpack.c.b16 %v2247, %v2246
        %v2457 = vpack.c.b16 %v2249, %v2248
        %v2458 = vpack.c.b16 %v2251, %v2250
        %v2459 = vpack.c.b16 %v2253, %v2252
        %v2460 = vpack.c.b16 %v2255, %v2254
        %v2461 = vpack.c.b16 %v2257, %v2256
        %v2462 = vpack.c.b16 %v2259, %v2258
        %v2463 = vpack.c.b16 %v2261, %v2260
        %v2464 = vpack.c.b16 %v2263, %v2262
        %v2465 = vpack.c.b16 %v2265, %v2264
        %v2466 = vpack.c.b16 %v2267, %v2266
        %v2467 = vpack.c.b16 %v2269, %v2268
        %v2468 = vpack.c.b16 %v2271, %v2270
        %v2469 = vpack.c.b16 %v2273, %v2272
        %v2470 = vpack.c.b16 %v2275, %v2274
        %v2471 = vpack.c.b16 %v2277, %v2276
        %v2472 = vpack.c.b16 %v2279, %v2278
        %v2473 = vpack.c.b16 %v2281, %v2280
        %v2474 = vpack.c.b16 %v2283, %v2282
        %v2475 = vpack.c.b16 %v2285, %v2284
        %v2476 = vpack.c.b16 %v2287, %v2286
        %v2477 = vpack.c.b16 %v2289, %v2288
        %v2478 = vpack.c.b16 %v2291, %v2290
        %v2479 = vpack.c.b16 %v2293, %v2292
        %v2480 = vpack.c.b16 %v2295, %v2294
        %v2481 = vpack.c.b16 %v2297, %v2296
        %v2482 = vpack.c.b16 %v2299, %v2298
        %v2483 = vpack.c.b16 %v2301, %v2300
        %v2484 = vpack.c.b16 %v2303, %v2302
        %v2485 = vpack.c.b16 %v2305, %v2304
        %v2486 = vpack.c.b16 %v2307, %v2306
        %v2487 = vpack.c.b16 %v2309, %v2308
        %v2488 = vpack.c.b16 %v2311, %v2310
        %v2489 = vpack.c.b16 %v2313, %v2312
        %v2490 = vpack.c.b16 %v2315, %v2314
        %v2491 = vpack.c.b16 %v2317, %v2316
        %v2492 = vpack.c.b16 %v2319, %v2318
        %v2493 = vpack.c.b16 %v2321, %v2320
        %v2494 = vpack.c.b16 %v2323, %v2322
        %v2495 = vpack.c.b16 %v2325, %v2324
        %v2496 = vpack.c.b16 %v2327, %v2326
        %v2497 = vpack.c.b16 %v2329, %v2328
        %v2498 = vpack.c.b16 %v2331, %v2330
        %v2499 = vpack.c.b16 %v2333, %v2332
        %v2500 = vpack.c.b16 %v2335, %v2334
        %v2501 = vpack.c.b16 %v2337, %v2336
        %v2502 = vpack.c.b16 %v2339, %v2338
        %v2503 = vpack.c.b16 %v2341, %v2340
        %v2504 = vpack.c.b16 %v2343, %v2342
        %v2505 = vpack.c.b16 %v2345, %v2344
        %v2506 = vpack.c.b16 %v2347, %v2346
        %v2507 = vpack.c.b16 %v2349, %v2348
        %v2508 = vpack.c.b16 %v2351, %v2350
        %v2509 = vpack.c.b16 %v2353, %v2352
        %v2510 = vpack.c.b16 %v2355, %v2354
        %v2511 = vpack.c.b16 %v2357, %v2356
        %v2512 = vpack.c.b16 %v2359, %v2358
        %v2513 = vpack.c.b16 %v2361, %v2360
        %v2514 = vpack.c.b16 %v2363, %v2362
        %v2515 = vpack.c.b16 %v2365, %v2364
        %v2516 = vpack.c.b16 %v2367, %v2366
        %v2517 = vpack.c.b16 %v2369, %v2368
        %v2518 = vpack.c.b16 %v2371, %v2370
        %v2519 = vpack.c.b16 %v2373, %v2372
        %v2520 = vpack.c.b16 %v2375, %v2374
        %v2521 = vpack.c.b16 %v2377, %v2376
        %v2522 = vpack.c.b16 %v2379, %v2378
        %v2523 = vpack.c.b16 %v2381, %v2380
        %v2524 = vpack.c.b16 %v2383, %v2382
        %v2525 = vpack.c.b16 %v2385, %v2384
        %v2526 = vpack.c.b16 %v2387, %v2386
        %v2527 = vpack.c.b16 %v2389, %v2388
        %v2528 = vpack.c.b16 %v2391, %v2390
        %v2529 = vpack.c.b16 %v2393, %v2392
        %v2530 = vpack.c.b16 %v2395, %v2394
        %v2531 = vpack.c.b16 %v2397, %v2396
        %v2532 = vpack.c.b16 %v2399, %v2398
        %v2533 = vpack.c.b16 %v2401, %v2400
        %v2534 = vpack.c.b16 %v2403, %v2402
        %v2535 = vpack.c.b16 %v2405, %v2404
        %v2536 = vpack.c.b16 %v2407, %v2406
        %v2537 = vpack.c.b16 %v2409, %v2408
        %2666 = vmatprep.subr.bf16.mxu0 0
        %2667 = vmatpush1.bf16.msra.mxu0 %v2410
        %2668 = vmatprep.subr.bf16.mxu0 0
        %2669 = vmatpush1.bf16.msra.mxu0 %v2411
        %2670 = vmatprep.subr.bf16.mxu0 0
        %2671 = vmatpush1.bf16.msra.mxu0 %v2412
        %2672 = vmatprep.subr.bf16.mxu0 0
        %2673 = vmatpush1.bf16.msra.mxu0 %v2413
        %2674 = vmatprep.subr.bf16.mxu0 0
        %2675 = vmatpush1.bf16.msra.mxu0 %v2414
        %2676 = vmatprep.subr.bf16.mxu0 0
        %2677 = vmatpush1.bf16.msra.mxu0 %v2415
        %2678 = vmatprep.subr.bf16.mxu0 0
        %2679 = vmatpush1.bf16.msra.mxu0 %v2416
        %2680 = vmatprep.subr.bf16.mxu0 0
        %2681 = vmatpush1.bf16.msra.mxu0 %v2417
        %2682 = vmatprep.subr.bf16.mxu0 0
        %2683 = vmatpush1.bf16.msra.mxu0 %v2418
        %2684 = vmatprep.subr.bf16.mxu0 0
        %2685 = vmatpush1.bf16.msra.mxu0 %v2419
        %2686 = vmatprep.subr.bf16.mxu0 0
        %2687 = vmatpush1.bf16.msra.mxu0 %v2420
        %2688 = vmatprep.subr.bf16.mxu0 0
        %2689 = vmatpush1.bf16.msra.mxu0 %v2421
        %2690 = vmatprep.subr.bf16.mxu0 0
        %2691 = vmatpush1.bf16.msra.mxu0 %v2422
        %2692 = vmatprep.subr.bf16.mxu0 0
        %2693 = vmatpush1.bf16.msra.mxu0 %v2423
        %2694 = vmatprep.subr.bf16.mxu0 0
        %2695 = vmatpush1.bf16.msra.mxu0 %v2424
        %2696 = vmatprep.subr.bf16.mxu0 0
        %2697 = vmatpush1.bf16.msra.mxu0 %v2425
        %2698 = vmatprep.mubr.bf16.mxu0 %v1623
        %2699 = vmatmul.mubr.bf16.gmra.mrb[0].mxu0 %v1622
        %v2700 = vpop.f32.mrb[0].mxu0
        %v2701 = vadd.f32 %v1897, %v2700
        %v2702 = vpop.f32.mrb[0].mxu0
        %v2703 = vpop.f32.mrb[0].mxu0
        %v2704 = vpop.f32.mrb[0].mxu0
        %2705 = vdwg.mxu0
        %2706 = vmatprep.subr.bf16.mxu0 0
        %2707 = vmatpush1.bf16.msra.mxu0 %v2426
        %2708 = vmatprep.subr.bf16.mxu0 0
        %2709 = vmatpush1.bf16.msra.mxu0 %v2427
        %2710 = vmatprep.subr.bf16.mxu0 0
        %2711 = vmatpush1.bf16.msra.mxu0 %v2428
        %2712 = vmatprep.subr.bf16.mxu0 0
        %2713 = vmatpush1.bf16.msra.mxu0 %v2429
        %2714 = vmatprep.subr.bf16.mxu0 0
        %2715 = vmatpush1.bf16.msra.mxu0 %v2430
        %2716 = vmatprep.subr.bf16.mxu0 0
        %2717 = vmatpush1.bf16.msra.mxu0 %v2431
        %2718 = vmatprep.subr.bf16.mxu0 0
        %2719 = vmatpush1.bf16.msra.mxu0 %v2432
        %2720 = vmatprep.subr.bf16.mxu0 0
        %2721 = vmatpush1.bf16.msra.mxu0 %v2433
        %2722 = vmatprep.subr.bf16.mxu0 0
        %2723 = vmatpush1.bf16.msra.mxu0 %v2434
        %2724 = vmatprep.subr.bf16.mxu0 0
        %2725 = vmatpush1.bf16.msra.mxu0 %v2435
        %2726 = vmatprep.subr.bf16.mxu0 0
        %2727 = vmatpush1.bf16.msra.mxu0 %v2436
        %2728 = vmatprep.subr.bf16.mxu0 0
        %2729 = vmatpush1.bf16.msra.mxu0 %v2437
        %2730 = vmatprep.subr.bf16.mxu0 0
        %2731 = vmatpush1.bf16.msra.mxu0 %v2438
        %2732 = vmatprep.subr.bf16.mxu0 0
        %2733 = vmatpush1.bf16.msra.mxu0 %v2439
        %2734 = vmatprep.subr.bf16.mxu0 0
        %2735 = vmatpush1.bf16.msra.mxu0 %v2440
        %2736 = vmatprep.subr.bf16.mxu0 0
        %2737 = vmatpush1.bf16.msra.mxu0 %v2441
        %2738 = vmatprep.mubr.bf16.mxu0 %v1625
        %2739 = vmatmul.mubr.bf16.gmra.mrb[0].mxu0 %v1624
        %v2740 = vpop.f32.mrb[0].mxu0
        %v2741 = vadd.f32 %v2701, %v2740
        %v2742 = vpop.f32.mrb[0].mxu0
        %v2743 = vpop.f32.mrb[0].mxu0
        %v2744 = vpop.f32.mrb[0].mxu0
        %2745 = vdwg.mxu0
        %2746 = vmatprep.subr.bf16.mxu0 0
        %2747 = vmatpush1.bf16.msra.mxu0 %v2442
        %2748 = vmatprep.subr.bf16.mxu0 0
        %2749 = vmatpush1.bf16.msra.mxu0 %v2443
        %2750 = vmatprep.subr.bf16.mxu0 0
        %2751 = vmatpush1.bf16.msra.mxu0 %v2444
        %2752 = vmatprep.subr.bf16.mxu0 0
        %2753 = vmatpush1.bf16.msra.mxu0 %v2445
        %2754 = vmatprep.subr.bf16.mxu0 0
        %2755 = vmatpush1.bf16.msra.mxu0 %v2446
        %2756 = vmatprep.subr.bf16.mxu0 0
        %2757 = vmatpush1.bf16.msra.mxu0 %v2447
        %2758 = vmatprep.subr.bf16.mxu0 0
        %2759 = vmatpush1.bf16.msra.mxu0 %v2448
        %2760 = vmatprep.subr.bf16.mxu0 0
        %2761 = vmatpush1.bf16.msra.mxu0 %v2449
        %2762 = vmatprep.subr.bf16.mxu0 0
        %2763 = vmatpush1.bf16.msra.mxu0 %v2450
        %2764 = vmatprep.subr.bf16.mxu0 0
        %2765 = vmatpush1.bf16.msra.mxu0 %v2451
        %2766 = vmatprep.subr.bf16.mxu0 0
        %2767 = vmatpush1.bf16.msra.mxu0 %v2452
        %2768 = vmatprep.subr.bf16.mxu0 0
        %2769 = vmatpush1.bf16.msra.mxu0 %v2453
        %2770 = vmatprep.subr.bf16.mxu0 0
        %2771 = vmatpush1.bf16.msra.mxu0 %v2454
        %2772 = vmatprep.subr.bf16.mxu0 0
        %2773 = vmatpush1.bf16.msra.mxu0 %v2455
        %2774 = vmatprep.subr.bf16.mxu0 0
        %2775 = vmatpush1.bf16.msra.mxu0 %v2456
        %2776 = vmatprep.subr.bf16.mxu0 0
        %2777 = vmatpush1.bf16.msra.mxu0 %v2457
        %2778 = vmatprep.mubr.bf16.mxu0 %v1627
        %2779 = vmatmul.mubr.bf16.gmra.mrb[0].mxu0 %v1626
        %v2780 = vpop.f32.mrb[0].mxu0
        %v2781 = vadd.f32 %v2741, %v2780
        %v2782 = vpop.f32.mrb[0].mxu0
        %v2783 = vpop.f32.mrb[0].mxu0
        %v2784 = vpop.f32.mrb[0].mxu0
        %2785 = vdwg.mxu0
        %2786 = vmatprep.subr.bf16.mxu0 0
        %2787 = vmatpush1.bf16.msra.mxu0 %v2458
        %2788 = vmatprep.subr.bf16.mxu0 0
        %2789 = vmatpush1.bf16.msra.mxu0 %v2459
        %2790 = vmatprep.subr.bf16.mxu0 0
        %2791 = vmatpush1.bf16.msra.mxu0 %v2460
        %2792 = vmatprep.subr.bf16.mxu0 0
        %2793 = vmatpush1.bf16.msra.mxu0 %v2461
        %2794 = vmatprep.subr.bf16.mxu0 0
        %2795 = vmatpush1.bf16.msra.mxu0 %v2462
        %2796 = vmatprep.subr.bf16.mxu0 0
        %2797 = vmatpush1.bf16.msra.mxu0 %v2463
        %2798 = vmatprep.subr.bf16.mxu0 0
        %2799 = vmatpush1.bf16.msra.mxu0 %v2464
        %2800 = vmatprep.subr.bf16.mxu0 0
        %2801 = vmatpush1.bf16.msra.mxu0 %v2465
        %2802 = vmatprep.subr.bf16.mxu0 0
        %2803 = vmatpush1.bf16.msra.mxu0 %v2466
        %2804 = vmatprep.subr.bf16.mxu0 0
        %2805 = vmatpush1.bf16.msra.mxu0 %v2467
        %2806 = vmatprep.subr.bf16.mxu0 0
        %2807 = vmatpush1.bf16.msra.mxu0 %v2468
        %2808 = vmatprep.subr.bf16.mxu0 0
        %2809 = vmatpush1.bf16.msra.mxu0 %v2469
        %2810 = vmatprep.subr.bf16.mxu0 0
        %2811 = vmatpush1.bf16.msra.mxu0 %v2470
        %2812 = vmatprep.subr.bf16.mxu0 0
        %2813 = vmatpush1.bf16.msra.mxu0 %v2471
        %2814 = vmatprep.subr.bf16.mxu0 0
        %2815 = vmatpush1.bf16.msra.mxu0 %v2472
        %2816 = vmatprep.subr.bf16.mxu0 0
        %2817 = vmatpush1.bf16.msra.mxu0 %v2473
        %2818 = vmatprep.mubr.bf16.mxu0 %v1629
        %2819 = vmatmul.mubr.bf16.gmra.mrb[0].mxu0 %v1628
        %v2820 = vpop.f32.mrb[0].mxu0
        %v2821 = vadd.f32 %v2781, %v2820
        %v2822 = vpop.f32.mrb[0].mxu0
        %v2823 = vpop.f32.mrb[0].mxu0
        %v2824 = vpop.f32.mrb[0].mxu0
        %2825 = vdwg.mxu0
        %2826 = vmatprep.subr.bf16.mxu0 0
        %2827 = vmatpush1.bf16.msra.mxu0 %v2474
        %2828 = vmatprep.subr.bf16.mxu0 0
        %2829 = vmatpush1.bf16.msra.mxu0 %v2475
        %2830 = vmatprep.subr.bf16.mxu0 0
        %2831 = vmatpush1.bf16.msra.mxu0 %v2476
        %2832 = vmatprep.subr.bf16.mxu0 0
        %2833 = vmatpush1.bf16.msra.mxu0 %v2477
        %2834 = vmatprep.subr.bf16.mxu0 0
        %2835 = vmatpush1.bf16.msra.mxu0 %v2478
        %2836 = vmatprep.subr.bf16.mxu0 0
        %2837 = vmatpush1.bf16.msra.mxu0 %v2479
        %2838 = vmatprep.subr.bf16.mxu0 0
        %2839 = vmatpush1.bf16.msra.mxu0 %v2480
        %2840 = vmatprep.subr.bf16.mxu0 0
        %2841 = vmatpush1.bf16.msra.mxu0 %v2481
        %2842 = vmatprep.subr.bf16.mxu0 0
        %2843 = vmatpush1.bf16.msra.mxu0 %v2482
        %2844 = vmatprep.subr.bf16.mxu0 0
        %2845 = vmatpush1.bf16.msra.mxu0 %v2483
        %2846 = vmatprep.subr.bf16.mxu0 0
        %2847 = vmatpush1.bf16.msra.mxu0 %v2484
        %2848 = vmatprep.subr.bf16.mxu0 0
        %2849 = vmatpush1.bf16.msra.mxu0 %v2485
        %2850 = vmatprep.subr.bf16.mxu0 0
        %2851 = vmatpush1.bf16.msra.mxu0 %v2486
        %2852 = vmatprep.subr.bf16.mxu0 0
        %2853 = vmatpush1.bf16.msra.mxu0 %v2487
        %2854 = vmatprep.subr.bf16.mxu0 0
        %2855 = vmatpush1.bf16.msra.mxu0 %v2488
        %2856 = vmatprep.subr.bf16.mxu0 0
        %2857 = vmatpush1.bf16.msra.mxu0 %v2489
        %2858 = vmatprep.mubr.bf16.mxu0 %v1631
        %2859 = vmatmul.mubr.bf16.gmra.mrb[0].mxu0 %v1630
        %v2860 = vpop.f32.mrb[0].mxu0
        %v2861 = vadd.f32 %v2821, %v2860
        %v2862 = vpop.f32.mrb[0].mxu0
        %v2863 = vpop.f32.mrb[0].mxu0
        %v2864 = vpop.f32.mrb[0].mxu0
        %2865 = vdwg.mxu0
        %2866 = vmatprep.subr.bf16.mxu0 0
        %2867 = vmatpush1.bf16.msra.mxu0 %v2490
        %2868 = vmatprep.subr.bf16.mxu0 0
        %2869 = vmatpush1.bf16.msra.mxu0 %v2491
        %2870 = vmatprep.subr.bf16.mxu0 0
        %2871 = vmatpush1.bf16.msra.mxu0 %v2492
        %2872 = vmatprep.subr.bf16.mxu0 0
        %2873 = vmatpush1.bf16.msra.mxu0 %v2493
        %2874 = vmatprep.subr.bf16.mxu0 0
        %2875 = vmatpush1.bf16.msra.mxu0 %v2494
        %2876 = vmatprep.subr.bf16.mxu0 0
        %2877 = vmatpush1.bf16.msra.mxu0 %v2495
        %2878 = vmatprep.subr.bf16.mxu0 0
        %2879 = vmatpush1.bf16.msra.mxu0 %v2496
        %2880 = vmatprep.subr.bf16.mxu0 0
        %2881 = vmatpush1.bf16.msra.mxu0 %v2497
        %2882 = vmatprep.subr.bf16.mxu0 0
        %2883 = vmatpush1.bf16.msra.mxu0 %v2498
        %2884 = vmatprep.subr.bf16.mxu0 0
        %2885 = vmatpush1.bf16.msra.mxu0 %v2499
        %2886 = vmatprep.subr.bf16.mxu0 0
        %2887 = vmatpush1.bf16.msra.mxu0 %v2500
        %2888 = vmatprep.subr.bf16.mxu0 0
        %2889 = vmatpush1.bf16.msra.mxu0 %v2501
        %2890 = vmatprep.subr.bf16.mxu0 0
        %2891 = vmatpush1.bf16.msra.mxu0 %v2502
        %2892 = vmatprep.subr.bf16.mxu0 0
        %2893 = vmatpush1.bf16.msra.mxu0 %v2503
        %2894 = vmatprep.subr.bf16.mxu0 0
        %2895 = vmatpush1.bf16.msra.mxu0 %v2504
        %2896 = vmatprep.subr.bf16.mxu0 0
        %2897 = vmatpush1.bf16.msra.mxu0 %v2505
        %2898 = vmatprep.mubr.bf16.mxu0 %v1633
        %2899 = vmatmul.mubr.bf16.gmra.mrb[0].mxu0 %v1632
        %v2900 = vpop.f32.mrb[0].mxu0
        %v2901 = vadd.f32 %v2861, %v2900
        %v2902 = vpop.f32.mrb[0].mxu0
        %v2903 = vpop.f32.mrb[0].mxu0
        %v2904 = vpop.f32.mrb[0].mxu0
        %2905 = vdwg.mxu0
        %2906 = vmatprep.subr.bf16.mxu0 0
        %2907 = vmatpush1.bf16.msra.mxu0 %v2506
        %2908 = vmatprep.subr.bf16.mxu0 0
        %2909 = vmatpush1.bf16.msra.mxu0 %v2507
        %2910 = vmatprep.subr.bf16.mxu0 0
        %2911 = vmatpush1.bf16.msra.mxu0 %v2508
        %2912 = vmatprep.subr.bf16.mxu0 0
        %2913 = vmatpush1.bf16.msra.mxu0 %v2509
        %2914 = vmatprep.subr.bf16.mxu0 0
        %2915 = vmatpush1.bf16.msra.mxu0 %v2510
        %2916 = vmatprep.subr.bf16.mxu0 0
        %2917 = vmatpush1.bf16.msra.mxu0 %v2511
        %2918 = vmatprep.subr.bf16.mxu0 0
        %2919 = vmatpush1.bf16.msra.mxu0 %v2512
        %2920 = vmatprep.subr.bf16.mxu0 0
        %2921 = vmatpush1.bf16.msra.mxu0 %v2513
        %2922 = vmatprep.subr.bf16.mxu0 0
        %2923 = vmatpush1.bf16.msra.mxu0 %v2514
        %2924 = vmatprep.subr.bf16.mxu0 0
        %2925 = vmatpush1.bf16.msra.mxu0 %v2515
        %2926 = vmatprep.subr.bf16.mxu0 0
        %2927 = vmatpush1.bf16.msra.mxu0 %v2516
        %2928 = vmatprep.subr.bf16.mxu0 0
        %2929 = vmatpush1.bf16.msra.mxu0 %v2517
        %2930 = vmatprep.subr.bf16.mxu0 0
        %2931 = vmatpush1.bf16.msra.mxu0 %v2518
        %2932 = vmatprep.subr.bf16.mxu0 0
        %2933 = vmatpush1.bf16.msra.mxu0 %v2519
        %2934 = vmatprep.subr.bf16.mxu0 0
        %2935 = vmatpush1.bf16.msra.mxu0 %v2520
        %2936 = vmatprep.subr.bf16.mxu0 0
        %2937 = vmatpush1.bf16.msra.mxu0 %v2521
        %2938 = vmatprep.mubr.bf16.mxu0 %v1635
        %2939 = vmatmul.mubr.bf16.gmra.mrb[0].mxu0 %v1634
        %v2940 = vpop.f32.mrb[0].mxu0
        %v2941 = vadd.f32 %v2901, %v2940
        %v2942 = vpop.f32.mrb[0].mxu0
        %v2943 = vpop.f32.mrb[0].mxu0
        %v2944 = vpop.f32.mrb[0].mxu0
        %2945 = vdwg.mxu0
        %2946 = vmatprep.subr.bf16.mxu0 0
        %2947 = vmatpush1.bf16.msra.mxu0 %v2522
        %2948 = vmatprep.subr.bf16.mxu0 0
        %2949 = vmatpush1.bf16.msra.mxu0 %v2523
        %2950 = vmatprep.subr.bf16.mxu0 0
        %2951 = vmatpush1.bf16.msra.mxu0 %v2524
        %2952 = vmatprep.subr.bf16.mxu0 0
        %2953 = vmatpush1.bf16.msra.mxu0 %v2525
        %2954 = vmatprep.subr.bf16.mxu0 0
        %2955 = vmatpush1.bf16.msra.mxu0 %v2526
        %2956 = vmatprep.subr.bf16.mxu0 0
        %2957 = vmatpush1.bf16.msra.mxu0 %v2527
        %2958 = vmatprep.subr.bf16.mxu0 0
        %2959 = vmatpush1.bf16.msra.mxu0 %v2528
        %2960 = vmatprep.subr.bf16.mxu0 0
        %2961 = vmatpush1.bf16.msra.mxu0 %v2529
        %2962 = vmatprep.subr.bf16.mxu0 0
        %2963 = vmatpush1.bf16.msra.mxu0 %v2530
        %2964 = vmatprep.subr.bf16.mxu0 0
        %2965 = vmatpush1.bf16.msra.mxu0 %v2531
        %2966 = vmatprep.subr.bf16.mxu0 0
        %2967 = vmatpush1.bf16.msra.mxu0 %v2532
        %2968 = vmatprep.subr.bf16.mxu0 0
        %2969 = vmatpush1.bf16.msra.mxu0 %v2533
        %2970 = vmatprep.subr.bf16.mxu0 0
        %2971 = vmatpush1.bf16.msra.mxu0 %v2534
        %2972 = vmatprep.subr.bf16.mxu0 0
        %2973 = vmatpush1.bf16.msra.mxu0 %v2535
        %2974 = vmatprep.subr.bf16.mxu0 0
        %2975 = vmatpush1.bf16.msra.mxu0 %v2536
        %2976 = vmatprep.subr.bf16.mxu0 0
        %2977 = vmatpush1.bf16.msra.mxu0 %v2537
        %2978 = vmatprep.mubr.bf16.mxu0 %v1637
        %2979 = vmatmul.mubr.bf16.gmra.mrb[0].mxu0 %v1636
        %v2980 = vpop.f32.mrb[0].mxu0
        %v2981 = vadd.f32 %v2941, %v2980
        %v2982 = vpop.f32.mrb[0].mxu0
        %v2983 = vpop.f32.mrb[0].mxu0
        %v2984 = vpop.f32.mrb[0].mxu0
        %2985 = vdwg.mxu0
        %v2986 = vadd.f32 %v1017, %v2981
        %v2987 = vsel %vm405, %v2986, 0.0
        %2988 = vadd.xlane.f32.xlu0 %v2987
        %v2989 = vpop.xlane.xlu0 %2988
        %v2990 = vmul.f32 %v2989, %v989
        %v2991 = vsub.f32 %v2986, %v2990
        %v2992 = vmul.f32 %v2991, %v2991
        %v2993 = vsel %vm405, %v2992, 0.0
        %2994 = vadd.xlane.f32.xlu0 %v2993
        %v2995 = vpop.xlane.xlu0 %2994
        %v2996 = vmul.f32 %v2995, %v996
        %v2997 = vrsqrt.pop %v2996
        %v2998 = vmul.f32 %v2996, %v2997
        %vm2999 = vcmp.eq.f32.partialorder %v2996, inf
        %v3000 = vsel %vm2999, %v2996, %v2998
        %vm3001 = vcmp.eq.f32.partialorder %v2996, 0.0
        %v3002 = vand.u32 %v2996, 2147483648
        %v3003 = vsel %vm3001, %v3002, %v3000
        %v3004 = vadd.f32 %v3003, 1e-06
        %v3005 = vrcp.pop %v3004
        %v3006 = vlaneseq
        %v3007 = vshrl.u32 %v3006, 7
        %v3008 = vsub.s32 6, %v3007
        %v3009 = vrot.slane %v368, %v3008
        %v3010 = vmul.f32 %v3009, %v2991
        %v3011 = vmul.f32 %v3010, %v3005
        %v3012 = vlaneseq
        %v3013 = vshrl.u32 %v3012, 7
        %v3014 = vsub.s32 7, %v3013
        %v3015 = vrot.slane %v368, %v3014
        %v3016 = vadd.f32 %v3011, %v3015
        %3017 = vst.msk [vmem:[%s329] sm:$0xff] %vm405, %v3016
        %s3018 = sand.u32 %s196, 1
        %s3019 = scalar_lea.sflag [#allocation4], %s3018
        %s3020 = sand.u32 %s196, 1
        %s3021 = smul.addr %s3020, 8
        %s3022 = scalar_lea.vmem [#allocation3], %s3021
        // Predicated region
        $region49: #{tpu_custom_call.1} parent=43 // pred_check
          %p3023 = pneg %p206
        $region50: #{tpu_custom_call.1} parent=43 // pred_check_branch
          %3025 = sbr.rel (%p3023) target = $region52
        $region51: #{tpu_custom_call.1} parent=43 // pred_region
          %s3027 = ssub.s32 128, 128
          %3028 = vsyncadd %s3019, %s3027
          %s3029 = smul.addr %s24, 128
          %s3030 = scalar_lea.hbm %s6, %s3029
          %s3032 = sshll.u32 %s3022, 4
          %s3033 = int_to_ptr.vmem [resolvable:$true] %s3032
          %3035 = dma.vmem_to_hbm [thread:$0]  %s3033, 128, %s3030, %s3019
        $region52: #{tpu_custom_call.1} parent=43 // pred_fallthru
          _
      $region44: #{tpu_custom_call.1} parent=5 // pred_fallthru
        _
      %p3036 = scmp.le.s32.totalorder 2, %s15
      // Predicated region
      $region53: #{tpu_custom_call.1} parent=5 // pred_check
        %p3037 = pneg %p3036
      $region54: #{tpu_custom_call.1} parent=5 // pred_check_branch
        %3039 = sbr.rel (%p3037) target = $region56
      $region55: #{tpu_custom_call.1} parent=5 // pred_region
        %s3040 = ssub.s32 %s15, 2
        // Predicated region
        $region57: #{tpu_custom_call.1} parent=55 // pred_check
          %p3041 = pneg %p212
        $region58: #{tpu_custom_call.1} parent=55 // pred_check_branch
          %3043 = sbr.rel (%p3041) target = $region60
        $region59: #{tpu_custom_call.1} parent=55 // pred_region
          %s3044 = sand.u32 %s197, 1
          %s3045 = scalar_lea.sflag [#allocation4], %s3044
          %s3046 = sand.u32 %s197, 1
          %s3047 = smul.addr %s3046, 8
          %s3048 = scalar_lea.vmem [#allocation3], %s3047
          %3049 = dma.done %s3045, 128
        $region60: #{tpu_custom_call.1} parent=55 // pred_fallthru
          _
      $region56: #{tpu_custom_call.1} parent=5 // pred_fallthru
        _
    $region6: #{tpu_custom_call.1} parent=1 // loop_footer
      %s19 = sadd.s32 1, %s15
    $region7: #{tpu_custom_call.1} parent=1 // loop_footer_branch
      %14 = sbr.rel target = $region3
    $region8: #{tpu_custom_call.1} parent=1 // loop_exit
      _
    %3050 = vsyncpa [#allocation4], 1
    %s3051 = scalar_lea.sflag [#allocation4], 1
    %3052 = vsyncpa %s3051, 1

</llo_original>
